<compile_context>
chip_gen: v5e
topology: v5e:2x2
jax: 0.10.0
libtpu: 0.0.40
codegen_flags: <defaults>
</compile_context>

<pallas_src>
import math
import functools

import jax
import jax.numpy as jnp
from jax import lax
from jax.experimental import pallas as pl
from jax.experimental.pallas import tpu as pltpu  # noqa: F401  (TPU backend)

# ----------------------------- config (small) -----------------------------
VOCAB = 64
D_MODEL = 32
NHEAD = 4
NUM_LAYERS = 2
DIM_FF = 64
MAX_SEQ = 16
PAD_ID = 0
LN_EPS = 1e-5
NEG_INF = jnp.float32(-1e30)  # large-negative instead of -inf (avoids NaN for masked rows)


# ----------------------------- fused Pallas kernel -----------------------------
def _fused_decoder_kernel(x0_ref, self_mask_ref, cross_mask_ref, wte_t_ref,
                          sa_qkv_w_ref, sa_qkv_b_ref, sa_out_w_ref, sa_out_b_ref,
                          ca_qkv_w_ref, ca_qkv_b_ref, ca_out_w_ref, ca_out_b_ref,
                          ff1_w_ref, ff1_b_ref, ff2_w_ref, ff2_b_ref,
                          ln1_w_ref, ln1_b_ref, ln2_w_ref, ln2_b_ref,
                          ln3_w_ref, ln3_b_ref,
                          logits_ref, *, num_layers, nhead, seq_len, eps):
    x = x0_ref[...]                       # (M, D) f32, rows are batch-major (b*T + t)
    mem = x                               # decoder memory = embedded input
    self_mask = self_mask_ref[...]        # (M, M) additive: causal + key-pad + batch block-diag
    cross_mask = cross_mask_ref[...]      # (M, M) additive: key-pad + batch block-diag
    M, D = x.shape
    Dh = D // nhead
    scale = 1.0 / math.sqrt(Dh)

    def layer_norm(y, g, b):
        mean = jnp.mean(y, axis=-1, keepdims=True)
        var = jnp.mean((y - mean) ** 2, axis=-1, keepdims=True)
        return (y - mean) * lax.rsqrt(var + eps) * g + b

    def mha(q_in, kv_in, qkv_w, qkv_b, out_w, out_b, mask, fused_qkv):
        if fused_qkv:                                     # self-attn: q_in is kv_in
            qkv = jnp.dot(q_in, qkv_w, preferred_element_type=jnp.float32) + qkv_b
            q, k, v = qkv[:, :D], qkv[:, D:2 * D], qkv[:, 2 * D:]
        else:                                             # cross-attn against memory
            q = jnp.dot(q_in, qkv_w[:, :D], preferred_element_type=jnp.float32) + qkv_b[:, :D]
            kv = jnp.dot(kv_in, qkv_w[:, D:], preferred_element_type=jnp.float32) + qkv_b[:, D:]
            k, v = kv[:, :D], kv[:, D:]
        ctx_heads = []
        for h in range(nhead):                            # static unroll: per-head tiny matmuls
            sl = slice(h * Dh, (h + 1) * Dh)
            s = jnp.dot(q[:, sl], k[:, sl].T,
                        preferred_element_type=jnp.float32) * scale + mask
            s = s - jnp.max(s, axis=-1, keepdims=True)
            p = jnp.exp(s)
            p = p * pl.reciprocal(jnp.sum(p, axis=-1, keepdims=True), approx=True)
            ctx_heads.append(jnp.dot(p, v[:, sl], preferred_element_type=jnp.float32))
        ctx = jnp.concatenate(ctx_heads, axis=-1)         # (M, D) merge heads along lanes
        return jnp.dot(ctx, out_w, preferred_element_type=jnp.float32) + out_b

    for l in range(num_layers):                           # static unroll over layers
        # self-attention block (post-norm)
        sa = mha(x, x, sa_qkv_w_ref[l], sa_qkv_b_ref[l],
                 sa_out_w_ref[l], sa_out_b_ref[l], self_mask, fused_qkv=True)
        x = layer_norm(x + sa, ln1_w_ref[l], ln1_b_ref[l])
        # cross-attention block against memory
        ca = mha(x, mem, ca_qkv_w_ref[l], ca_qkv_b_ref[l],
                 ca_out_w_ref[l], ca_out_b_ref[l], cross_mask, fused_qkv=False)
        x = layer_norm(x + ca, ln2_w_ref[l], ln2_b_ref[l])
        # feed-forward block (relu)
        h1 = jnp.maximum(
            jnp.dot(x, ff1_w_ref[l], preferred_element_type=jnp.float32) + ff1_b_ref[l], 0.0)
        ff = jnp.dot(h1, ff2_w_ref[l], preferred_element_type=jnp.float32) + ff2_b_ref[l]
        x = layer_norm(x + ff, ln3_w_ref[l], ln3_b_ref[l])

    # lm_head (weight tied to wte, no bias) on the last position of every sequence.
    num_batches = M // seq_len
    last_rows = [x[b * seq_len + seq_len - 1: b * seq_len + seq_len, :]
                 for b in range(num_batches)]
    x_last = jnp.concatenate(last_rows, axis=0)           # (B, D)
    logits_ref[...] = jnp.dot(x_last, wte_t_ref[...],
                              preferred_element_type=jnp.float32)


# ----------------------------- forward wrapper -----------------------------
@jax.jit
def chess_transformer_forward(packed, idx):
    """Inference path (targets=None): returns logits of shape (B, 1, VOCAB)."""
    B, T = idx.shape
    D = packed["wte"].shape[1]
    M = B * T

    # --- tiny XLA glue: embeddings + additive masks ---
    tok_emb = jnp.take(packed["wte"], idx, axis=0)              # (B, T, D)
    pos_emb = packed["wpe"][:T][None, :, :]                     # (1, T, D)
    x0 = (tok_emb + pos_emb).astype(jnp.float32).reshape(M, D)  # dropout = identity (eval)

    rows = jnp.arange(M, dtype=jnp.int32)
    batch_of = rows // T
    pos_of = rows % T
    same_batch = batch_of[:, None] == batch_of[None, :]
    causal_ok = pos_of[None, :] <= pos_of[:, None]
    key_ok = (idx.reshape(M) != PAD_ID)[None, :]
    self_mask = jnp.where(same_batch & causal_ok & key_ok, 0.0, NEG_INF).astype(jnp.float32)
    cross_mask = jnp.where(same_batch & key_ok, 0.0, NEG_INF).astype(jnp.float32)

    kern = functools.partial(_fused_decoder_kernel, num_layers=NUM_LAYERS,
                             nhead=NHEAD, seq_len=T, eps=LN_EPS)
    # Single fused pallas_call, no grid: every operand is a full-array VMEM block.
    logits = pl.pallas_call(
        kern,
        out_shape=jax.ShapeDtypeStruct((B, VOCAB), jnp.float32),
    )(x0, self_mask, cross_mask, packed["wte_t"],
      packed["sa_qkv_w"], packed["sa_qkv_b"], packed["sa_out_w"], packed["sa_out_b"],
      packed["ca_qkv_w"], packed["ca_qkv_b"], packed["ca_out_w"], packed["ca_out_b"],
      packed["ff1_w"], packed["ff1_b"], packed["ff2_w"], packed["ff2_b"],
      packed["ln1_w"], packed["ln1_b"], packed["ln2_w"], packed["ln2_b"],
      packed["ln3_w"], packed["ln3_b"])
    return logits.reshape(B, 1, VOCAB)


# ----------------------------- parameter init & packing -----------------------------
def init_params(key):
    def nrm(k, shape):
        return 0.02 * jax.random.normal(k, shape, jnp.float32)

    keys = iter(jax.random.split(key, 64))
    wte = nrm(next(keys), (VOCAB, D_MODEL))
    wte = wte.at[PAD_ID].set(0.0)                            # padding_idx row zeroed
    wpe = nrm(next(keys), (MAX_SEQ, D_MODEL))

    layers = []
    for _ in range(NUM_LAYERS):
        layers.append(dict(
            sa_in_w=nrm(next(keys), (3 * D_MODEL, D_MODEL)),
            sa_in_b=jnp.zeros((3 * D_MODEL,), jnp.float32),
            sa_out_w=nrm(next(keys), (D_MODEL, D_MODEL)),
            sa_out_b=jnp.zeros((D_MODEL,), jnp.float32),
            ca_in_w=nrm(next(keys), (3 * D_MODEL, D_MODEL)),
            ca_in_b=jnp.zeros((3 * D_MODEL,), jnp.float32),
            ca_out_w=nrm(next(keys), (D_MODEL, D_MODEL)),
            ca_out_b=jnp.zeros((D_MODEL,), jnp.float32),
            ff1_w=nrm(next(keys), (DIM_FF, D_MODEL)),
            ff1_b=jnp.zeros((DIM_FF,), jnp.float32),
            ff2_w=nrm(next(keys), (D_MODEL, DIM_FF)),
            ff2_b=jnp.zeros((D_MODEL,), jnp.float32),
            ln1_w=jnp.ones((D_MODEL,), jnp.float32), ln1_b=jnp.zeros((D_MODEL,), jnp.float32),
            ln2_w=jnp.ones((D_MODEL,), jnp.float32), ln2_b=jnp.zeros((D_MODEL,), jnp.float32),
            ln3_w=jnp.ones((D_MODEL,), jnp.float32), ln3_b=jnp.zeros((D_MODEL,), jnp.float32),
        ))
    return dict(wte=wte, wpe=wpe, layers=layers)


def pack_params(params):
    """Pre-pack weights once: transpose torch-style (N,K)->(K,N), stack per layer."""
    layers = params["layers"]

    def stack_t(name):   # torch (N, K) -> (K, N), stacked over layers -> (L, K, N)
        return jnp.stack([lp[name].T for lp in layers], axis=0)

    def stack_row(name):  # (N,) -> (1, N), stacked over layers -> (L, 1, N)
        return jnp.stack([lp[name].reshape(1, -1) for lp in layers], axis=0)

    return dict(
        wte=params["wte"], wpe=params["wpe"],
        wte_t=params["wte"].T,                                   # (D, VOCAB) tied lm_head
        sa_qkv_w=stack_t("sa_in_w"), sa_qkv_b=stack_row("sa_in_b"),   # fused (D, 3D)
        sa_out_w=stack_t("sa_out_w"), sa_out_b=stack_row("sa_out_b"),
        ca_qkv_w=stack_t("ca_in_w"), ca_qkv_b=stack_row("ca_in_b"),
        ca_out_w=stack_t("ca_out_w"), ca_out_b=stack_row("ca_out_b"),
        ff1_w=stack_t("ff1_w"), ff1_b=stack_row("ff1_b"),
        ff2_w=stack_t("ff2_w"), ff2_b=stack_row("ff2_b"),
        ln1_w=stack_row("ln1_w"), ln1_b=stack_row("ln1_b"),
        ln2_w=stack_row("ln2_w"), ln2_b=stack_row("ln2_b"),
        ln3_w=stack_row("ln3_w"), ln3_b=stack_row("ln3_b"),
    )


# ----------------------------- main -----------------------------
if __name__ == "__main__":
    key = jax.random.PRNGKey(0)
    pkey, ikey = jax.random.split(key)
    params = init_params(pkey)
    packed = pack_params(params)

    B, T = 2, 8
    # tokens in [1, VOCAB) so no position is the pad token (avoids degenerate fully-masked rows)
    idx = jax.random.randint(ikey, (B, T), 1, VOCAB, dtype=jnp.int32)

    logits = chess_transformer_forward(packed, idx)
    logits = jax.block_until_ready(logits)
    assert logits.shape == (B, 1, VOCAB), logits.shape
    assert bool(jnp.all(jnp.isfinite(logits)))
    # TODO(synk): dropout is implemented as identity (eval semantics); training-mode dropout not modeled.
    print("KERNEL_OK")
</pallas_src>

<mosaic_0001>
module attributes {stable_mosaic.version = 11 : i64} {
  func.func @_fused_decoder_kernel(%arg0: memref<16x32xf32, #tpu.memory_space<vmem>>, %arg1: memref<16x16xf32, #tpu.memory_space<vmem>>, %arg2: memref<16x16xf32, #tpu.memory_space<vmem>>, %arg3: memref<32x64xf32, #tpu.memory_space<vmem>>, %arg4: memref<2x32x96xf32, #tpu.memory_space<vmem>>, %arg5: memref<2x1x96xf32, #tpu.memory_space<vmem>>, %arg6: memref<2x32x32xf32, #tpu.memory_space<vmem>>, %arg7: memref<2x1x32xf32, #tpu.memory_space<vmem>>, %arg8: memref<2x32x96xf32, #tpu.memory_space<vmem>>, %arg9: memref<2x1x96xf32, #tpu.memory_space<vmem>>, %arg10: memref<2x32x32xf32, #tpu.memory_space<vmem>>, %arg11: memref<2x1x32xf32, #tpu.memory_space<vmem>>, %arg12: memref<2x32x64xf32, #tpu.memory_space<vmem>>, %arg13: memref<2x1x64xf32, #tpu.memory_space<vmem>>, %arg14: memref<2x64x32xf32, #tpu.memory_space<vmem>>, %arg15: memref<2x1x32xf32, #tpu.memory_space<vmem>>, %arg16: memref<2x1x32xf32, #tpu.memory_space<vmem>>, %arg17: memref<2x1x32xf32, #tpu.memory_space<vmem>>, %arg18: memref<2x1x32xf32, #tpu.memory_space<vmem>>, %arg19: memref<2x1x32xf32, #tpu.memory_space<vmem>>, %arg20: memref<2x1x32xf32, #tpu.memory_space<vmem>>, %arg21: memref<2x1x32xf32, #tpu.memory_space<vmem>>, %arg22: memref<2x64xf32, #tpu.memory_space<vmem>>) attributes {dimension_semantics = [], scalar_prefetch = 0 : i64, scratch_operands = 0 : i64, tpu.core_type = #tpu.core_type<tc>} {
    %c0 = arith.constant 0 : index
    %c0_0 = arith.constant 0 : index
    %0 = vector.load %arg0[%c0, %c0_0] : memref<16x32xf32, #tpu.memory_space<vmem>>, vector<16x32xf32>
    %c0_1 = arith.constant 0 : index
    %c0_2 = arith.constant 0 : index
    %1 = vector.load %arg1[%c0_1, %c0_2] : memref<16x16xf32, #tpu.memory_space<vmem>>, vector<16x16xf32>
    %c0_3 = arith.constant 0 : index
    %c0_4 = arith.constant 0 : index
    %2 = vector.load %arg2[%c0_3, %c0_4] : memref<16x16xf32, #tpu.memory_space<vmem>>, vector<16x16xf32>
    %c0_5 = arith.constant 0 : index
    %c0_6 = arith.constant 0 : index
    %c0_7 = arith.constant 0 : index
    %3 = vector.load %arg4[%c0_5, %c0_6, %c0_7] : memref<2x32x96xf32, #tpu.memory_space<vmem>>, vector<1x32x96xf32>
    %4 = vector.shape_cast %3 : vector<1x32x96xf32> to vector<32x96xf32>
    %c0_8 = arith.constant 0 : index
    %c0_9 = arith.constant 0 : index
    %c0_10 = arith.constant 0 : index
    %5 = vector.load %arg5[%c0_8, %c0_9, %c0_10] : memref<2x1x96xf32, #tpu.memory_space<vmem>>, vector<1x1x96xf32>
    %6 = vector.shape_cast %5 : vector<1x1x96xf32> to vector<1x96xf32>
    %c0_11 = arith.constant 0 : index
    %c0_12 = arith.constant 0 : index
    %c0_13 = arith.constant 0 : index
    %7 = vector.load %arg6[%c0_11, %c0_12, %c0_13] : memref<2x32x32xf32, #tpu.memory_space<vmem>>, vector<1x32x32xf32>
    %8 = vector.shape_cast %7 : vector<1x32x32xf32> to vector<32x32xf32>
    %c0_14 = arith.constant 0 : index
    %c0_15 = arith.constant 0 : index
    %c0_16 = arith.constant 0 : index
    %9 = vector.load %arg7[%c0_14, %c0_15, %c0_16] : memref<2x1x32xf32, #tpu.memory_space<vmem>>, vector<1x1x32xf32>
    %10 = vector.shape_cast %9 : vector<1x1x32xf32> to vector<1x32xf32>
    %cst = arith.constant dense<0.000000e+00> : vector<16x96xf32>
    %11 = tpu.matmul %0, %4, %cst {dimension_numbers = #tpu.dot_dimension_numbers<[1], [0], [0], [1], [0, 0, 1, 1], [], []>} : vector<16x32xf32>, vector<32x96xf32>, vector<16x96xf32> -> vector<16x96xf32>
    %12 = vector.broadcast %6 : vector<1x96xf32> to vector<16x96xf32>
    %13 = arith.addf %11, %12 : vector<16x96xf32>
    %14 = vector.extract_strided_slice %13 {offsets = [0, 0], sizes = [16, 32], strides = [1, 1]} : vector<16x96xf32> to vector<16x32xf32>
    %15 = vector.extract_strided_slice %13 {offsets = [0, 32], sizes = [16, 32], strides = [1, 1]} : vector<16x96xf32> to vector<16x32xf32>
    %16 = vector.extract_strided_slice %13 {offsets = [0, 64], sizes = [16, 32], strides = [1, 1]} : vector<16x96xf32> to vector<16x32xf32>
    %17 = vector.extract_strided_slice %14 {offsets = [0, 0], sizes = [16, 8], strides = [1, 1]} : vector<16x32xf32> to vector<16x8xf32>
    %18 = vector.extract_strided_slice %15 {offsets = [0, 0], sizes = [16, 8], strides = [1, 1]} : vector<16x32xf32> to vector<16x8xf32>
    %19 = tpu.transpose %18, [1, 0] : vector<16x8xf32> -> vector<8x16xf32>
    %cst_17 = arith.constant dense<0.000000e+00> : vector<16x16xf32>
    %20 = tpu.matmul %17, %19, %cst_17 {dimension_numbers = #tpu.dot_dimension_numbers<[1], [0], [0], [1], [0, 0, 1, 1], [], []>} : vector<16x8xf32>, vector<8x16xf32>, vector<16x16xf32> -> vector<16x16xf32>
    %cst_18 = arith.constant 0.353553385 : f32
    %21 = vector.broadcast %cst_18 : f32 to vector<16x16xf32>
    %22 = arith.mulf %20, %21 : vector<16x16xf32>
    %23 = arith.addf %22, %1 : vector<16x16xf32>
    %cst_19 = arith.constant dense<0xFF800000> : vector<16xf32>
    %24 = vector.multi_reduction <maximumf>, %23, %cst_19 [1] : vector<16x16xf32> to vector<16xf32>
    %25 = vector.shape_cast %24 : vector<16xf32> to vector<16x1xf32>
    %26 = vector.broadcast %25 : vector<16x1xf32> to vector<16x16xf32>
    %27 = arith.subf %23, %26 : vector<16x16xf32>
    %28 = math.exp %27 : vector<16x16xf32>
    %cst_20 = arith.constant dense<0.000000e+00> : vector<16xf32>
    %29 = vector.multi_reduction <add>, %28, %cst_20 [1] : vector<16x16xf32> to vector<16xf32>
    %30 = vector.shape_cast %29 : vector<16xf32> to vector<16x1xf32>
    %31 = tpu.reciprocal %30 {approx = true} : vector<16x1xf32> -> vector<16x1xf32>
    %32 = vector.broadcast %31 : vector<16x1xf32> to vector<16x16xf32>
    %33 = arith.mulf %28, %32 : vector<16x16xf32>
    %34 = vector.extract_strided_slice %16 {offsets = [0, 0], sizes = [16, 8], strides = [1, 1]} : vector<16x32xf32> to vector<16x8xf32>
    %cst_21 = arith.constant dense<0.000000e+00> : vector<16x8xf32>
    %35 = tpu.matmul %33, %34, %cst_21 {dimension_numbers = #tpu.dot_dimension_numbers<[1], [0], [0], [1], [0, 0, 1, 1], [], []>} : vector<16x16xf32>, vector<16x8xf32>, vector<16x8xf32> -> vector<16x8xf32>
    %36 = vector.extract_strided_slice %14 {offsets = [0, 8], sizes = [16, 8], strides = [1, 1]} : vector<16x32xf32> to vector<16x8xf32>
    %37 = vector.extract_strided_slice %15 {offsets = [0, 8], sizes = [16, 8], strides = [1, 1]} : vector<16x32xf32> to vector<16x8xf32>
    %38 = tpu.transpose %37, [1, 0] : vector<16x8xf32> -> vector<8x16xf32>
    %cst_22 = arith.constant dense<0.000000e+00> : vector<16x16xf32>
    %39 = tpu.matmul %36, %38, %cst_22 {dimension_numbers = #tpu.dot_dimension_numbers<[1], [0], [0], [1], [0, 0, 1, 1], [], []>} : vector<16x8xf32>, vector<8x16xf32>, vector<16x16xf32> -> vector<16x16xf32>
    %cst_23 = arith.constant 0.353553385 : f32
    %40 = vector.broadcast %cst_23 : f32 to vector<16x16xf32>
    %41 = arith.mulf %39, %40 : vector<16x16xf32>
    %42 = arith.addf %41, %1 : vector<16x16xf32>
    %cst_24 = arith.constant dense<0xFF800000> : vector<16xf32>
    %43 = vector.multi_reduction <maximumf>, %42, %cst_24 [1] : vector<16x16xf32> to vector<16xf32>
    %44 = vector.shape_cast %43 : vector<16xf32> to vector<16x1xf32>
    %45 = vector.broadcast %44 : vector<16x1xf32> to vector<16x16xf32>
    %46 = arith.subf %42, %45 : vector<16x16xf32>
    %47 = math.exp %46 : vector<16x16xf32>
    %cst_25 = arith.constant dense<0.000000e+00> : vector<16xf32>
    %48 = vector.multi_reduction <add>, %47, %cst_25 [1] : vector<16x16xf32> to vector<16xf32>
    %49 = vector.shape_cast %48 : vector<16xf32> to vector<16x1xf32>
    %50 = tpu.reciprocal %49 {approx = true} : vector<16x1xf32> -> vector<16x1xf32>
    %51 = vector.broadcast %50 : vector<16x1xf32> to vector<16x16xf32>
    %52 = arith.mulf %47, %51 : vector<16x16xf32>
    %53 = vector.extract_strided_slice %16 {offsets = [0, 8], sizes = [16, 8], strides = [1, 1]} : vector<16x32xf32> to vector<16x8xf32>
    %cst_26 = arith.constant dense<0.000000e+00> : vector<16x8xf32>
    %54 = tpu.matmul %52, %53, %cst_26 {dimension_numbers = #tpu.dot_dimension_numbers<[1], [0], [0], [1], [0, 0, 1, 1], [], []>} : vector<16x16xf32>, vector<16x8xf32>, vector<16x8xf32> -> vector<16x8xf32>
    %55 = vector.extract_strided_slice %14 {offsets = [0, 16], sizes = [16, 8], strides = [1, 1]} : vector<16x32xf32> to vector<16x8xf32>
    %56 = vector.extract_strided_slice %15 {offsets = [0, 16], sizes = [16, 8], strides = [1, 1]} : vector<16x32xf32> to vector<16x8xf32>
    %57 = tpu.transpose %56, [1, 0] : vector<16x8xf32> -> vector<8x16xf32>
    %cst_27 = arith.constant dense<0.000000e+00> : vector<16x16xf32>
    %58 = tpu.matmul %55, %57, %cst_27 {dimension_numbers = #tpu.dot_dimension_numbers<[1], [0], [0], [1], [0, 0, 1, 1], [], []>} : vector<16x8xf32>, vector<8x16xf32>, vector<16x16xf32> -> vector<16x16xf32>
    %cst_28 = arith.constant 0.353553385 : f32
    %59 = vector.broadcast %cst_28 : f32 to vector<16x16xf32>
    %60 = arith.mulf %58, %59 : vector<16x16xf32>
    %61 = arith.addf %60, %1 : vector<16x16xf32>
    %cst_29 = arith.constant dense<0xFF800000> : vector<16xf32>
    %62 = vector.multi_reduction <maximumf>, %61, %cst_29 [1] : vector<16x16xf32> to vector<16xf32>
    %63 = vector.shape_cast %62 : vector<16xf32> to vector<16x1xf32>
    %64 = vector.broadcast %63 : vector<16x1xf32> to vector<16x16xf32>
    %65 = arith.subf %61, %64 : vector<16x16xf32>
    %66 = math.exp %65 : vector<16x16xf32>
    %cst_30 = arith.constant dense<0.000000e+00> : vector<16xf32>
    %67 = vector.multi_reduction <add>, %66, %cst_30 [1] : vector<16x16xf32> to vector<16xf32>
    %68 = vector.shape_cast %67 : vector<16xf32> to vector<16x1xf32>
    %69 = tpu.reciprocal %68 {approx = true} : vector<16x1xf32> -> vector<16x1xf32>
    %70 = vector.broadcast %69 : vector<16x1xf32> to vector<16x16xf32>
    %71 = arith.mulf %66, %70 : vector<16x16xf32>
    %72 = vector.extract_strided_slice %16 {offsets = [0, 16], sizes = [16, 8], strides = [1, 1]} : vector<16x32xf32> to vector<16x8xf32>
    %cst_31 = arith.constant dense<0.000000e+00> : vector<16x8xf32>
    %73 = tpu.matmul %71, %72, %cst_31 {dimension_numbers = #tpu.dot_dimension_numbers<[1], [0], [0], [1], [0, 0, 1, 1], [], []>} : vector<16x16xf32>, vector<16x8xf32>, vector<16x8xf32> -> vector<16x8xf32>
    %74 = vector.extract_strided_slice %14 {offsets = [0, 24], sizes = [16, 8], strides = [1, 1]} : vector<16x32xf32> to vector<16x8xf32>
    %75 = vector.extract_strided_slice %15 {offsets = [0, 24], sizes = [16, 8], strides = [1, 1]} : vector<16x32xf32> to vector<16x8xf32>
    %76 = tpu.transpose %75, [1, 0] : vector<16x8xf32> -> vector<8x16xf32>
    %cst_32 = arith.constant dense<0.000000e+00> : vector<16x16xf32>
    %77 = tpu.matmul %74, %76, %cst_32 {dimension_numbers = #tpu.dot_dimension_numbers<[1], [0], [0], [1], [0, 0, 1, 1], [], []>} : vector<16x8xf32>, vector<8x16xf32>, vector<16x16xf32> -> vector<16x16xf32>
    %cst_33 = arith.constant 0.353553385 : f32
    %78 = vector.broadcast %cst_33 : f32 to vector<16x16xf32>
    %79 = arith.mulf %77, %78 : vector<16x16xf32>
    %80 = arith.addf %79, %1 : vector<16x16xf32>
    %cst_34 = arith.constant dense<0xFF800000> : vector<16xf32>
    %81 = vector.multi_reduction <maximumf>, %80, %cst_34 [1] : vector<16x16xf32> to vector<16xf32>
    %82 = vector.shape_cast %81 : vector<16xf32> to vector<16x1xf32>
    %83 = vector.broadcast %82 : vector<16x1xf32> to vector<16x16xf32>
    %84 = arith.subf %80, %83 : vector<16x16xf32>
    %85 = math.exp %84 : vector<16x16xf32>
    %cst_35 = arith.constant dense<0.000000e+00> : vector<16xf32>
    %86 = vector.multi_reduction <add>, %85, %cst_35 [1] : vector<16x16xf32> to vector<16xf32>
    %87 = vector.shape_cast %86 : vector<16xf32> to vector<16x1xf32>
    %88 = tpu.reciprocal %87 {approx = true} : vector<16x1xf32> -> vector<16x1xf32>
    %89 = vector.broadcast %88 : vector<16x1xf32> to vector<16x16xf32>
    %90 = arith.mulf %85, %89 : vector<16x16xf32>
    %91 = vector.extract_strided_slice %16 {offsets = [0, 24], sizes = [16, 8], strides = [1, 1]} : vector<16x32xf32> to vector<16x8xf32>
    %cst_36 = arith.constant dense<0.000000e+00> : vector<16x8xf32>
    %92 = tpu.matmul %90, %91, %cst_36 {dimension_numbers = #tpu.dot_dimension_numbers<[1], [0], [0], [1], [0, 0, 1, 1], [], []>} : vector<16x16xf32>, vector<16x8xf32>, vector<16x8xf32> -> vector<16x8xf32>
    %93 = tpu.concatenate %35, %54, %73, %92 in 1 : vector<16x8xf32>, vector<16x8xf32>, vector<16x8xf32>, vector<16x8xf32> -> vector<16x32xf32>
    %cst_37 = arith.constant dense<0.000000e+00> : vector<16x32xf32>
    %94 = tpu.matmul %93, %8, %cst_37 {dimension_numbers = #tpu.dot_dimension_numbers<[1], [0], [0], [1], [0, 0, 1, 1], [], []>} : vector<16x32xf32>, vector<32x32xf32>, vector<16x32xf32> -> vector<16x32xf32>
    %95 = vector.broadcast %10 : vector<1x32xf32> to vector<16x32xf32>
    %96 = arith.addf %94, %95 : vector<16x32xf32>
    %97 = arith.addf %0, %96 : vector<16x32xf32>
    %c0_38 = arith.constant 0 : index
    %c0_39 = arith.constant 0 : index
    %c0_40 = arith.constant 0 : index
    %98 = vector.load %arg16[%c0_38, %c0_39, %c0_40] : memref<2x1x32xf32, #tpu.memory_space<vmem>>, vector<1x1x32xf32>
    %99 = vector.shape_cast %98 : vector<1x1x32xf32> to vector<1x32xf32>
    %c0_41 = arith.constant 0 : index
    %c0_42 = arith.constant 0 : index
    %c0_43 = arith.constant 0 : index
    %100 = vector.load %arg17[%c0_41, %c0_42, %c0_43] : memref<2x1x32xf32, #tpu.memory_space<vmem>>, vector<1x1x32xf32>
    %101 = vector.shape_cast %100 : vector<1x1x32xf32> to vector<1x32xf32>
    %cst_44 = arith.constant dense<0.000000e+00> : vector<16xf32>
    %102 = vector.multi_reduction <add>, %97, %cst_44 [1] : vector<16x32xf32> to vector<16xf32>
    %103 = vector.shape_cast %102 : vector<16xf32> to vector<16x1xf32>
    %cst_45 = arith.constant 3.200000e+01 : f32
    %104 = vector.broadcast %cst_45 : f32 to vector<16x1xf32>
    %105 = arith.divf %103, %104 : vector<16x1xf32>
    %106 = vector.broadcast %105 : vector<16x1xf32> to vector<16x32xf32>
    %107 = arith.subf %97, %106 : vector<16x32xf32>
    %108 = arith.mulf %107, %107 : vector<16x32xf32>
    %cst_46 = arith.constant dense<0.000000e+00> : vector<16xf32>
    %109 = vector.multi_reduction <add>, %108, %cst_46 [1] : vector<16x32xf32> to vector<16xf32>
    %110 = vector.shape_cast %109 : vector<16xf32> to vector<16x1xf32>
    %cst_47 = arith.constant 3.200000e+01 : f32
    %111 = vector.broadcast %cst_47 : f32 to vector<16x1xf32>
    %112 = arith.divf %110, %111 : vector<16x1xf32>
    %113 = vector.broadcast %105 : vector<16x1xf32> to vector<16x32xf32>
    %114 = arith.subf %97, %113 : vector<16x32xf32>
    %cst_48 = arith.constant 9.99999974E-6 : f32
    %115 = vector.broadcast %cst_48 : f32 to vector<16x1xf32>
    %116 = arith.addf %112, %115 : vector<16x1xf32>
    %117 = math.rsqrt %116 : vector<16x1xf32>
    %118 = vector.broadcast %117 : vector<16x1xf32> to vector<16x32xf32>
    %119 = arith.mulf %114, %118 : vector<16x32xf32>
    %120 = vector.broadcast %99 : vector<1x32xf32> to vector<16x32xf32>
    %121 = arith.mulf %119, %120 : vector<16x32xf32>
    %122 = vector.broadcast %101 : vector<1x32xf32> to vector<16x32xf32>
    %123 = arith.addf %121, %122 : vector<16x32xf32>
    %c0_49 = arith.constant 0 : index
    %c0_50 = arith.constant 0 : index
    %c0_51 = arith.constant 0 : index
    %124 = vector.load %arg8[%c0_49, %c0_50, %c0_51] : memref<2x32x96xf32, #tpu.memory_space<vmem>>, vector<1x32x96xf32>
    %125 = vector.shape_cast %124 : vector<1x32x96xf32> to vector<32x96xf32>
    %c0_52 = arith.constant 0 : index
    %c0_53 = arith.constant 0 : index
    %c0_54 = arith.constant 0 : index
    %126 = vector.load %arg9[%c0_52, %c0_53, %c0_54] : memref<2x1x96xf32, #tpu.memory_space<vmem>>, vector<1x1x96xf32>
    %127 = vector.shape_cast %126 : vector<1x1x96xf32> to vector<1x96xf32>
    %c0_55 = arith.constant 0 : index
    %c0_56 = arith.constant 0 : index
    %c0_57 = arith.constant 0 : index
    %128 = vector.load %arg10[%c0_55, %c0_56, %c0_57] : memref<2x32x32xf32, #tpu.memory_space<vmem>>, vector<1x32x32xf32>
    %129 = vector.shape_cast %128 : vector<1x32x32xf32> to vector<32x32xf32>
    %c0_58 = arith.constant 0 : index
    %c0_59 = arith.constant 0 : index
    %c0_60 = arith.constant 0 : index
    %130 = vector.load %arg11[%c0_58, %c0_59, %c0_60] : memref<2x1x32xf32, #tpu.memory_space<vmem>>, vector<1x1x32xf32>
    %131 = vector.shape_cast %130 : vector<1x1x32xf32> to vector<1x32xf32>
    %132 = vector.extract_strided_slice %125 {offsets = [0, 0], sizes = [32, 32], strides = [1, 1]} : vector<32x96xf32> to vector<32x32xf32>
    %cst_61 = arith.constant dense<0.000000e+00> : vector<16x32xf32>
    %133 = tpu.matmul %123, %132, %cst_61 {dimension_numbers = #tpu.dot_dimension_numbers<[1], [0], [0], [1], [0, 0, 1, 1], [], []>} : vector<16x32xf32>, vector<32x32xf32>, vector<16x32xf32> -> vector<16x32xf32>
    %134 = vector.extract_strided_slice %127 {offsets = [0, 0], sizes = [1, 32], strides = [1, 1]} : vector<1x96xf32> to vector<1x32xf32>
    %135 = vector.broadcast %134 : vector<1x32xf32> to vector<16x32xf32>
    %136 = arith.addf %133, %135 : vector<16x32xf32>
    %137 = vector.extract_strided_slice %125 {offsets = [0, 32], sizes = [32, 64], strides = [1, 1]} : vector<32x96xf32> to vector<32x64xf32>
    %cst_62 = arith.constant dense<0.000000e+00> : vector<16x64xf32>
    %138 = tpu.matmul %0, %137, %cst_62 {dimension_numbers = #tpu.dot_dimension_numbers<[1], [0], [0], [1], [0, 0, 1, 1], [], []>} : vector<16x32xf32>, vector<32x64xf32>, vector<16x64xf32> -> vector<16x64xf32>
    %139 = vector.extract_strided_slice %127 {offsets = [0, 32], sizes = [1, 64], strides = [1, 1]} : vector<1x96xf32> to vector<1x64xf32>
    %140 = vector.broadcast %139 : vector<1x64xf32> to vector<16x64xf32>
    %141 = arith.addf %138, %140 : vector<16x64xf32>
    %142 = vector.extract_strided_slice %141 {offsets = [0, 0], sizes = [16, 32], strides = [1, 1]} : vector<16x64xf32> to vector<16x32xf32>
    %143 = vector.extract_strided_slice %141 {offsets = [0, 32], sizes = [16, 32], strides = [1, 1]} : vector<16x64xf32> to vector<16x32xf32>
    %144 = vector.extract_strided_slice %136 {offsets = [0, 0], sizes = [16, 8], strides = [1, 1]} : vector<16x32xf32> to vector<16x8xf32>
    %145 = vector.extract_strided_slice %142 {offsets = [0, 0], sizes = [16, 8], strides = [1, 1]} : vector<16x32xf32> to vector<16x8xf32>
    %146 = tpu.transpose %145, [1, 0] : vector<16x8xf32> -> vector<8x16xf32>
    %cst_63 = arith.constant dense<0.000000e+00> : vector<16x16xf32>
    %147 = tpu.matmul %144, %146, %cst_63 {dimension_numbers = #tpu.dot_dimension_numbers<[1], [0], [0], [1], [0, 0, 1, 1], [], []>} : vector<16x8xf32>, vector<8x16xf32>, vector<16x16xf32> -> vector<16x16xf32>
    %cst_64 = arith.constant 0.353553385 : f32
    %148 = vector.broadcast %cst_64 : f32 to vector<16x16xf32>
    %149 = arith.mulf %147, %148 : vector<16x16xf32>
    %150 = arith.addf %149, %2 : vector<16x16xf32>
    %cst_65 = arith.constant dense<0xFF800000> : vector<16xf32>
    %151 = vector.multi_reduction <maximumf>, %150, %cst_65 [1] : vector<16x16xf32> to vector<16xf32>
    %152 = vector.shape_cast %151 : vector<16xf32> to vector<16x1xf32>
    %153 = vector.broadcast %152 : vector<16x1xf32> to vector<16x16xf32>
    %154 = arith.subf %150, %153 : vector<16x16xf32>
    %155 = math.exp %154 : vector<16x16xf32>
    %cst_66 = arith.constant dense<0.000000e+00> : vector<16xf32>
    %156 = vector.multi_reduction <add>, %155, %cst_66 [1] : vector<16x16xf32> to vector<16xf32>
    %157 = vector.shape_cast %156 : vector<16xf32> to vector<16x1xf32>
    %158 = tpu.reciprocal %157 {approx = true} : vector<16x1xf32> -> vector<16x1xf32>
    %159 = vector.broadcast %158 : vector<16x1xf32> to vector<16x16xf32>
    %160 = arith.mulf %155, %159 : vector<16x16xf32>
    %161 = vector.extract_strided_slice %143 {offsets = [0, 0], sizes = [16, 8], strides = [1, 1]} : vector<16x32xf32> to vector<16x8xf32>
    %cst_67 = arith.constant dense<0.000000e+00> : vector<16x8xf32>
    %162 = tpu.matmul %160, %161, %cst_67 {dimension_numbers = #tpu.dot_dimension_numbers<[1], [0], [0], [1], [0, 0, 1, 1], [], []>} : vector<16x16xf32>, vector<16x8xf32>, vector<16x8xf32> -> vector<16x8xf32>
    %163 = vector.extract_strided_slice %136 {offsets = [0, 8], sizes = [16, 8], strides = [1, 1]} : vector<16x32xf32> to vector<16x8xf32>
    %164 = vector.extract_strided_slice %142 {offsets = [0, 8], sizes = [16, 8], strides = [1, 1]} : vector<16x32xf32> to vector<16x8xf32>
    %165 = tpu.transpose %164, [1, 0] : vector<16x8xf32> -> vector<8x16xf32>
    %cst_68 = arith.constant dense<0.000000e+00> : vector<16x16xf32>
    %166 = tpu.matmul %163, %165, %cst_68 {dimension_numbers = #tpu.dot_dimension_numbers<[1], [0], [0], [1], [0, 0, 1, 1], [], []>} : vector<16x8xf32>, vector<8x16xf32>, vector<16x16xf32> -> vector<16x16xf32>
    %cst_69 = arith.constant 0.353553385 : f32
    %167 = vector.broadcast %cst_69 : f32 to vector<16x16xf32>
    %168 = arith.mulf %166, %167 : vector<16x16xf32>
    %169 = arith.addf %168, %2 : vector<16x16xf32>
    %cst_70 = arith.constant dense<0xFF800000> : vector<16xf32>
    %170 = vector.multi_reduction <maximumf>, %169, %cst_70 [1] : vector<16x16xf32> to vector<16xf32>
    %171 = vector.shape_cast %170 : vector<16xf32> to vector<16x1xf32>
    %172 = vector.broadcast %171 : vector<16x1xf32> to vector<16x16xf32>
    %173 = arith.subf %169, %172 : vector<16x16xf32>
    %174 = math.exp %173 : vector<16x16xf32>
    %cst_71 = arith.constant dense<0.000000e+00> : vector<16xf32>
    %175 = vector.multi_reduction <add>, %174, %cst_71 [1] : vector<16x16xf32> to vector<16xf32>
    %176 = vector.shape_cast %175 : vector<16xf32> to vector<16x1xf32>
    %177 = tpu.reciprocal %176 {approx = true} : vector<16x1xf32> -> vector<16x1xf32>
    %178 = vector.broadcast %177 : vector<16x1xf32> to vector<16x16xf32>
    %179 = arith.mulf %174, %178 : vector<16x16xf32>
    %180 = vector.extract_strided_slice %143 {offsets = [0, 8], sizes = [16, 8], strides = [1, 1]} : vector<16x32xf32> to vector<16x8xf32>
    %cst_72 = arith.constant dense<0.000000e+00> : vector<16x8xf32>
    %181 = tpu.matmul %179, %180, %cst_72 {dimension_numbers = #tpu.dot_dimension_numbers<[1], [0], [0], [1], [0, 0, 1, 1], [], []>} : vector<16x16xf32>, vector<16x8xf32>, vector<16x8xf32> -> vector<16x8xf32>
    %182 = vector.extract_strided_slice %136 {offsets = [0, 16], sizes = [16, 8], strides = [1, 1]} : vector<16x32xf32> to vector<16x8xf32>
    %183 = vector.extract_strided_slice %142 {offsets = [0, 16], sizes = [16, 8], strides = [1, 1]} : vector<16x32xf32> to vector<16x8xf32>
    %184 = tpu.transpose %183, [1, 0] : vector<16x8xf32> -> vector<8x16xf32>
    %cst_73 = arith.constant dense<0.000000e+00> : vector<16x16xf32>
    %185 = tpu.matmul %182, %184, %cst_73 {dimension_numbers = #tpu.dot_dimension_numbers<[1], [0], [0], [1], [0, 0, 1, 1], [], []>} : vector<16x8xf32>, vector<8x16xf32>, vector<16x16xf32> -> vector<16x16xf32>
    %cst_74 = arith.constant 0.353553385 : f32
    %186 = vector.broadcast %cst_74 : f32 to vector<16x16xf32>
    %187 = arith.mulf %185, %186 : vector<16x16xf32>
    %188 = arith.addf %187, %2 : vector<16x16xf32>
    %cst_75 = arith.constant dense<0xFF800000> : vector<16xf32>
    %189 = vector.multi_reduction <maximumf>, %188, %cst_75 [1] : vector<16x16xf32> to vector<16xf32>
    %190 = vector.shape_cast %189 : vector<16xf32> to vector<16x1xf32>
    %191 = vector.broadcast %190 : vector<16x1xf32> to vector<16x16xf32>
    %192 = arith.subf %188, %191 : vector<16x16xf32>
    %193 = math.exp %192 : vector<16x16xf32>
    %cst_76 = arith.constant dense<0.000000e+00> : vector<16xf32>
    %194 = vector.multi_reduction <add>, %193, %cst_76 [1] : vector<16x16xf32> to vector<16xf32>
    %195 = vector.shape_cast %194 : vector<16xf32> to vector<16x1xf32>
    %196 = tpu.reciprocal %195 {approx = true} : vector<16x1xf32> -> vector<16x1xf32>
    %197 = vector.broadcast %196 : vector<16x1xf32> to vector<16x16xf32>
    %198 = arith.mulf %193, %197 : vector<16x16xf32>
    %199 = vector.extract_strided_slice %143 {offsets = [0, 16], sizes = [16, 8], strides = [1, 1]} : vector<16x32xf32> to vector<16x8xf32>
    %cst_77 = arith.constant dense<0.000000e+00> : vector<16x8xf32>
    %200 = tpu.matmul %198, %199, %cst_77 {dimension_numbers = #tpu.dot_dimension_numbers<[1], [0], [0], [1], [0, 0, 1, 1], [], []>} : vector<16x16xf32>, vector<16x8xf32>, vector<16x8xf32> -> vector<16x8xf32>
    %201 = vector.extract_strided_slice %136 {offsets = [0, 24], sizes = [16, 8], strides = [1, 1]} : vector<16x32xf32> to vector<16x8xf32>
    %202 = vector.extract_strided_slice %142 {offsets = [0, 24], sizes = [16, 8], strides = [1, 1]} : vector<16x32xf32> to vector<16x8xf32>
    %203 = tpu.transpose %202, [1, 0] : vector<16x8xf32> -> vector<8x16xf32>
    %cst_78 = arith.constant dense<0.000000e+00> : vector<16x16xf32>
    %204 = tpu.matmul %201, %203, %cst_78 {dimension_numbers = #tpu.dot_dimension_numbers<[1], [0], [0], [1], [0, 0, 1, 1], [], []>} : vector<16x8xf32>, vector<8x16xf32>, vector<16x16xf32> -> vector<16x16xf32>
    %cst_79 = arith.constant 0.353553385 : f32
    %205 = vector.broadcast %cst_79 : f32 to vector<16x16xf32>
    %206 = arith.mulf %204, %205 : vector<16x16xf32>
    %207 = arith.addf %206, %2 : vector<16x16xf32>
    %cst_80 = arith.constant dense<0xFF800000> : vector<16xf32>
    %208 = vector.multi_reduction <maximumf>, %207, %cst_80 [1] : vector<16x16xf32> to vector<16xf32>
    %209 = vector.shape_cast %208 : vector<16xf32> to vector<16x1xf32>
    %210 = vector.broadcast %209 : vector<16x1xf32> to vector<16x16xf32>
    %211 = arith.subf %207, %210 : vector<16x16xf32>
    %212 = math.exp %211 : vector<16x16xf32>
    %cst_81 = arith.constant dense<0.000000e+00> : vector<16xf32>
    %213 = vector.multi_reduction <add>, %212, %cst_81 [1] : vector<16x16xf32> to vector<16xf32>
    %214 = vector.shape_cast %213 : vector<16xf32> to vector<16x1xf32>
    %215 = tpu.reciprocal %214 {approx = true} : vector<16x1xf32> -> vector<16x1xf32>
    %216 = vector.broadcast %215 : vector<16x1xf32> to vector<16x16xf32>
    %217 = arith.mulf %212, %216 : vector<16x16xf32>
    %218 = vector.extract_strided_slice %143 {offsets = [0, 24], sizes = [16, 8], strides = [1, 1]} : vector<16x32xf32> to vector<16x8xf32>
    %cst_82 = arith.constant dense<0.000000e+00> : vector<16x8xf32>
    %219 = tpu.matmul %217, %218, %cst_82 {dimension_numbers = #tpu.dot_dimension_numbers<[1], [0], [0], [1], [0, 0, 1, 1], [], []>} : vector<16x16xf32>, vector<16x8xf32>, vector<16x8xf32> -> vector<16x8xf32>
    %220 = tpu.concatenate %162, %181, %200, %219 in 1 : vector<16x8xf32>, vector<16x8xf32>, vector<16x8xf32>, vector<16x8xf32> -> vector<16x32xf32>
    %cst_83 = arith.constant dense<0.000000e+00> : vector<16x32xf32>
    %221 = tpu.matmul %220, %129, %cst_83 {dimension_numbers = #tpu.dot_dimension_numbers<[1], [0], [0], [1], [0, 0, 1, 1], [], []>} : vector<16x32xf32>, vector<32x32xf32>, vector<16x32xf32> -> vector<16x32xf32>
    %222 = vector.broadcast %131 : vector<1x32xf32> to vector<16x32xf32>
    %223 = arith.addf %221, %222 : vector<16x32xf32>
    %224 = arith.addf %123, %223 : vector<16x32xf32>
    %c0_84 = arith.constant 0 : index
    %c0_85 = arith.constant 0 : index
    %c0_86 = arith.constant 0 : index
    %225 = vector.load %arg18[%c0_84, %c0_85, %c0_86] : memref<2x1x32xf32, #tpu.memory_space<vmem>>, vector<1x1x32xf32>
    %226 = vector.shape_cast %225 : vector<1x1x32xf32> to vector<1x32xf32>
    %c0_87 = arith.constant 0 : index
    %c0_88 = arith.constant 0 : index
    %c0_89 = arith.constant 0 : index
    %227 = vector.load %arg19[%c0_87, %c0_88, %c0_89] : memref<2x1x32xf32, #tpu.memory_space<vmem>>, vector<1x1x32xf32>
    %228 = vector.shape_cast %227 : vector<1x1x32xf32> to vector<1x32xf32>
    %cst_90 = arith.constant dense<0.000000e+00> : vector<16xf32>
    %229 = vector.multi_reduction <add>, %224, %cst_90 [1] : vector<16x32xf32> to vector<16xf32>
    %230 = vector.shape_cast %229 : vector<16xf32> to vector<16x1xf32>
    %cst_91 = arith.constant 3.200000e+01 : f32
    %231 = vector.broadcast %cst_91 : f32 to vector<16x1xf32>
    %232 = arith.divf %230, %231 : vector<16x1xf32>
    %233 = vector.broadcast %232 : vector<16x1xf32> to vector<16x32xf32>
    %234 = arith.subf %224, %233 : vector<16x32xf32>
    %235 = arith.mulf %234, %234 : vector<16x32xf32>
    %cst_92 = arith.constant dense<0.000000e+00> : vector<16xf32>
    %236 = vector.multi_reduction <add>, %235, %cst_92 [1] : vector<16x32xf32> to vector<16xf32>
    %237 = vector.shape_cast %236 : vector<16xf32> to vector<16x1xf32>
    %cst_93 = arith.constant 3.200000e+01 : f32
    %238 = vector.broadcast %cst_93 : f32 to vector<16x1xf32>
    %239 = arith.divf %237, %238 : vector<16x1xf32>
    %240 = vector.broadcast %232 : vector<16x1xf32> to vector<16x32xf32>
    %241 = arith.subf %224, %240 : vector<16x32xf32>
    %cst_94 = arith.constant 9.99999974E-6 : f32
    %242 = vector.broadcast %cst_94 : f32 to vector<16x1xf32>
    %243 = arith.addf %239, %242 : vector<16x1xf32>
    %244 = math.rsqrt %243 : vector<16x1xf32>
    %245 = vector.broadcast %244 : vector<16x1xf32> to vector<16x32xf32>
    %246 = arith.mulf %241, %245 : vector<16x32xf32>
    %247 = vector.broadcast %226 : vector<1x32xf32> to vector<16x32xf32>
    %248 = arith.mulf %246, %247 : vector<16x32xf32>
    %249 = vector.broadcast %228 : vector<1x32xf32> to vector<16x32xf32>
    %250 = arith.addf %248, %249 : vector<16x32xf32>
    %c0_95 = arith.constant 0 : index
    %c0_96 = arith.constant 0 : index
    %c0_97 = arith.constant 0 : index
    %251 = vector.load %arg12[%c0_95, %c0_96, %c0_97] : memref<2x32x64xf32, #tpu.memory_space<vmem>>, vector<1x32x64xf32>
    %252 = vector.shape_cast %251 : vector<1x32x64xf32> to vector<32x64xf32>
    %cst_98 = arith.constant dense<0.000000e+00> : vector<16x64xf32>
    %253 = tpu.matmul %250, %252, %cst_98 {dimension_numbers = #tpu.dot_dimension_numbers<[1], [0], [0], [1], [0, 0, 1, 1], [], []>} : vector<16x32xf32>, vector<32x64xf32>, vector<16x64xf32> -> vector<16x64xf32>
    %c0_99 = arith.constant 0 : index
    %c0_100 = arith.constant 0 : index
    %c0_101 = arith.constant 0 : index
    %254 = vector.load %arg13[%c0_99, %c0_100, %c0_101] : memref<2x1x64xf32, #tpu.memory_space<vmem>>, vector<1x1x64xf32>
    %255 = vector.shape_cast %254 : vector<1x1x64xf32> to vector<1x64xf32>
    %256 = vector.broadcast %255 : vector<1x64xf32> to vector<16x64xf32>
    %257 = arith.addf %253, %256 : vector<16x64xf32>
    %cst_102 = arith.constant 0.000000e+00 : f32
    %258 = vector.broadcast %cst_102 : f32 to vector<16x64xf32>
    %259 = arith.maximumf %257, %258 : vector<16x64xf32>
    %c0_103 = arith.constant 0 : index
    %c0_104 = arith.constant 0 : index
    %c0_105 = arith.constant 0 : index
    %260 = vector.load %arg14[%c0_103, %c0_104, %c0_105] : memref<2x64x32xf32, #tpu.memory_space<vmem>>, vector<1x64x32xf32>
    %261 = vector.shape_cast %260 : vector<1x64x32xf32> to vector<64x32xf32>
    %cst_106 = arith.constant dense<0.000000e+00> : vector<16x32xf32>
    %262 = tpu.matmul %259, %261, %cst_106 {dimension_numbers = #tpu.dot_dimension_numbers<[1], [0], [0], [1], [0, 0, 1, 1], [], []>} : vector<16x64xf32>, vector<64x32xf32>, vector<16x32xf32> -> vector<16x32xf32>
    %c0_107 = arith.constant 0 : index
    %c0_108 = arith.constant 0 : index
    %c0_109 = arith.constant 0 : index
    %263 = vector.load %arg15[%c0_107, %c0_108, %c0_109] : memref<2x1x32xf32, #tpu.memory_space<vmem>>, vector<1x1x32xf32>
    %264 = vector.shape_cast %263 : vector<1x1x32xf32> to vector<1x32xf32>
    %265 = vector.broadcast %264 : vector<1x32xf32> to vector<16x32xf32>
    %266 = arith.addf %262, %265 : vector<16x32xf32>
    %267 = arith.addf %250, %266 : vector<16x32xf32>
    %c0_110 = arith.constant 0 : index
    %c0_111 = arith.constant 0 : index
    %c0_112 = arith.constant 0 : index
    %268 = vector.load %arg20[%c0_110, %c0_111, %c0_112] : memref<2x1x32xf32, #tpu.memory_space<vmem>>, vector<1x1x32xf32>
    %269 = vector.shape_cast %268 : vector<1x1x32xf32> to vector<1x32xf32>
    %c0_113 = arith.constant 0 : index
    %c0_114 = arith.constant 0 : index
    %c0_115 = arith.constant 0 : index
    %270 = vector.load %arg21[%c0_113, %c0_114, %c0_115] : memref<2x1x32xf32, #tpu.memory_space<vmem>>, vector<1x1x32xf32>
    %271 = vector.shape_cast %270 : vector<1x1x32xf32> to vector<1x32xf32>
    %cst_116 = arith.constant dense<0.000000e+00> : vector<16xf32>
    %272 = vector.multi_reduction <add>, %267, %cst_116 [1] : vector<16x32xf32> to vector<16xf32>
    %273 = vector.shape_cast %272 : vector<16xf32> to vector<16x1xf32>
    %cst_117 = arith.constant 3.200000e+01 : f32
    %274 = vector.broadcast %cst_117 : f32 to vector<16x1xf32>
    %275 = arith.divf %273, %274 : vector<16x1xf32>
    %276 = vector.broadcast %275 : vector<16x1xf32> to vector<16x32xf32>
    %277 = arith.subf %267, %276 : vector<16x32xf32>
    %278 = arith.mulf %277, %277 : vector<16x32xf32>
    %cst_118 = arith.constant dense<0.000000e+00> : vector<16xf32>
    %279 = vector.multi_reduction <add>, %278, %cst_118 [1] : vector<16x32xf32> to vector<16xf32>
    %280 = vector.shape_cast %279 : vector<16xf32> to vector<16x1xf32>
    %cst_119 = arith.constant 3.200000e+01 : f32
    %281 = vector.broadcast %cst_119 : f32 to vector<16x1xf32>
    %282 = arith.divf %280, %281 : vector<16x1xf32>
    %283 = vector.broadcast %275 : vector<16x1xf32> to vector<16x32xf32>
    %284 = arith.subf %267, %283 : vector<16x32xf32>
    %cst_120 = arith.constant 9.99999974E-6 : f32
    %285 = vector.broadcast %cst_120 : f32 to vector<16x1xf32>
    %286 = arith.addf %282, %285 : vector<16x1xf32>
    %287 = math.rsqrt %286 : vector<16x1xf32>
    %288 = vector.broadcast %287 : vector<16x1xf32> to vector<16x32xf32>
    %289 = arith.mulf %284, %288 : vector<16x32xf32>
    %290 = vector.broadcast %269 : vector<1x32xf32> to vector<16x32xf32>
    %291 = arith.mulf %289, %290 : vector<16x32xf32>
    %292 = vector.broadcast %271 : vector<1x32xf32> to vector<16x32xf32>
    %293 = arith.addf %291, %292 : vector<16x32xf32>
    %c1 = arith.constant 1 : index
    %c0_121 = arith.constant 0 : index
    %c0_122 = arith.constant 0 : index
    %294 = vector.load %arg4[%c1, %c0_121, %c0_122] : memref<2x32x96xf32, #tpu.memory_space<vmem>>, vector<1x32x96xf32>
    %295 = vector.shape_cast %294 : vector<1x32x96xf32> to vector<32x96xf32>
    %c1_123 = arith.constant 1 : index
    %c0_124 = arith.constant 0 : index
    %c0_125 = arith.constant 0 : index
    %296 = vector.load %arg5[%c1_123, %c0_124, %c0_125] : memref<2x1x96xf32, #tpu.memory_space<vmem>>, vector<1x1x96xf32>
    %297 = vector.shape_cast %296 : vector<1x1x96xf32> to vector<1x96xf32>
    %c1_126 = arith.constant 1 : index
    %c0_127 = arith.constant 0 : index
    %c0_128 = arith.constant 0 : index
    %298 = vector.load %arg6[%c1_126, %c0_127, %c0_128] : memref<2x32x32xf32, #tpu.memory_space<vmem>>, vector<1x32x32xf32>
    %299 = vector.shape_cast %298 : vector<1x32x32xf32> to vector<32x32xf32>
    %c1_129 = arith.constant 1 : index
    %c0_130 = arith.constant 0 : index
    %c0_131 = arith.constant 0 : index
    %300 = vector.load %arg7[%c1_129, %c0_130, %c0_131] : memref<2x1x32xf32, #tpu.memory_space<vmem>>, vector<1x1x32xf32>
    %301 = vector.shape_cast %300 : vector<1x1x32xf32> to vector<1x32xf32>
    %cst_132 = arith.constant dense<0.000000e+00> : vector<16x96xf32>
    %302 = tpu.matmul %293, %295, %cst_132 {dimension_numbers = #tpu.dot_dimension_numbers<[1], [0], [0], [1], [0, 0, 1, 1], [], []>} : vector<16x32xf32>, vector<32x96xf32>, vector<16x96xf32> -> vector<16x96xf32>
    %303 = vector.broadcast %297 : vector<1x96xf32> to vector<16x96xf32>
    %304 = arith.addf %302, %303 : vector<16x96xf32>
    %305 = vector.extract_strided_slice %304 {offsets = [0, 0], sizes = [16, 32], strides = [1, 1]} : vector<16x96xf32> to vector<16x32xf32>
    %306 = vector.extract_strided_slice %304 {offsets = [0, 32], sizes = [16, 32], strides = [1, 1]} : vector<16x96xf32> to vector<16x32xf32>
    %307 = vector.extract_strided_slice %304 {offsets = [0, 64], sizes = [16, 32], strides = [1, 1]} : vector<16x96xf32> to vector<16x32xf32>
    %308 = vector.extract_strided_slice %305 {offsets = [0, 0], sizes = [16, 8], strides = [1, 1]} : vector<16x32xf32> to vector<16x8xf32>
    %309 = vector.extract_strided_slice %306 {offsets = [0, 0], sizes = [16, 8], strides = [1, 1]} : vector<16x32xf32> to vector<16x8xf32>
    %310 = tpu.transpose %309, [1, 0] : vector<16x8xf32> -> vector<8x16xf32>
    %cst_133 = arith.constant dense<0.000000e+00> : vector<16x16xf32>
    %311 = tpu.matmul %308, %310, %cst_133 {dimension_numbers = #tpu.dot_dimension_numbers<[1], [0], [0], [1], [0, 0, 1, 1], [], []>} : vector<16x8xf32>, vector<8x16xf32>, vector<16x16xf32> -> vector<16x16xf32>
    %cst_134 = arith.constant 0.353553385 : f32
    %312 = vector.broadcast %cst_134 : f32 to vector<16x16xf32>
    %313 = arith.mulf %311, %312 : vector<16x16xf32>
    %314 = arith.addf %313, %1 : vector<16x16xf32>
    %cst_135 = arith.constant dense<0xFF800000> : vector<16xf32>
    %315 = vector.multi_reduction <maximumf>, %314, %cst_135 [1] : vector<16x16xf32> to vector<16xf32>
    %316 = vector.shape_cast %315 : vector<16xf32> to vector<16x1xf32>
    %317 = vector.broadcast %316 : vector<16x1xf32> to vector<16x16xf32>
    %318 = arith.subf %314, %317 : vector<16x16xf32>
    %319 = math.exp %318 : vector<16x16xf32>
    %cst_136 = arith.constant dense<0.000000e+00> : vector<16xf32>
    %320 = vector.multi_reduction <add>, %319, %cst_136 [1] : vector<16x16xf32> to vector<16xf32>
    %321 = vector.shape_cast %320 : vector<16xf32> to vector<16x1xf32>
    %322 = tpu.reciprocal %321 {approx = true} : vector<16x1xf32> -> vector<16x1xf32>
    %323 = vector.broadcast %322 : vector<16x1xf32> to vector<16x16xf32>
    %324 = arith.mulf %319, %323 : vector<16x16xf32>
    %325 = vector.extract_strided_slice %307 {offsets = [0, 0], sizes = [16, 8], strides = [1, 1]} : vector<16x32xf32> to vector<16x8xf32>
    %cst_137 = arith.constant dense<0.000000e+00> : vector<16x8xf32>
    %326 = tpu.matmul %324, %325, %cst_137 {dimension_numbers = #tpu.dot_dimension_numbers<[1], [0], [0], [1], [0, 0, 1, 1], [], []>} : vector<16x16xf32>, vector<16x8xf32>, vector<16x8xf32> -> vector<16x8xf32>
    %327 = vector.extract_strided_slice %305 {offsets = [0, 8], sizes = [16, 8], strides = [1, 1]} : vector<16x32xf32> to vector<16x8xf32>
    %328 = vector.extract_strided_slice %306 {offsets = [0, 8], sizes = [16, 8], strides = [1, 1]} : vector<16x32xf32> to vector<16x8xf32>
    %329 = tpu.transpose %328, [1, 0] : vector<16x8xf32> -> vector<8x16xf32>
    %cst_138 = arith.constant dense<0.000000e+00> : vector<16x16xf32>
    %330 = tpu.matmul %327, %329, %cst_138 {dimension_numbers = #tpu.dot_dimension_numbers<[1], [0], [0], [1], [0, 0, 1, 1], [], []>} : vector<16x8xf32>, vector<8x16xf32>, vector<16x16xf32> -> vector<16x16xf32>
    %cst_139 = arith.constant 0.353553385 : f32
    %331 = vector.broadcast %cst_139 : f32 to vector<16x16xf32>
    %332 = arith.mulf %330, %331 : vector<16x16xf32>
    %333 = arith.addf %332, %1 : vector<16x16xf32>
    %cst_140 = arith.constant dense<0xFF800000> : vector<16xf32>
    %334 = vector.multi_reduction <maximumf>, %333, %cst_140 [1] : vector<16x16xf32> to vector<16xf32>
    %335 = vector.shape_cast %334 : vector<16xf32> to vector<16x1xf32>
    %336 = vector.broadcast %335 : vector<16x1xf32> to vector<16x16xf32>
    %337 = arith.subf %333, %336 : vector<16x16xf32>
    %338 = math.exp %337 : vector<16x16xf32>
    %cst_141 = arith.constant dense<0.000000e+00> : vector<16xf32>
    %339 = vector.multi_reduction <add>, %338, %cst_141 [1] : vector<16x16xf32> to vector<16xf32>
    %340 = vector.shape_cast %339 : vector<16xf32> to vector<16x1xf32>
    %341 = tpu.reciprocal %340 {approx = true} : vector<16x1xf32> -> vector<16x1xf32>
    %342 = vector.broadcast %341 : vector<16x1xf32> to vector<16x16xf32>
    %343 = arith.mulf %338, %342 : vector<16x16xf32>
    %344 = vector.extract_strided_slice %307 {offsets = [0, 8], sizes = [16, 8], strides = [1, 1]} : vector<16x32xf32> to vector<16x8xf32>
    %cst_142 = arith.constant dense<0.000000e+00> : vector<16x8xf32>
    %345 = tpu.matmul %343, %344, %cst_142 {dimension_numbers = #tpu.dot_dimension_numbers<[1], [0], [0], [1], [0, 0, 1, 1], [], []>} : vector<16x16xf32>, vector<16x8xf32>, vector<16x8xf32> -> vector<16x8xf32>
    %346 = vector.extract_strided_slice %305 {offsets = [0, 16], sizes = [16, 8], strides = [1, 1]} : vector<16x32xf32> to vector<16x8xf32>
    %347 = vector.extract_strided_slice %306 {offsets = [0, 16], sizes = [16, 8], strides = [1, 1]} : vector<16x32xf32> to vector<16x8xf32>
    %348 = tpu.transpose %347, [1, 0] : vector<16x8xf32> -> vector<8x16xf32>
    %cst_143 = arith.constant dense<0.000000e+00> : vector<16x16xf32>
    %349 = tpu.matmul %346, %348, %cst_143 {dimension_numbers = #tpu.dot_dimension_numbers<[1], [0], [0], [1], [0, 0, 1, 1], [], []>} : vector<16x8xf32>, vector<8x16xf32>, vector<16x16xf32> -> vector<16x16xf32>
    %cst_144 = arith.constant 0.353553385 : f32
    %350 = vector.broadcast %cst_144 : f32 to vector<16x16xf32>
    %351 = arith.mulf %349, %350 : vector<16x16xf32>
    %352 = arith.addf %351, %1 : vector<16x16xf32>
    %cst_145 = arith.constant dense<0xFF800000> : vector<16xf32>
    %353 = vector.multi_reduction <maximumf>, %352, %cst_145 [1] : vector<16x16xf32> to vector<16xf32>
    %354 = vector.shape_cast %353 : vector<16xf32> to vector<16x1xf32>
    %355 = vector.broadcast %354 : vector<16x1xf32> to vector<16x16xf32>
    %356 = arith.subf %352, %355 : vector<16x16xf32>
    %357 = math.exp %356 : vector<16x16xf32>
    %cst_146 = arith.constant dense<0.000000e+00> : vector<16xf32>
    %358 = vector.multi_reduction <add>, %357, %cst_146 [1] : vector<16x16xf32> to vector<16xf32>
    %359 = vector.shape_cast %358 : vector<16xf32> to vector<16x1xf32>
    %360 = tpu.reciprocal %359 {approx = true} : vector<16x1xf32> -> vector<16x1xf32>
    %361 = vector.broadcast %360 : vector<16x1xf32> to vector<16x16xf32>
    %362 = arith.mulf %357, %361 : vector<16x16xf32>
    %363 = vector.extract_strided_slice %307 {offsets = [0, 16], sizes = [16, 8], strides = [1, 1]} : vector<16x32xf32> to vector<16x8xf32>
    %cst_147 = arith.constant dense<0.000000e+00> : vector<16x8xf32>
    %364 = tpu.matmul %362, %363, %cst_147 {dimension_numbers = #tpu.dot_dimension_numbers<[1], [0], [0], [1], [0, 0, 1, 1], [], []>} : vector<16x16xf32>, vector<16x8xf32>, vector<16x8xf32> -> vector<16x8xf32>
    %365 = vector.extract_strided_slice %305 {offsets = [0, 24], sizes = [16, 8], strides = [1, 1]} : vector<16x32xf32> to vector<16x8xf32>
    %366 = vector.extract_strided_slice %306 {offsets = [0, 24], sizes = [16, 8], strides = [1, 1]} : vector<16x32xf32> to vector<16x8xf32>
    %367 = tpu.transpose %366, [1, 0] : vector<16x8xf32> -> vector<8x16xf32>
    %cst_148 = arith.constant dense<0.000000e+00> : vector<16x16xf32>
    %368 = tpu.matmul %365, %367, %cst_148 {dimension_numbers = #tpu.dot_dimension_numbers<[1], [0], [0], [1], [0, 0, 1, 1], [], []>} : vector<16x8xf32>, vector<8x16xf32>, vector<16x16xf32> -> vector<16x16xf32>
    %cst_149 = arith.constant 0.353553385 : f32
    %369 = vector.broadcast %cst_149 : f32 to vector<16x16xf32>
    %370 = arith.mulf %368, %369 : vector<16x16xf32>
    %371 = arith.addf %370, %1 : vector<16x16xf32>
    %cst_150 = arith.constant dense<0xFF800000> : vector<16xf32>
    %372 = vector.multi_reduction <maximumf>, %371, %cst_150 [1] : vector<16x16xf32> to vector<16xf32>
    %373 = vector.shape_cast %372 : vector<16xf32> to vector<16x1xf32>
    %374 = vector.broadcast %373 : vector<16x1xf32> to vector<16x16xf32>
    %375 = arith.subf %371, %374 : vector<16x16xf32>
    %376 = math.exp %375 : vector<16x16xf32>
    %cst_151 = arith.constant dense<0.000000e+00> : vector<16xf32>
    %377 = vector.multi_reduction <add>, %376, %cst_151 [1] : vector<16x16xf32> to vector<16xf32>
    %378 = vector.shape_cast %377 : vector<16xf32> to vector<16x1xf32>
    %379 = tpu.reciprocal %378 {approx = true} : vector<16x1xf32> -> vector<16x1xf32>
    %380 = vector.broadcast %379 : vector<16x1xf32> to vector<16x16xf32>
    %381 = arith.mulf %376, %380 : vector<16x16xf32>
    %382 = vector.extract_strided_slice %307 {offsets = [0, 24], sizes = [16, 8], strides = [1, 1]} : vector<16x32xf32> to vector<16x8xf32>
    %cst_152 = arith.constant dense<0.000000e+00> : vector<16x8xf32>
    %383 = tpu.matmul %381, %382, %cst_152 {dimension_numbers = #tpu.dot_dimension_numbers<[1], [0], [0], [1], [0, 0, 1, 1], [], []>} : vector<16x16xf32>, vector<16x8xf32>, vector<16x8xf32> -> vector<16x8xf32>
    %384 = tpu.concatenate %326, %345, %364, %383 in 1 : vector<16x8xf32>, vector<16x8xf32>, vector<16x8xf32>, vector<16x8xf32> -> vector<16x32xf32>
    %cst_153 = arith.constant dense<0.000000e+00> : vector<16x32xf32>
    %385 = tpu.matmul %384, %299, %cst_153 {dimension_numbers = #tpu.dot_dimension_numbers<[1], [0], [0], [1], [0, 0, 1, 1], [], []>} : vector<16x32xf32>, vector<32x32xf32>, vector<16x32xf32> -> vector<16x32xf32>
    %386 = vector.broadcast %301 : vector<1x32xf32> to vector<16x32xf32>
    %387 = arith.addf %385, %386 : vector<16x32xf32>
    %388 = arith.addf %293, %387 : vector<16x32xf32>
    %c1_154 = arith.constant 1 : index
    %c0_155 = arith.constant 0 : index
    %c0_156 = arith.constant 0 : index
    %389 = vector.load %arg16[%c1_154, %c0_155, %c0_156] : memref<2x1x32xf32, #tpu.memory_space<vmem>>, vector<1x1x32xf32>
    %390 = vector.shape_cast %389 : vector<1x1x32xf32> to vector<1x32xf32>
    %c1_157 = arith.constant 1 : index
    %c0_158 = arith.constant 0 : index
    %c0_159 = arith.constant 0 : index
    %391 = vector.load %arg17[%c1_157, %c0_158, %c0_159] : memref<2x1x32xf32, #tpu.memory_space<vmem>>, vector<1x1x32xf32>
    %392 = vector.shape_cast %391 : vector<1x1x32xf32> to vector<1x32xf32>
    %cst_160 = arith.constant dense<0.000000e+00> : vector<16xf32>
    %393 = vector.multi_reduction <add>, %388, %cst_160 [1] : vector<16x32xf32> to vector<16xf32>
    %394 = vector.shape_cast %393 : vector<16xf32> to vector<16x1xf32>
    %cst_161 = arith.constant 3.200000e+01 : f32
    %395 = vector.broadcast %cst_161 : f32 to vector<16x1xf32>
    %396 = arith.divf %394, %395 : vector<16x1xf32>
    %397 = vector.broadcast %396 : vector<16x1xf32> to vector<16x32xf32>
    %398 = arith.subf %388, %397 : vector<16x32xf32>
    %399 = arith.mulf %398, %398 : vector<16x32xf32>
    %cst_162 = arith.constant dense<0.000000e+00> : vector<16xf32>
    %400 = vector.multi_reduction <add>, %399, %cst_162 [1] : vector<16x32xf32> to vector<16xf32>
    %401 = vector.shape_cast %400 : vector<16xf32> to vector<16x1xf32>
    %cst_163 = arith.constant 3.200000e+01 : f32
    %402 = vector.broadcast %cst_163 : f32 to vector<16x1xf32>
    %403 = arith.divf %401, %402 : vector<16x1xf32>
    %404 = vector.broadcast %396 : vector<16x1xf32> to vector<16x32xf32>
    %405 = arith.subf %388, %404 : vector<16x32xf32>
    %cst_164 = arith.constant 9.99999974E-6 : f32
    %406 = vector.broadcast %cst_164 : f32 to vector<16x1xf32>
    %407 = arith.addf %403, %406 : vector<16x1xf32>
    %408 = math.rsqrt %407 : vector<16x1xf32>
    %409 = vector.broadcast %408 : vector<16x1xf32> to vector<16x32xf32>
    %410 = arith.mulf %405, %409 : vector<16x32xf32>
    %411 = vector.broadcast %390 : vector<1x32xf32> to vector<16x32xf32>
    %412 = arith.mulf %410, %411 : vector<16x32xf32>
    %413 = vector.broadcast %392 : vector<1x32xf32> to vector<16x32xf32>
    %414 = arith.addf %412, %413 : vector<16x32xf32>
    %c1_165 = arith.constant 1 : index
    %c0_166 = arith.constant 0 : index
    %c0_167 = arith.constant 0 : index
    %415 = vector.load %arg8[%c1_165, %c0_166, %c0_167] : memref<2x32x96xf32, #tpu.memory_space<vmem>>, vector<1x32x96xf32>
    %416 = vector.shape_cast %415 : vector<1x32x96xf32> to vector<32x96xf32>
    %c1_168 = arith.constant 1 : index
    %c0_169 = arith.constant 0 : index
    %c0_170 = arith.constant 0 : index
    %417 = vector.load %arg9[%c1_168, %c0_169, %c0_170] : memref<2x1x96xf32, #tpu.memory_space<vmem>>, vector<1x1x96xf32>
    %418 = vector.shape_cast %417 : vector<1x1x96xf32> to vector<1x96xf32>
    %c1_171 = arith.constant 1 : index
    %c0_172 = arith.constant 0 : index
    %c0_173 = arith.constant 0 : index
    %419 = vector.load %arg10[%c1_171, %c0_172, %c0_173] : memref<2x32x32xf32, #tpu.memory_space<vmem>>, vector<1x32x32xf32>
    %420 = vector.shape_cast %419 : vector<1x32x32xf32> to vector<32x32xf32>
    %c1_174 = arith.constant 1 : index
    %c0_175 = arith.constant 0 : index
    %c0_176 = arith.constant 0 : index
    %421 = vector.load %arg11[%c1_174, %c0_175, %c0_176] : memref<2x1x32xf32, #tpu.memory_space<vmem>>, vector<1x1x32xf32>
    %422 = vector.shape_cast %421 : vector<1x1x32xf32> to vector<1x32xf32>
    %423 = vector.extract_strided_slice %416 {offsets = [0, 0], sizes = [32, 32], strides = [1, 1]} : vector<32x96xf32> to vector<32x32xf32>
    %cst_177 = arith.constant dense<0.000000e+00> : vector<16x32xf32>
    %424 = tpu.matmul %414, %423, %cst_177 {dimension_numbers = #tpu.dot_dimension_numbers<[1], [0], [0], [1], [0, 0, 1, 1], [], []>} : vector<16x32xf32>, vector<32x32xf32>, vector<16x32xf32> -> vector<16x32xf32>
    %425 = vector.extract_strided_slice %418 {offsets = [0, 0], sizes = [1, 32], strides = [1, 1]} : vector<1x96xf32> to vector<1x32xf32>
    %426 = vector.broadcast %425 : vector<1x32xf32> to vector<16x32xf32>
    %427 = arith.addf %424, %426 : vector<16x32xf32>
    %428 = vector.extract_strided_slice %416 {offsets = [0, 32], sizes = [32, 64], strides = [1, 1]} : vector<32x96xf32> to vector<32x64xf32>
    %cst_178 = arith.constant dense<0.000000e+00> : vector<16x64xf32>
    %429 = tpu.matmul %0, %428, %cst_178 {dimension_numbers = #tpu.dot_dimension_numbers<[1], [0], [0], [1], [0, 0, 1, 1], [], []>} : vector<16x32xf32>, vector<32x64xf32>, vector<16x64xf32> -> vector<16x64xf32>
    %430 = vector.extract_strided_slice %418 {offsets = [0, 32], sizes = [1, 64], strides = [1, 1]} : vector<1x96xf32> to vector<1x64xf32>
    %431 = vector.broadcast %430 : vector<1x64xf32> to vector<16x64xf32>
    %432 = arith.addf %429, %431 : vector<16x64xf32>
    %433 = vector.extract_strided_slice %432 {offsets = [0, 0], sizes = [16, 32], strides = [1, 1]} : vector<16x64xf32> to vector<16x32xf32>
    %434 = vector.extract_strided_slice %432 {offsets = [0, 32], sizes = [16, 32], strides = [1, 1]} : vector<16x64xf32> to vector<16x32xf32>
    %435 = vector.extract_strided_slice %427 {offsets = [0, 0], sizes = [16, 8], strides = [1, 1]} : vector<16x32xf32> to vector<16x8xf32>
    %436 = vector.extract_strided_slice %433 {offsets = [0, 0], sizes = [16, 8], strides = [1, 1]} : vector<16x32xf32> to vector<16x8xf32>
    %437 = tpu.transpose %436, [1, 0] : vector<16x8xf32> -> vector<8x16xf32>
    %cst_179 = arith.constant dense<0.000000e+00> : vector<16x16xf32>
    %438 = tpu.matmul %435, %437, %cst_179 {dimension_numbers = #tpu.dot_dimension_numbers<[1], [0], [0], [1], [0, 0, 1, 1], [], []>} : vector<16x8xf32>, vector<8x16xf32>, vector<16x16xf32> -> vector<16x16xf32>
    %cst_180 = arith.constant 0.353553385 : f32
    %439 = vector.broadcast %cst_180 : f32 to vector<16x16xf32>
    %440 = arith.mulf %438, %439 : vector<16x16xf32>
    %441 = arith.addf %440, %2 : vector<16x16xf32>
    %cst_181 = arith.constant dense<0xFF800000> : vector<16xf32>
    %442 = vector.multi_reduction <maximumf>, %441, %cst_181 [1] : vector<16x16xf32> to vector<16xf32>
    %443 = vector.shape_cast %442 : vector<16xf32> to vector<16x1xf32>
    %444 = vector.broadcast %443 : vector<16x1xf32> to vector<16x16xf32>
    %445 = arith.subf %441, %444 : vector<16x16xf32>
    %446 = math.exp %445 : vector<16x16xf32>
    %cst_182 = arith.constant dense<0.000000e+00> : vector<16xf32>
    %447 = vector.multi_reduction <add>, %446, %cst_182 [1] : vector<16x16xf32> to vector<16xf32>
    %448 = vector.shape_cast %447 : vector<16xf32> to vector<16x1xf32>
    %449 = tpu.reciprocal %448 {approx = true} : vector<16x1xf32> -> vector<16x1xf32>
    %450 = vector.broadcast %449 : vector<16x1xf32> to vector<16x16xf32>
    %451 = arith.mulf %446, %450 : vector<16x16xf32>
    %452 = vector.extract_strided_slice %434 {offsets = [0, 0], sizes = [16, 8], strides = [1, 1]} : vector<16x32xf32> to vector<16x8xf32>
    %cst_183 = arith.constant dense<0.000000e+00> : vector<16x8xf32>
    %453 = tpu.matmul %451, %452, %cst_183 {dimension_numbers = #tpu.dot_dimension_numbers<[1], [0], [0], [1], [0, 0, 1, 1], [], []>} : vector<16x16xf32>, vector<16x8xf32>, vector<16x8xf32> -> vector<16x8xf32>
    %454 = vector.extract_strided_slice %427 {offsets = [0, 8], sizes = [16, 8], strides = [1, 1]} : vector<16x32xf32> to vector<16x8xf32>
    %455 = vector.extract_strided_slice %433 {offsets = [0, 8], sizes = [16, 8], strides = [1, 1]} : vector<16x32xf32> to vector<16x8xf32>
    %456 = tpu.transpose %455, [1, 0] : vector<16x8xf32> -> vector<8x16xf32>
    %cst_184 = arith.constant dense<0.000000e+00> : vector<16x16xf32>
    %457 = tpu.matmul %454, %456, %cst_184 {dimension_numbers = #tpu.dot_dimension_numbers<[1], [0], [0], [1], [0, 0, 1, 1], [], []>} : vector<16x8xf32>, vector<8x16xf32>, vector<16x16xf32> -> vector<16x16xf32>
    %cst_185 = arith.constant 0.353553385 : f32
    %458 = vector.broadcast %cst_185 : f32 to vector<16x16xf32>
    %459 = arith.mulf %457, %458 : vector<16x16xf32>
    %460 = arith.addf %459, %2 : vector<16x16xf32>
    %cst_186 = arith.constant dense<0xFF800000> : vector<16xf32>
    %461 = vector.multi_reduction <maximumf>, %460, %cst_186 [1] : vector<16x16xf32> to vector<16xf32>
    %462 = vector.shape_cast %461 : vector<16xf32> to vector<16x1xf32>
    %463 = vector.broadcast %462 : vector<16x1xf32> to vector<16x16xf32>
    %464 = arith.subf %460, %463 : vector<16x16xf32>
    %465 = math.exp %464 : vector<16x16xf32>
    %cst_187 = arith.constant dense<0.000000e+00> : vector<16xf32>
    %466 = vector.multi_reduction <add>, %465, %cst_187 [1] : vector<16x16xf32> to vector<16xf32>
    %467 = vector.shape_cast %466 : vector<16xf32> to vector<16x1xf32>
    %468 = tpu.reciprocal %467 {approx = true} : vector<16x1xf32> -> vector<16x1xf32>
    %469 = vector.broadcast %468 : vector<16x1xf32> to vector<16x16xf32>
    %470 = arith.mulf %465, %469 : vector<16x16xf32>
    %471 = vector.extract_strided_slice %434 {offsets = [0, 8], sizes = [16, 8], strides = [1, 1]} : vector<16x32xf32> to vector<16x8xf32>
    %cst_188 = arith.constant dense<0.000000e+00> : vector<16x8xf32>
    %472 = tpu.matmul %470, %471, %cst_188 {dimension_numbers = #tpu.dot_dimension_numbers<[1], [0], [0], [1], [0, 0, 1, 1], [], []>} : vector<16x16xf32>, vector<16x8xf32>, vector<16x8xf32> -> vector<16x8xf32>
    %473 = vector.extract_strided_slice %427 {offsets = [0, 16], sizes = [16, 8], strides = [1, 1]} : vector<16x32xf32> to vector<16x8xf32>
    %474 = vector.extract_strided_slice %433 {offsets = [0, 16], sizes = [16, 8], strides = [1, 1]} : vector<16x32xf32> to vector<16x8xf32>
    %475 = tpu.transpose %474, [1, 0] : vector<16x8xf32> -> vector<8x16xf32>
    %cst_189 = arith.constant dense<0.000000e+00> : vector<16x16xf32>
    %476 = tpu.matmul %473, %475, %cst_189 {dimension_numbers = #tpu.dot_dimension_numbers<[1], [0], [0], [1], [0, 0, 1, 1], [], []>} : vector<16x8xf32>, vector<8x16xf32>, vector<16x16xf32> -> vector<16x16xf32>
    %cst_190 = arith.constant 0.353553385 : f32
    %477 = vector.broadcast %cst_190 : f32 to vector<16x16xf32>
    %478 = arith.mulf %476, %477 : vector<16x16xf32>
    %479 = arith.addf %478, %2 : vector<16x16xf32>
    %cst_191 = arith.constant dense<0xFF800000> : vector<16xf32>
    %480 = vector.multi_reduction <maximumf>, %479, %cst_191 [1] : vector<16x16xf32> to vector<16xf32>
    %481 = vector.shape_cast %480 : vector<16xf32> to vector<16x1xf32>
    %482 = vector.broadcast %481 : vector<16x1xf32> to vector<16x16xf32>
    %483 = arith.subf %479, %482 : vector<16x16xf32>
    %484 = math.exp %483 : vector<16x16xf32>
    %cst_192 = arith.constant dense<0.000000e+00> : vector<16xf32>
    %485 = vector.multi_reduction <add>, %484, %cst_192 [1] : vector<16x16xf32> to vector<16xf32>
    %486 = vector.shape_cast %485 : vector<16xf32> to vector<16x1xf32>
    %487 = tpu.reciprocal %486 {approx = true} : vector<16x1xf32> -> vector<16x1xf32>
    %488 = vector.broadcast %487 : vector<16x1xf32> to vector<16x16xf32>
    %489 = arith.mulf %484, %488 : vector<16x16xf32>
    %490 = vector.extract_strided_slice %434 {offsets = [0, 16], sizes = [16, 8], strides = [1, 1]} : vector<16x32xf32> to vector<16x8xf32>
    %cst_193 = arith.constant dense<0.000000e+00> : vector<16x8xf32>
    %491 = tpu.matmul %489, %490, %cst_193 {dimension_numbers = #tpu.dot_dimension_numbers<[1], [0], [0], [1], [0, 0, 1, 1], [], []>} : vector<16x16xf32>, vector<16x8xf32>, vector<16x8xf32> -> vector<16x8xf32>
    %492 = vector.extract_strided_slice %427 {offsets = [0, 24], sizes = [16, 8], strides = [1, 1]} : vector<16x32xf32> to vector<16x8xf32>
    %493 = vector.extract_strided_slice %433 {offsets = [0, 24], sizes = [16, 8], strides = [1, 1]} : vector<16x32xf32> to vector<16x8xf32>
    %494 = tpu.transpose %493, [1, 0] : vector<16x8xf32> -> vector<8x16xf32>
    %cst_194 = arith.constant dense<0.000000e+00> : vector<16x16xf32>
    %495 = tpu.matmul %492, %494, %cst_194 {dimension_numbers = #tpu.dot_dimension_numbers<[1], [0], [0], [1], [0, 0, 1, 1], [], []>} : vector<16x8xf32>, vector<8x16xf32>, vector<16x16xf32> -> vector<16x16xf32>
    %cst_195 = arith.constant 0.353553385 : f32
    %496 = vector.broadcast %cst_195 : f32 to vector<16x16xf32>
    %497 = arith.mulf %495, %496 : vector<16x16xf32>
    %498 = arith.addf %497, %2 : vector<16x16xf32>
    %cst_196 = arith.constant dense<0xFF800000> : vector<16xf32>
    %499 = vector.multi_reduction <maximumf>, %498, %cst_196 [1] : vector<16x16xf32> to vector<16xf32>
    %500 = vector.shape_cast %499 : vector<16xf32> to vector<16x1xf32>
    %501 = vector.broadcast %500 : vector<16x1xf32> to vector<16x16xf32>
    %502 = arith.subf %498, %501 : vector<16x16xf32>
    %503 = math.exp %502 : vector<16x16xf32>
    %cst_197 = arith.constant dense<0.000000e+00> : vector<16xf32>
    %504 = vector.multi_reduction <add>, %503, %cst_197 [1] : vector<16x16xf32> to vector<16xf32>
    %505 = vector.shape_cast %504 : vector<16xf32> to vector<16x1xf32>
    %506 = tpu.reciprocal %505 {approx = true} : vector<16x1xf32> -> vector<16x1xf32>
    %507 = vector.broadcast %506 : vector<16x1xf32> to vector<16x16xf32>
    %508 = arith.mulf %503, %507 : vector<16x16xf32>
    %509 = vector.extract_strided_slice %434 {offsets = [0, 24], sizes = [16, 8], strides = [1, 1]} : vector<16x32xf32> to vector<16x8xf32>
    %cst_198 = arith.constant dense<0.000000e+00> : vector<16x8xf32>
    %510 = tpu.matmul %508, %509, %cst_198 {dimension_numbers = #tpu.dot_dimension_numbers<[1], [0], [0], [1], [0, 0, 1, 1], [], []>} : vector<16x16xf32>, vector<16x8xf32>, vector<16x8xf32> -> vector<16x8xf32>
    %511 = tpu.concatenate %453, %472, %491, %510 in 1 : vector<16x8xf32>, vector<16x8xf32>, vector<16x8xf32>, vector<16x8xf32> -> vector<16x32xf32>
    %cst_199 = arith.constant dense<0.000000e+00> : vector<16x32xf32>
    %512 = tpu.matmul %511, %420, %cst_199 {dimension_numbers = #tpu.dot_dimension_numbers<[1], [0], [0], [1], [0, 0, 1, 1], [], []>} : vector<16x32xf32>, vector<32x32xf32>, vector<16x32xf32> -> vector<16x32xf32>
    %513 = vector.broadcast %422 : vector<1x32xf32> to vector<16x32xf32>
    %514 = arith.addf %512, %513 : vector<16x32xf32>
    %515 = arith.addf %414, %514 : vector<16x32xf32>
    %c1_200 = arith.constant 1 : index
    %c0_201 = arith.constant 0 : index
    %c0_202 = arith.constant 0 : index
    %516 = vector.load %arg18[%c1_200, %c0_201, %c0_202] : memref<2x1x32xf32, #tpu.memory_space<vmem>>, vector<1x1x32xf32>
    %517 = vector.shape_cast %516 : vector<1x1x32xf32> to vector<1x32xf32>
    %c1_203 = arith.constant 1 : index
    %c0_204 = arith.constant 0 : index
    %c0_205 = arith.constant 0 : index
    %518 = vector.load %arg19[%c1_203, %c0_204, %c0_205] : memref<2x1x32xf32, #tpu.memory_space<vmem>>, vector<1x1x32xf32>
    %519 = vector.shape_cast %518 : vector<1x1x32xf32> to vector<1x32xf32>
    %cst_206 = arith.constant dense<0.000000e+00> : vector<16xf32>
    %520 = vector.multi_reduction <add>, %515, %cst_206 [1] : vector<16x32xf32> to vector<16xf32>
    %521 = vector.shape_cast %520 : vector<16xf32> to vector<16x1xf32>
    %cst_207 = arith.constant 3.200000e+01 : f32
    %522 = vector.broadcast %cst_207 : f32 to vector<16x1xf32>
    %523 = arith.divf %521, %522 : vector<16x1xf32>
    %524 = vector.broadcast %523 : vector<16x1xf32> to vector<16x32xf32>
    %525 = arith.subf %515, %524 : vector<16x32xf32>
    %526 = arith.mulf %525, %525 : vector<16x32xf32>
    %cst_208 = arith.constant dense<0.000000e+00> : vector<16xf32>
    %527 = vector.multi_reduction <add>, %526, %cst_208 [1] : vector<16x32xf32> to vector<16xf32>
    %528 = vector.shape_cast %527 : vector<16xf32> to vector<16x1xf32>
    %cst_209 = arith.constant 3.200000e+01 : f32
    %529 = vector.broadcast %cst_209 : f32 to vector<16x1xf32>
    %530 = arith.divf %528, %529 : vector<16x1xf32>
    %531 = vector.broadcast %523 : vector<16x1xf32> to vector<16x32xf32>
    %532 = arith.subf %515, %531 : vector<16x32xf32>
    %cst_210 = arith.constant 9.99999974E-6 : f32
    %533 = vector.broadcast %cst_210 : f32 to vector<16x1xf32>
    %534 = arith.addf %530, %533 : vector<16x1xf32>
    %535 = math.rsqrt %534 : vector<16x1xf32>
    %536 = vector.broadcast %535 : vector<16x1xf32> to vector<16x32xf32>
    %537 = arith.mulf %532, %536 : vector<16x32xf32>
    %538 = vector.broadcast %517 : vector<1x32xf32> to vector<16x32xf32>
    %539 = arith.mulf %537, %538 : vector<16x32xf32>
    %540 = vector.broadcast %519 : vector<1x32xf32> to vector<16x32xf32>
    %541 = arith.addf %539, %540 : vector<16x32xf32>
    %c1_211 = arith.constant 1 : index
    %c0_212 = arith.constant 0 : index
    %c0_213 = arith.constant 0 : index
    %542 = vector.load %arg12[%c1_211, %c0_212, %c0_213] : memref<2x32x64xf32, #tpu.memory_space<vmem>>, vector<1x32x64xf32>
    %543 = vector.shape_cast %542 : vector<1x32x64xf32> to vector<32x64xf32>
    %cst_214 = arith.constant dense<0.000000e+00> : vector<16x64xf32>
    %544 = tpu.matmul %541, %543, %cst_214 {dimension_numbers = #tpu.dot_dimension_numbers<[1], [0], [0], [1], [0, 0, 1, 1], [], []>} : vector<16x32xf32>, vector<32x64xf32>, vector<16x64xf32> -> vector<16x64xf32>
    %c1_215 = arith.constant 1 : index
    %c0_216 = arith.constant 0 : index
    %c0_217 = arith.constant 0 : index
    %545 = vector.load %arg13[%c1_215, %c0_216, %c0_217] : memref<2x1x64xf32, #tpu.memory_space<vmem>>, vector<1x1x64xf32>
    %546 = vector.shape_cast %545 : vector<1x1x64xf32> to vector<1x64xf32>
    %547 = vector.broadcast %546 : vector<1x64xf32> to vector<16x64xf32>
    %548 = arith.addf %544, %547 : vector<16x64xf32>
    %cst_218 = arith.constant 0.000000e+00 : f32
    %549 = vector.broadcast %cst_218 : f32 to vector<16x64xf32>
    %550 = arith.maximumf %548, %549 : vector<16x64xf32>
    %c1_219 = arith.constant 1 : index
    %c0_220 = arith.constant 0 : index
    %c0_221 = arith.constant 0 : index
    %551 = vector.load %arg14[%c1_219, %c0_220, %c0_221] : memref<2x64x32xf32, #tpu.memory_space<vmem>>, vector<1x64x32xf32>
    %552 = vector.shape_cast %551 : vector<1x64x32xf32> to vector<64x32xf32>
    %cst_222 = arith.constant dense<0.000000e+00> : vector<16x32xf32>
    %553 = tpu.matmul %550, %552, %cst_222 {dimension_numbers = #tpu.dot_dimension_numbers<[1], [0], [0], [1], [0, 0, 1, 1], [], []>} : vector<16x64xf32>, vector<64x32xf32>, vector<16x32xf32> -> vector<16x32xf32>
    %c1_223 = arith.constant 1 : index
    %c0_224 = arith.constant 0 : index
    %c0_225 = arith.constant 0 : index
    %554 = vector.load %arg15[%c1_223, %c0_224, %c0_225] : memref<2x1x32xf32, #tpu.memory_space<vmem>>, vector<1x1x32xf32>
    %555 = vector.shape_cast %554 : vector<1x1x32xf32> to vector<1x32xf32>
    %556 = vector.broadcast %555 : vector<1x32xf32> to vector<16x32xf32>
    %557 = arith.addf %553, %556 : vector<16x32xf32>
    %558 = arith.addf %541, %557 : vector<16x32xf32>
    %c1_226 = arith.constant 1 : index
    %c0_227 = arith.constant 0 : index
    %c0_228 = arith.constant 0 : index
    %559 = vector.load %arg20[%c1_226, %c0_227, %c0_228] : memref<2x1x32xf32, #tpu.memory_space<vmem>>, vector<1x1x32xf32>
    %560 = vector.shape_cast %559 : vector<1x1x32xf32> to vector<1x32xf32>
    %c1_229 = arith.constant 1 : index
    %c0_230 = arith.constant 0 : index
    %c0_231 = arith.constant 0 : index
    %561 = vector.load %arg21[%c1_229, %c0_230, %c0_231] : memref<2x1x32xf32, #tpu.memory_space<vmem>>, vector<1x1x32xf32>
    %562 = vector.shape_cast %561 : vector<1x1x32xf32> to vector<1x32xf32>
    %cst_232 = arith.constant dense<0.000000e+00> : vector<16xf32>
    %563 = vector.multi_reduction <add>, %558, %cst_232 [1] : vector<16x32xf32> to vector<16xf32>
    %564 = vector.shape_cast %563 : vector<16xf32> to vector<16x1xf32>
    %cst_233 = arith.constant 3.200000e+01 : f32
    %565 = vector.broadcast %cst_233 : f32 to vector<16x1xf32>
    %566 = arith.divf %564, %565 : vector<16x1xf32>
    %567 = vector.broadcast %566 : vector<16x1xf32> to vector<16x32xf32>
    %568 = arith.subf %558, %567 : vector<16x32xf32>
    %569 = arith.mulf %568, %568 : vector<16x32xf32>
    %cst_234 = arith.constant dense<0.000000e+00> : vector<16xf32>
    %570 = vector.multi_reduction <add>, %569, %cst_234 [1] : vector<16x32xf32> to vector<16xf32>
    %571 = vector.shape_cast %570 : vector<16xf32> to vector<16x1xf32>
    %cst_235 = arith.constant 3.200000e+01 : f32
    %572 = vector.broadcast %cst_235 : f32 to vector<16x1xf32>
    %573 = arith.divf %571, %572 : vector<16x1xf32>
    %574 = vector.broadcast %566 : vector<16x1xf32> to vector<16x32xf32>
    %575 = arith.subf %558, %574 : vector<16x32xf32>
    %cst_236 = arith.constant 9.99999974E-6 : f32
    %576 = vector.broadcast %cst_236 : f32 to vector<16x1xf32>
    %577 = arith.addf %573, %576 : vector<16x1xf32>
    %578 = math.rsqrt %577 : vector<16x1xf32>
    %579 = vector.broadcast %578 : vector<16x1xf32> to vector<16x32xf32>
    %580 = arith.mulf %575, %579 : vector<16x32xf32>
    %581 = vector.broadcast %560 : vector<1x32xf32> to vector<16x32xf32>
    %582 = arith.mulf %580, %581 : vector<16x32xf32>
    %583 = vector.broadcast %562 : vector<1x32xf32> to vector<16x32xf32>
    %584 = arith.addf %582, %583 : vector<16x32xf32>
    %585 = vector.extract_strided_slice %584 {offsets = [7, 0], sizes = [1, 32], strides = [1, 1]} : vector<16x32xf32> to vector<1x32xf32>
    %586 = vector.extract_strided_slice %584 {offsets = [15, 0], sizes = [1, 32], strides = [1, 1]} : vector<16x32xf32> to vector<1x32xf32>
    %587 = tpu.concatenate %585, %586 in 0 : vector<1x32xf32>, vector<1x32xf32> -> vector<2x32xf32>
    %c0_237 = arith.constant 0 : index
    %c0_238 = arith.constant 0 : index
    %588 = vector.load %arg3[%c0_237, %c0_238] : memref<32x64xf32, #tpu.memory_space<vmem>>, vector<32x64xf32>
    %cst_239 = arith.constant dense<0.000000e+00> : vector<2x64xf32>
    %589 = tpu.matmul %587, %588, %cst_239 {dimension_numbers = #tpu.dot_dimension_numbers<[1], [0], [0], [1], [0, 0, 1, 1], [], []>} : vector<2x32xf32>, vector<32x64xf32>, vector<2x64xf32> -> vector<2x64xf32>
    %c0_240 = arith.constant 0 : index
    %c0_241 = arith.constant 0 : index
    %590 = vector.load %arg22[%c0_240, %c0_241] : memref<2x64xf32, #tpu.memory_space<vmem>>, vector<2x64xf32>
    tpu.vector_store %arg22[%c0_240, %c0_241], %589 {strides = array<i32>} : memref<2x64xf32, #tpu.memory_space<vmem>>, vector<2x64xf32>,
    return
  }
}

</mosaic_0001>

<llo_original>
// kernel: chess_transformer_forward.1
$region0: #{chess_transformer_forward.1}
  #allocation0 [shape = 'u32[]', space=smem, size = 0x4, offset = 0x4, fixed_abs, tag = 'smem constant byte address 0x4 - core index']
  #allocation1 [shape = 'u32[72,128]{1,0:T(1,128)}', space=vmem, size = 0x9000, scoped, tag = 'internal scratch']
  %s0 = inlined_call_operand.vmem [shape: f32[16,32], index: 0, kind: input, shape index: {}]
  %s1 = inlined_call_operand.vmem [shape: f32[16,16], index: 1, kind: input, shape index: {}]
  %s2 = inlined_call_operand.vmem [shape: f32[16,16], index: 2, kind: input, shape index: {}]
  %s3 = inlined_call_operand.vmem [shape: f32[32,64], index: 3, kind: input, shape index: {}]
  %s4 = inlined_call_operand.vmem [shape: f32[2,32,96], index: 4, kind: input, shape index: {}]
  %s5 = inlined_call_operand.vmem [shape: f32[2,1,96], index: 5, kind: input, shape index: {}]
  %s6 = inlined_call_operand.vmem [shape: f32[2,32,32], index: 6, kind: input, shape index: {}]
  %s7 = inlined_call_operand.vmem [shape: f32[2,1,32], index: 7, kind: input, shape index: {}]
  %s8 = inlined_call_operand.vmem [shape: f32[2,32,96], index: 8, kind: input, shape index: {}]
  %s9 = inlined_call_operand.vmem [shape: f32[2,1,96], index: 9, kind: input, shape index: {}]
  %s10 = inlined_call_operand.vmem [shape: f32[2,32,32], index: 10, kind: input, shape index: {}]
  %s11 = inlined_call_operand.vmem [shape: f32[2,1,32], index: 11, kind: input, shape index: {}]
  %s12 = inlined_call_operand.vmem [shape: f32[2,32,64], index: 12, kind: input, shape index: {}]
  %s13 = inlined_call_operand.vmem [shape: f32[2,1,64], index: 13, kind: input, shape index: {}]
  %s14 = inlined_call_operand.vmem [shape: f32[2,64,32], index: 14, kind: input, shape index: {}]
  %s15 = inlined_call_operand.vmem [shape: f32[2,1,32], index: 15, kind: input, shape index: {}]
  %s16 = inlined_call_operand.vmem [shape: f32[2,1,32], index: 16, kind: input, shape index: {}]
  %s17 = inlined_call_operand.vmem [shape: f32[2,1,32], index: 17, kind: input, shape index: {}]
  %s18 = inlined_call_operand.vmem [shape: f32[2,1,32], index: 18, kind: input, shape index: {}]
  %s19 = inlined_call_operand.vmem [shape: f32[2,1,32], index: 19, kind: input, shape index: {}]
  %s20 = inlined_call_operand.vmem [shape: f32[2,1,32], index: 20, kind: input, shape index: {}]
  %s21 = inlined_call_operand.vmem [shape: f32[2,1,32], index: 21, kind: input, shape index: {}]
  %s22 = inlined_call_operand.hbm [shape: f32[2,64], index: 22, kind: output, shape index: {}]
  %s23 = sld [smem:[#allocation0]]
  $region98: #{chess_transformer_forward.1} parent=0
    _
  %s25 = ssub.s32 1, %s23
  %s26 = scalar_select 0, %s25, %s23
  $region1: #{chess_transformer_forward.1} parent=0
    #allocation2 [shape = 'u8[1024]{0}', space=vmem, size = 0x400, scoped, tag = 'output window, operand 0, single buffered']
    #allocation3 [shape = 's32[1]{0}', space=sflag, size = 0x4, scoped, tag = 'scoped memory for chess_transformer_forward.1']
    %27 = vsyncpa [#allocation3], 0
    // Predicated region
    $region2: #{chess_transformer_forward.1} parent=1 // pred_check
      _
    $region3: #{chess_transformer_forward.1} parent=1 // pred_check_branch
      %29 = sbr.rel (0) target = $region5
    $region4: #{chess_transformer_forward.1} parent=1 // pred_region
      _
    $region5: #{chess_transformer_forward.1} parent=1 // pred_fallthru
      _
    // Predicated region
    $region6: #{chess_transformer_forward.1} parent=1 // pred_check
      _
    $region7: #{chess_transformer_forward.1} parent=1 // pred_check_branch
      %31 = sbr.rel (0) target = $region9
    $region8: #{chess_transformer_forward.1} parent=1 // pred_region
      _
    $region9: #{chess_transformer_forward.1} parent=1 // pred_fallthru
      _
    // Predicated region
    $region10: #{chess_transformer_forward.1} parent=1 // pred_check
      _
    $region11: #{chess_transformer_forward.1} parent=1 // pred_check_branch
      %33 = sbr.rel (0) target = $region13
    $region12: #{chess_transformer_forward.1} parent=1 // pred_region
      _
    $region13: #{chess_transformer_forward.1} parent=1 // pred_fallthru
      _
    // Predicated region
    $region14: #{chess_transformer_forward.1} parent=1 // pred_check
      _
    $region15: #{chess_transformer_forward.1} parent=1 // pred_check_branch
      %35 = sbr.rel (0) target = $region17
    $region16: #{chess_transformer_forward.1} parent=1 // pred_region
      _
    $region17: #{chess_transformer_forward.1} parent=1 // pred_fallthru
      _
    // Predicated region
    $region18: #{chess_transformer_forward.1} parent=1 // pred_check
      _
    $region19: #{chess_transformer_forward.1} parent=1 // pred_check_branch
      %37 = sbr.rel (0) target = $region21
    $region20: #{chess_transformer_forward.1} parent=1 // pred_region
      _
    $region21: #{chess_transformer_forward.1} parent=1 // pred_fallthru
      _
    // Predicated region
    $region22: #{chess_transformer_forward.1} parent=1 // pred_check
      _
    $region23: #{chess_transformer_forward.1} parent=1 // pred_check_branch
      %39 = sbr.rel (0) target = $region25
    $region24: #{chess_transformer_forward.1} parent=1 // pred_region
      _
    $region25: #{chess_transformer_forward.1} parent=1 // pred_fallthru
      _
    // Predicated region
    $region26: #{chess_transformer_forward.1} parent=1 // pred_check
      _
    $region27: #{chess_transformer_forward.1} parent=1 // pred_check_branch
      %41 = sbr.rel (0) target = $region29
    $region28: #{chess_transformer_forward.1} parent=1 // pred_region
      _
    $region29: #{chess_transformer_forward.1} parent=1 // pred_fallthru
      _
    // Predicated region
    $region30: #{chess_transformer_forward.1} parent=1 // pred_check
      _
    $region31: #{chess_transformer_forward.1} parent=1 // pred_check_branch
      %43 = sbr.rel (0) target = $region33
    $region32: #{chess_transformer_forward.1} parent=1 // pred_region
      _
    $region33: #{chess_transformer_forward.1} parent=1 // pred_fallthru
      _
    // Predicated region
    $region34: #{chess_transformer_forward.1} parent=1 // pred_check
      _
    $region35: #{chess_transformer_forward.1} parent=1 // pred_check_branch
      %45 = sbr.rel (0) target = $region37
    $region36: #{chess_transformer_forward.1} parent=1 // pred_region
      _
    $region37: #{chess_transformer_forward.1} parent=1 // pred_fallthru
      _
    // Predicated region
    $region38: #{chess_transformer_forward.1} parent=1 // pred_check
      _
    $region39: #{chess_transformer_forward.1} parent=1 // pred_check_branch
      %47 = sbr.rel (0) target = $region41
    $region40: #{chess_transformer_forward.1} parent=1 // pred_region
      _
    $region41: #{chess_transformer_forward.1} parent=1 // pred_fallthru
      _
    // Predicated region
    $region42: #{chess_transformer_forward.1} parent=1 // pred_check
      _
    $region43: #{chess_transformer_forward.1} parent=1 // pred_check_branch
      %49 = sbr.rel (0) target = $region45
    $region44: #{chess_transformer_forward.1} parent=1 // pred_region
      _
    $region45: #{chess_transformer_forward.1} parent=1 // pred_fallthru
      _
    // Predicated region
    $region46: #{chess_transformer_forward.1} parent=1 // pred_check
      _
    $region47: #{chess_transformer_forward.1} parent=1 // pred_check_branch
      %51 = sbr.rel (0) target = $region49
    $region48: #{chess_transformer_forward.1} parent=1 // pred_region
      _
    $region49: #{chess_transformer_forward.1} parent=1 // pred_fallthru
      _
    // Predicated region
    $region50: #{chess_transformer_forward.1} parent=1 // pred_check
      _
    $region51: #{chess_transformer_forward.1} parent=1 // pred_check_branch
      %53 = sbr.rel (0) target = $region53
    $region52: #{chess_transformer_forward.1} parent=1 // pred_region
      _
    $region53: #{chess_transformer_forward.1} parent=1 // pred_fallthru
      _
    // Predicated region
    $region54: #{chess_transformer_forward.1} parent=1 // pred_check
      _
    $region55: #{chess_transformer_forward.1} parent=1 // pred_check_branch
      %55 = sbr.rel (0) target = $region57
    $region56: #{chess_transformer_forward.1} parent=1 // pred_region
      _
    $region57: #{chess_transformer_forward.1} parent=1 // pred_fallthru
      _
    // Predicated region
    $region58: #{chess_transformer_forward.1} parent=1 // pred_check
      _
    $region59: #{chess_transformer_forward.1} parent=1 // pred_check_branch
      %57 = sbr.rel (0) target = $region61
    $region60: #{chess_transformer_forward.1} parent=1 // pred_region
      _
    $region61: #{chess_transformer_forward.1} parent=1 // pred_fallthru
      _
    // Predicated region
    $region62: #{chess_transformer_forward.1} parent=1 // pred_check
      _
    $region63: #{chess_transformer_forward.1} parent=1 // pred_check_branch
      %59 = sbr.rel (0) target = $region65
    $region64: #{chess_transformer_forward.1} parent=1 // pred_region
      _
    $region65: #{chess_transformer_forward.1} parent=1 // pred_fallthru
      _
    // Predicated region
    $region66: #{chess_transformer_forward.1} parent=1 // pred_check
      _
    $region67: #{chess_transformer_forward.1} parent=1 // pred_check_branch
      %61 = sbr.rel (0) target = $region69
    $region68: #{chess_transformer_forward.1} parent=1 // pred_region
      _
    $region69: #{chess_transformer_forward.1} parent=1 // pred_fallthru
      _
    // Predicated region
    $region70: #{chess_transformer_forward.1} parent=1 // pred_check
      _
    $region71: #{chess_transformer_forward.1} parent=1 // pred_check_branch
      %63 = sbr.rel (0) target = $region73
    $region72: #{chess_transformer_forward.1} parent=1 // pred_region
      _
    $region73: #{chess_transformer_forward.1} parent=1 // pred_fallthru
      _
    // Predicated region
    $region74: #{chess_transformer_forward.1} parent=1 // pred_check
      _
    $region75: #{chess_transformer_forward.1} parent=1 // pred_check_branch
      %65 = sbr.rel (0) target = $region77
    $region76: #{chess_transformer_forward.1} parent=1 // pred_region
      _
    $region77: #{chess_transformer_forward.1} parent=1 // pred_fallthru
      _
    // Predicated region
    $region78: #{chess_transformer_forward.1} parent=1 // pred_check
      _
    $region79: #{chess_transformer_forward.1} parent=1 // pred_check_branch
      %67 = sbr.rel (0) target = $region81
    $region80: #{chess_transformer_forward.1} parent=1 // pred_region
      _
    $region81: #{chess_transformer_forward.1} parent=1 // pred_fallthru
      _
    // Predicated region
    $region82: #{chess_transformer_forward.1} parent=1 // pred_check
      _
    $region83: #{chess_transformer_forward.1} parent=1 // pred_check_branch
      %69 = sbr.rel (0) target = $region85
    $region84: #{chess_transformer_forward.1} parent=1 // pred_region
      _
    $region85: #{chess_transformer_forward.1} parent=1 // pred_fallthru
      _
    // Predicated region
    $region86: #{chess_transformer_forward.1} parent=1 // pred_check
      _
    $region87: #{chess_transformer_forward.1} parent=1 // pred_check_branch
      %71 = sbr.rel (0) target = $region89
    $region88: #{chess_transformer_forward.1} parent=1 // pred_region
      _
    $region89: #{chess_transformer_forward.1} parent=1 // pred_fallthru
      _
    %v72 = vld [vmem:[%s0] sm:$0xff]
    %v73 = vld [vmem:[%s0 + $0x8] sm:$0xff]
    %v74 = vld [vmem:[%s1] sm:$0xff]
    %v75 = vld [vmem:[%s1 + $0x8] sm:$0xff]
    %v76 = vld [vmem:[%s2] sm:$0xff]
    %v77 = vld [vmem:[%s2 + $0x8] sm:$0xff]
    %v78 = vld [vmem:[%s4] sm:$0xff]
    %v79 = vld [vmem:[%s4 + $0x8] sm:$0xff]
    %v80 = vld [vmem:[%s4 + $0x10] sm:$0xff]
    %v81 = vld [vmem:[%s4 + $0x18] sm:$0xff]
    %v82 = vld [vmem:[%s5] sm:$0x1]
    %v83 = vld [vmem:[%s6] sm:$0xff]
    %v84 = vld [vmem:[%s6 + $0x8] sm:$0xff]
    %v85 = vld [vmem:[%s6 + $0x10] sm:$0xff]
    %v86 = vld [vmem:[%s6 + $0x18] sm:$0xff]
    %v87 = vld [vmem:[%s7] sm:$0x1]
    %v89 = vperm.slane %v82, 0
    %vm91 = vcmask 261120
    %v93 = vsel %vm91, %v72, 0
    %v96 = vsel %vm91, %v73, 0
    %98 = vmatpush.msra.mxu0 0.0
    %99 = vmatpush.msra.mxu0 0.0
    %100 = vmatpush.msra.mxu0 0.0
    %101 = vmatpush.msra.mxu0 0.0
    %102 = vmatpush.msra.mxu0 0.0
    %103 = vmatpush.msra.mxu0 0.0
    %104 = vmatpush.msra.mxu0 0.0
    %105 = vmatpush.msra.mxu0 0.0
    %106 = vmatpush.msra.mxu0 0.0
    %107 = vmatpush.msra.mxu0 0.0
    %108 = vmatpush.msra.mxu0 0.0
    %109 = vmatpush.msra.mxu0 0.0
    %110 = vmatpush.msra.mxu0 %v81
    %111 = vmatpush.msra.mxu0 %v80
    %112 = vmatpush.msra.mxu0 %v79
    %113 = vmatpush.msra.mxu0 %v78
    %114 = vmatmul.f32.gmra.mxu0 %v93
    %v115 = vpop.f32.mrf.mxu0
    %v116 = vadd.f32 %v89, %v115
    %117 = vmatmul.f32.gmra.mxu0 %v96
    %v118 = vpop.f32.mrf.mxu0
    %v119 = vadd.f32 %v89, %v118
    %120 = vdwg.mxu0
    %123 = vrot.lane.b32.xlu0 %v116, 96
    %v124 = vpop.permute.xlu0 %123
    %125 = vrot.lane.b32.xlu0 %v119, 96
    %v126 = vpop.permute.xlu0 %125
    %vm127 = vcmask 64512
    %v128 = vsel %vm127, %v116, 0
    %v130 = vsel %vm127, %v119, 0
    %v132 = vsel %vm127, %v124, 0
    %v134 = vsel %vm127, %v126, 0
    %136 = vmatpush.xpose.msra.mxu0 0.0
    %137 = vmatpush.xpose.msra.mxu0 0.0
    %138 = vmatpush.xpose.msra.mxu0 0.0
    %139 = vmatpush.xpose.msra.mxu0 0.0
    %140 = vmatpush.xpose.msra.mxu0 0.0
    %141 = vmatpush.xpose.msra.mxu0 0.0
    %142 = vmatpush.xpose.msra.mxu0 0.0
    %143 = vmatpush.xpose.msra.mxu0 0.0
    %144 = vmatpush.xpose.msra.mxu0 0.0
    %145 = vmatpush.xpose.msra.mxu0 0.0
    %146 = vmatpush.xpose.msra.mxu0 0.0
    %147 = vmatpush.xpose.msra.mxu0 0.0
    %148 = vmatpush.xpose.msra.mxu0 0.0
    %149 = vmatpush.xpose.msra.mxu0 0.0
    %150 = vmatpush.xpose.msra.mxu0 %v134
    %151 = vmatpush.xpose.msra.mxu0 %v132
    %152 = vmatmul.f32.gmra.mxu0 %v128
    %v153 = vpop.f32.mrf.mxu0
    %v154 = vadd.f32 0.0, %v153
    %155 = vmatmul.f32.gmra.mxu0 %v130
    %v156 = vpop.f32.mrf.mxu0
    %v157 = vadd.f32 0.0, %v156
    %158 = vdwg.mxu0
    %v159 = vmul.f32 %v154, 0.35355338
    %v160 = vmul.f32 %v157, 0.35355338
    %v161 = vadd.f32 %v159, %v74
    %v162 = vadd.f32 %v160, %v75
    %vm163 = vcmask 130048
    %v164 = vsel %vm163, %v161, -inf
    %165 = vmax.xlane.f32.xlu0 %v164
    %v166 = vpop.xlane.xlu0 %165
    %v167 = vsel %vm163, %v162, -inf
    %168 = vmax.xlane.f32.xlu0 %v167
    %v169 = vpop.xlane.xlu0 %168
    %v170 = vsub.f32 %v161, %v166
    %v171 = vsub.f32 %v162, %v169
    %v172 = vmul.f32 %v170, 1.442695
    %v173 = vpow.pop %v172
    %v174 = vmul.f32 %v171, 1.442695
    %v175 = vpow.pop %v174
    %v176 = vsel %vm163, %v173, 0.0
    %177 = vadd.xlane.f32.xlu0 %v176
    %v178 = vpop.xlane.xlu0 %177
    %v179 = vsel %vm163, %v175, 0.0
    %180 = vadd.xlane.f32.xlu0 %v179
    %v181 = vpop.xlane.xlu0 %180
    %v182 = vrcp.pop %v178
    %v183 = vrcp.pop %v181
    %v184 = vmul.f32 %v173, %v182
    %v185 = vmul.f32 %v175, %v183
    %186 = vrot.lane.b32.xlu0 %v116, 64
    %v187 = vpop.permute.xlu0 %186
    %188 = vrot.lane.b32.xlu0 %v119, 64
    %v189 = vpop.permute.xlu0 %188
    %v193 = vsel %vm163, %v184, 0
    %v196 = vsel %vm163, %v185, 0
    %198 = vmatpush.msra.mxu0 0.0
    %199 = vmatpush.msra.mxu0 0.0
    %200 = vmatpush.msra.mxu0 0.0
    %201 = vmatpush.msra.mxu0 0.0
    %202 = vmatpush.msra.mxu0 0.0
    %203 = vmatpush.msra.mxu0 0.0
    %204 = vmatpush.msra.mxu0 0.0
    %205 = vmatpush.msra.mxu0 0.0
    %206 = vmatpush.msra.mxu0 0.0
    %207 = vmatpush.msra.mxu0 0.0
    %208 = vmatpush.msra.mxu0 0.0
    %209 = vmatpush.msra.mxu0 0.0
    %210 = vmatpush.msra.mxu0 0.0
    %211 = vmatpush.msra.mxu0 0.0
    %212 = vmatpush.msra.mxu0 %v189
    %213 = vmatpush.msra.mxu0 %v187
    %214 = vmatmul.f32.gmra.mxu0 %v193
    %v215 = vpop.f32.mrf.mxu0
    %v216 = vadd.f32 0.0, %v215
    %217 = vmatmul.f32.gmra.mxu0 %v196
    %v218 = vpop.f32.mrf.mxu0
    %v219 = vadd.f32 0.0, %v218
    %220 = vdwg.mxu0
    %221 = vrot.lane.b32.xlu0 %v116, 120
    %v222 = vpop.permute.xlu0 %221
    %223 = vrot.lane.b32.xlu0 %v119, 120
    %v224 = vpop.permute.xlu0 %223
    %225 = vrot.lane.b32.xlu0 %v116, 88
    %v226 = vpop.permute.xlu0 %225
    %227 = vrot.lane.b32.xlu0 %v119, 88
    %v228 = vpop.permute.xlu0 %227
    %v229 = vsel %vm127, %v222, 0
    %v231 = vsel %vm127, %v224, 0
    %v233 = vsel %vm127, %v226, 0
    %v235 = vsel %vm127, %v228, 0
    %237 = vmatpush.xpose.msra.mxu0 0.0
    %238 = vmatpush.xpose.msra.mxu0 0.0
    %239 = vmatpush.xpose.msra.mxu0 0.0
    %240 = vmatpush.xpose.msra.mxu0 0.0
    %241 = vmatpush.xpose.msra.mxu0 0.0
    %242 = vmatpush.xpose.msra.mxu0 0.0
    %243 = vmatpush.xpose.msra.mxu0 0.0
    %244 = vmatpush.xpose.msra.mxu0 0.0
    %245 = vmatpush.xpose.msra.mxu0 0.0
    %246 = vmatpush.xpose.msra.mxu0 0.0
    %247 = vmatpush.xpose.msra.mxu0 0.0
    %248 = vmatpush.xpose.msra.mxu0 0.0
    %249 = vmatpush.xpose.msra.mxu0 0.0
    %250 = vmatpush.xpose.msra.mxu0 0.0
    %251 = vmatpush.xpose.msra.mxu0 %v235
    %252 = vmatpush.xpose.msra.mxu0 %v233
    %253 = vmatmul.f32.gmra.mxu0 %v229
    %v254 = vpop.f32.mrf.mxu0
    %v255 = vadd.f32 0.0, %v254
    %256 = vmatmul.f32.gmra.mxu0 %v231
    %v257 = vpop.f32.mrf.mxu0
    %v258 = vadd.f32 0.0, %v257
    %259 = vdwg.mxu0
    %v260 = vmul.f32 %v255, 0.35355338
    %v261 = vmul.f32 %v258, 0.35355338
    %v262 = vadd.f32 %v260, %v74
    %v263 = vadd.f32 %v261, %v75
    %v264 = vsel %vm163, %v262, -inf
    %265 = vmax.xlane.f32.xlu0 %v264
    %v266 = vpop.xlane.xlu0 %265
    %v267 = vsel %vm163, %v263, -inf
    %268 = vmax.xlane.f32.xlu0 %v267
    %v269 = vpop.xlane.xlu0 %268
    %v270 = vsub.f32 %v262, %v266
    %v271 = vsub.f32 %v263, %v269
    %v272 = vmul.f32 %v270, 1.442695
    %v273 = vpow.pop %v272
    %v274 = vmul.f32 %v271, 1.442695
    %v275 = vpow.pop %v274
    %v276 = vsel %vm163, %v273, 0.0
    %277 = vadd.xlane.f32.xlu0 %v276
    %v278 = vpop.xlane.xlu0 %277
    %v279 = vsel %vm163, %v275, 0.0
    %280 = vadd.xlane.f32.xlu0 %v279
    %v281 = vpop.xlane.xlu0 %280
    %v282 = vrcp.pop %v278
    %v283 = vrcp.pop %v281
    %v284 = vmul.f32 %v273, %v282
    %v285 = vmul.f32 %v275, %v283
    %286 = vrot.lane.b32.xlu0 %v116, 56
    %v287 = vpop.permute.xlu0 %286
    %288 = vrot.lane.b32.xlu0 %v119, 56
    %v289 = vpop.permute.xlu0 %288
    %v293 = vsel %vm163, %v284, 0
    %v296 = vsel %vm163, %v285, 0
    %298 = vmatpush.msra.mxu0 0.0
    %299 = vmatpush.msra.mxu0 0.0
    %300 = vmatpush.msra.mxu0 0.0
    %301 = vmatpush.msra.mxu0 0.0
    %302 = vmatpush.msra.mxu0 0.0
    %303 = vmatpush.msra.mxu0 0.0
    %304 = vmatpush.msra.mxu0 0.0
    %305 = vmatpush.msra.mxu0 0.0
    %306 = vmatpush.msra.mxu0 0.0
    %307 = vmatpush.msra.mxu0 0.0
    %308 = vmatpush.msra.mxu0 0.0
    %309 = vmatpush.msra.mxu0 0.0
    %310 = vmatpush.msra.mxu0 0.0
    %311 = vmatpush.msra.mxu0 0.0
    %312 = vmatpush.msra.mxu0 %v289
    %313 = vmatpush.msra.mxu0 %v287
    %314 = vmatmul.f32.gmra.mxu0 %v293
    %v315 = vpop.f32.mrf.mxu0
    %v316 = vadd.f32 0.0, %v315
    %317 = vmatmul.f32.gmra.mxu0 %v296
    %v318 = vpop.f32.mrf.mxu0
    %v319 = vadd.f32 0.0, %v318
    %320 = vdwg.mxu0
    %321 = vrot.lane.b32.xlu0 %v116, 112
    %v322 = vpop.permute.xlu0 %321
    %323 = vrot.lane.b32.xlu0 %v119, 112
    %v324 = vpop.permute.xlu0 %323
    %325 = vrot.lane.b32.xlu0 %v116, 80
    %v326 = vpop.permute.xlu0 %325
    %327 = vrot.lane.b32.xlu0 %v119, 80
    %v328 = vpop.permute.xlu0 %327
    %v329 = vsel %vm127, %v322, 0
    %v331 = vsel %vm127, %v324, 0
    %v333 = vsel %vm127, %v326, 0
    %v335 = vsel %vm127, %v328, 0
    %337 = vmatpush.xpose.msra.mxu0 0.0
    %338 = vmatpush.xpose.msra.mxu0 0.0
    %339 = vmatpush.xpose.msra.mxu0 0.0
    %340 = vmatpush.xpose.msra.mxu0 0.0
    %341 = vmatpush.xpose.msra.mxu0 0.0
    %342 = vmatpush.xpose.msra.mxu0 0.0
    %343 = vmatpush.xpose.msra.mxu0 0.0
    %344 = vmatpush.xpose.msra.mxu0 0.0
    %345 = vmatpush.xpose.msra.mxu0 0.0
    %346 = vmatpush.xpose.msra.mxu0 0.0
    %347 = vmatpush.xpose.msra.mxu0 0.0
    %348 = vmatpush.xpose.msra.mxu0 0.0
    %349 = vmatpush.xpose.msra.mxu0 0.0
    %350 = vmatpush.xpose.msra.mxu0 0.0
    %351 = vmatpush.xpose.msra.mxu0 %v335
    %352 = vmatpush.xpose.msra.mxu0 %v333
    %353 = vmatmul.f32.gmra.mxu0 %v329
    %v354 = vpop.f32.mrf.mxu0
    %v355 = vadd.f32 0.0, %v354
    %356 = vmatmul.f32.gmra.mxu0 %v331
    %v357 = vpop.f32.mrf.mxu0
    %v358 = vadd.f32 0.0, %v357
    %359 = vdwg.mxu0
    %v360 = vmul.f32 %v355, 0.35355338
    %v361 = vmul.f32 %v358, 0.35355338
    %v362 = vadd.f32 %v360, %v74
    %v363 = vadd.f32 %v361, %v75
    %v364 = vsel %vm163, %v362, -inf
    %365 = vmax.xlane.f32.xlu0 %v364
    %v366 = vpop.xlane.xlu0 %365
    %v367 = vsel %vm163, %v363, -inf
    %368 = vmax.xlane.f32.xlu0 %v367
    %v369 = vpop.xlane.xlu0 %368
    %v370 = vsub.f32 %v362, %v366
    %v371 = vsub.f32 %v363, %v369
    %v372 = vmul.f32 %v370, 1.442695
    %v373 = vpow.pop %v372
    %v374 = vmul.f32 %v371, 1.442695
    %v375 = vpow.pop %v374
    %v376 = vsel %vm163, %v373, 0.0
    %377 = vadd.xlane.f32.xlu0 %v376
    %v378 = vpop.xlane.xlu0 %377
    %v379 = vsel %vm163, %v375, 0.0
    %380 = vadd.xlane.f32.xlu0 %v379
    %v381 = vpop.xlane.xlu0 %380
    %v382 = vrcp.pop %v378
    %v383 = vrcp.pop %v381
    %v384 = vmul.f32 %v373, %v382
    %v385 = vmul.f32 %v375, %v383
    %386 = vrot.lane.b32.xlu0 %v116, 48
    %v387 = vpop.permute.xlu0 %386
    %388 = vrot.lane.b32.xlu0 %v119, 48
    %v389 = vpop.permute.xlu0 %388
    %v393 = vsel %vm163, %v384, 0
    %v396 = vsel %vm163, %v385, 0
    %398 = vmatpush.msra.mxu0 0.0
    %399 = vmatpush.msra.mxu0 0.0
    %400 = vmatpush.msra.mxu0 0.0
    %401 = vmatpush.msra.mxu0 0.0
    %402 = vmatpush.msra.mxu0 0.0
    %403 = vmatpush.msra.mxu0 0.0
    %404 = vmatpush.msra.mxu0 0.0
    %405 = vmatpush.msra.mxu0 0.0
    %406 = vmatpush.msra.mxu0 0.0
    %407 = vmatpush.msra.mxu0 0.0
    %408 = vmatpush.msra.mxu0 0.0
    %409 = vmatpush.msra.mxu0 0.0
    %410 = vmatpush.msra.mxu0 0.0
    %411 = vmatpush.msra.mxu0 0.0
    %412 = vmatpush.msra.mxu0 %v389
    %413 = vmatpush.msra.mxu0 %v387
    %414 = vmatmul.f32.gmra.mxu0 %v393
    %v415 = vpop.f32.mrf.mxu0
    %v416 = vadd.f32 0.0, %v415
    %417 = vmatmul.f32.gmra.mxu0 %v396
    %v418 = vpop.f32.mrf.mxu0
    %v419 = vadd.f32 0.0, %v418
    %420 = vdwg.mxu0
    %421 = vrot.lane.b32.xlu0 %v116, 104
    %v422 = vpop.permute.xlu0 %421
    %423 = vrot.lane.b32.xlu0 %v119, 104
    %v424 = vpop.permute.xlu0 %423
    %425 = vrot.lane.b32.xlu0 %v116, 72
    %v426 = vpop.permute.xlu0 %425
    %427 = vrot.lane.b32.xlu0 %v119, 72
    %v428 = vpop.permute.xlu0 %427
    %v429 = vsel %vm127, %v422, 0
    %v431 = vsel %vm127, %v424, 0
    %v433 = vsel %vm127, %v426, 0
    %v435 = vsel %vm127, %v428, 0
    %437 = vmatpush.xpose.msra.mxu0 0.0
    %438 = vmatpush.xpose.msra.mxu0 0.0
    %439 = vmatpush.xpose.msra.mxu0 0.0
    %440 = vmatpush.xpose.msra.mxu0 0.0
    %441 = vmatpush.xpose.msra.mxu0 0.0
    %442 = vmatpush.xpose.msra.mxu0 0.0
    %443 = vmatpush.xpose.msra.mxu0 0.0
    %444 = vmatpush.xpose.msra.mxu0 0.0
    %445 = vmatpush.xpose.msra.mxu0 0.0
    %446 = vmatpush.xpose.msra.mxu0 0.0
    %447 = vmatpush.xpose.msra.mxu0 0.0
    %448 = vmatpush.xpose.msra.mxu0 0.0
    %449 = vmatpush.xpose.msra.mxu0 0.0
    %450 = vmatpush.xpose.msra.mxu0 0.0
    %451 = vmatpush.xpose.msra.mxu0 %v435
    %452 = vmatpush.xpose.msra.mxu0 %v433
    %453 = vmatmul.f32.gmra.mxu0 %v429
    %v454 = vpop.f32.mrf.mxu0
    %v455 = vadd.f32 0.0, %v454
    %456 = vmatmul.f32.gmra.mxu0 %v431
    %v457 = vpop.f32.mrf.mxu0
    %v458 = vadd.f32 0.0, %v457
    %459 = vdwg.mxu0
    %v460 = vmul.f32 %v455, 0.35355338
    %v461 = vmul.f32 %v458, 0.35355338
    %v462 = vadd.f32 %v460, %v74
    %v463 = vadd.f32 %v461, %v75
    %v464 = vsel %vm163, %v462, -inf
    %465 = vmax.xlane.f32.xlu0 %v464
    %v466 = vpop.xlane.xlu0 %465
    %v467 = vsel %vm163, %v463, -inf
    %468 = vmax.xlane.f32.xlu0 %v467
    %v469 = vpop.xlane.xlu0 %468
    %v470 = vsub.f32 %v462, %v466
    %v471 = vsub.f32 %v463, %v469
    %v472 = vmul.f32 %v470, 1.442695
    %v473 = vpow.pop %v472
    %v474 = vmul.f32 %v471, 1.442695
    %v475 = vpow.pop %v474
    %v476 = vsel %vm163, %v473, 0.0
    %477 = vadd.xlane.f32.xlu0 %v476
    %v478 = vpop.xlane.xlu0 %477
    %v479 = vsel %vm163, %v475, 0.0
    %480 = vadd.xlane.f32.xlu0 %v479
    %v481 = vpop.xlane.xlu0 %480
    %v482 = vrcp.pop %v478
    %v483 = vrcp.pop %v481
    %v484 = vmul.f32 %v473, %v482
    %v485 = vmul.f32 %v475, %v483
    %486 = vrot.lane.b32.xlu0 %v116, 40
    %v487 = vpop.permute.xlu0 %486
    %488 = vrot.lane.b32.xlu0 %v119, 40
    %v489 = vpop.permute.xlu0 %488
    %v493 = vsel %vm163, %v484, 0
    %v496 = vsel %vm163, %v485, 0
    %498 = vmatpush.msra.mxu0 0.0
    %499 = vmatpush.msra.mxu0 0.0
    %500 = vmatpush.msra.mxu0 0.0
    %501 = vmatpush.msra.mxu0 0.0
    %502 = vmatpush.msra.mxu0 0.0
    %503 = vmatpush.msra.mxu0 0.0
    %504 = vmatpush.msra.mxu0 0.0
    %505 = vmatpush.msra.mxu0 0.0
    %506 = vmatpush.msra.mxu0 0.0
    %507 = vmatpush.msra.mxu0 0.0
    %508 = vmatpush.msra.mxu0 0.0
    %509 = vmatpush.msra.mxu0 0.0
    %510 = vmatpush.msra.mxu0 0.0
    %511 = vmatpush.msra.mxu0 0.0
    %512 = vmatpush.msra.mxu0 %v489
    %513 = vmatpush.msra.mxu0 %v487
    %514 = vmatmul.f32.gmra.mxu0 %v493
    %v515 = vpop.f32.mrf.mxu0
    %v516 = vadd.f32 0.0, %v515
    %517 = vmatmul.f32.gmra.mxu0 %v496
    %v518 = vpop.f32.mrf.mxu0
    %v519 = vadd.f32 0.0, %v518
    %520 = vdwg.mxu0
    %523 = vrot.lane.b32.xlu0 %v316, 8
    %v524 = vpop.permute.xlu0 %523
    %525 = vrot.lane.b32.xlu0 %v319, 8
    %v526 = vpop.permute.xlu0 %525
    %531 = vrot.lane.b32.xlu0 %v416, 16
    %v532 = vpop.permute.xlu0 %531
    %533 = vrot.lane.b32.xlu0 %v419, 16
    %v534 = vpop.permute.xlu0 %533
    %539 = vrot.lane.b32.xlu0 %v516, 24
    %v540 = vpop.permute.xlu0 %539
    %541 = vrot.lane.b32.xlu0 %v519, 24
    %v542 = vpop.permute.xlu0 %541
    %v545 = vsel %vm127, %v216, %v524
    %v546 = vsel %vm127, %v219, %v526
    %v547 = vsel %vm163, %v545, %v532
    %v548 = vsel %vm163, %v546, %v534
    %vm549 = vcmask 195584
    %v550 = vsel %vm549, %v547, %v540
    %v551 = vsel %vm549, %v548, %v542
    %v553 = vperm.slane %v87, 0
    %v556 = vsel %vm91, %v550, 0
    %v559 = vsel %vm91, %v551, 0
    %561 = vmatpush.msra.mxu0 0.0
    %562 = vmatpush.msra.mxu0 0.0
    %563 = vmatpush.msra.mxu0 0.0
    %564 = vmatpush.msra.mxu0 0.0
    %565 = vmatpush.msra.mxu0 0.0
    %566 = vmatpush.msra.mxu0 0.0
    %567 = vmatpush.msra.mxu0 0.0
    %568 = vmatpush.msra.mxu0 0.0
    %569 = vmatpush.msra.mxu0 0.0
    %570 = vmatpush.msra.mxu0 0.0
    %571 = vmatpush.msra.mxu0 0.0
    %572 = vmatpush.msra.mxu0 0.0
    %573 = vmatpush.msra.mxu0 %v86
    %574 = vmatpush.msra.mxu0 %v85
    %575 = vmatpush.msra.mxu0 %v84
    %576 = vmatpush.msra.mxu0 %v83
    %577 = vmatmul.f32.gmra.mxu0 %v556
    %v578 = vpop.f32.mrf.mxu0
    %v579 = vadd.f32 %v553, %v578
    %580 = vmatmul.f32.gmra.mxu0 %v559
    %v581 = vpop.f32.mrf.mxu0
    %v582 = vadd.f32 %v553, %v581
    %583 = vdwg.mxu0
    %v584 = vadd.f32 %v72, %v579
    %v585 = vadd.f32 %v73, %v582
    %v586 = vld [vmem:[%s16] sm:$0x1]
    %v587 = vld [vmem:[%s17] sm:$0x1]
    %v588 = vsel %vm91, %v584, 0.0
    %589 = vadd.xlane.f32.xlu0 %v588
    %v590 = vpop.xlane.xlu0 %589
    %v591 = vsel %vm91, %v585, 0.0
    %592 = vadd.xlane.f32.xlu0 %v591
    %v593 = vpop.xlane.xlu0 %592
    %v594 = vrcp.pop 32.0
    %v595 = vmul.f32 32.0, %v594
    %v596 = vsub.f32 1.0, %v595
    %v597 = vmul.f32 %v594, %v596
    %v598 = vadd.f32 %v594, %v597
    %vm599 = vweird.f32 %v594
    %v600 = vsel %vm599, %v594, %v598
    %v601 = vmul.f32 %v590, %v600
    %v602 = vmul.f32 %v593, %v600
    %v603 = vsub.f32 %v584, %v601
    %v604 = vsub.f32 %v585, %v602
    %v605 = vmul.f32 %v603, %v603
    %v606 = vmul.f32 %v604, %v604
    %v607 = vsel %vm91, %v605, 0.0
    %608 = vadd.xlane.f32.xlu0 %v607
    %v609 = vpop.xlane.xlu0 %608
    %v610 = vsel %vm91, %v606, 0.0
    %611 = vadd.xlane.f32.xlu0 %v610
    %v612 = vpop.xlane.xlu0 %611
    %v613 = vmul.f32 %v609, %v600
    %v614 = vmul.f32 %v612, %v600
    %v615 = vadd.f32 %v613, 1e-05
    %v616 = vadd.f32 %v614, 1e-05
    %v617 = vrsqrt.pop %v615
    %v618 = vmul.f32 %v617, %v615
    %v619 = vmul.f32 %v618, %v617
    %v620 = vmul.f32 0.5, %v619
    %v621 = vsub.f32 1.5, %v620
    %v622 = vmul.f32 %v617, %v621
    %vm623 = vweird.f32 %v615
    %vm624 = vweird.f32 %v617
    %vm625 = vmor %vm623, %vm624
    %v626 = vsel %vm625, %v617, %v622
    %v627 = vrsqrt.pop %v616
    %v628 = vmul.f32 %v627, %v616
    %v629 = vmul.f32 %v628, %v627
    %v630 = vmul.f32 0.5, %v629
    %v631 = vsub.f32 1.5, %v630
    %v632 = vmul.f32 %v627, %v631
    %vm633 = vweird.f32 %v616
    %vm634 = vweird.f32 %v627
    %vm635 = vmor %vm633, %vm634
    %v636 = vsel %vm635, %v627, %v632
    %v637 = vmul.f32 %v603, %v626
    %v638 = vmul.f32 %v604, %v636
    %v640 = vperm.slane %v586, 0
    %v642 = vmul.f32 %v637, %v640
    %v643 = vmul.f32 %v638, %v640
    %v645 = vperm.slane %v587, 0
    %v647 = vadd.f32 %v642, %v645
    %v648 = vadd.f32 %v643, %v645
    %v649 = vld [vmem:[%s8] sm:$0xff]
    %v650 = vld [vmem:[%s8 + $0x8] sm:$0xff]
    %v651 = vld [vmem:[%s8 + $0x10] sm:$0xff]
    %v652 = vld [vmem:[%s8 + $0x18] sm:$0xff]
    %v653 = vld [vmem:[%s9] sm:$0x1]
    %v654 = vld [vmem:[%s10] sm:$0xff]
    %v655 = vld [vmem:[%s10 + $0x8] sm:$0xff]
    %v656 = vld [vmem:[%s10 + $0x10] sm:$0xff]
    %v657 = vld [vmem:[%s10 + $0x18] sm:$0xff]
    %v658 = vld [vmem:[%s11] sm:$0x1]
    %v660 = vperm.slane %v653, 0
    %v663 = vsel %vm91, %v647, 0
    %v666 = vsel %vm91, %v648, 0
    %668 = vmatpush.msra.mxu0 0.0
    %669 = vmatpush.msra.mxu0 0.0
    %670 = vmatpush.msra.mxu0 0.0
    %671 = vmatpush.msra.mxu0 0.0
    %672 = vmatpush.msra.mxu0 0.0
    %673 = vmatpush.msra.mxu0 0.0
    %674 = vmatpush.msra.mxu0 0.0
    %675 = vmatpush.msra.mxu0 0.0
    %676 = vmatpush.msra.mxu0 0.0
    %677 = vmatpush.msra.mxu0 0.0
    %678 = vmatpush.msra.mxu0 0.0
    %679 = vmatpush.msra.mxu0 0.0
    %680 = vmatpush.msra.mxu0 %v652
    %681 = vmatpush.msra.mxu0 %v651
    %682 = vmatpush.msra.mxu0 %v650
    %683 = vmatpush.msra.mxu0 %v649
    %684 = vmatmul.f32.gmra.mxu0 %v663
    %v685 = vpop.f32.mrf.mxu0
    %v686 = vadd.f32 %v660, %v685
    %687 = vmatmul.f32.gmra.mxu0 %v666
    %v688 = vpop.f32.mrf.mxu0
    %v689 = vadd.f32 %v660, %v688
    %690 = vdwg.mxu0
    %695 = vrot.lane.b32.xlu0 %v649, 96
    %v696 = vpop.permute.xlu0 %695
    %697 = vrot.lane.b32.xlu0 %v650, 96
    %v698 = vpop.permute.xlu0 %697
    %699 = vrot.lane.b32.xlu0 %v651, 96
    %v700 = vpop.permute.xlu0 %699
    %701 = vrot.lane.b32.xlu0 %v652, 96
    %v702 = vpop.permute.xlu0 %701
    %707 = vrot.lane.b32.xlu0 %v660, 96
    %v708 = vpop.permute.xlu0 %707
    %710 = vmatpush.msra.mxu0 0.0
    %711 = vmatpush.msra.mxu0 0.0
    %712 = vmatpush.msra.mxu0 0.0
    %713 = vmatpush.msra.mxu0 0.0
    %714 = vmatpush.msra.mxu0 0.0
    %715 = vmatpush.msra.mxu0 0.0
    %716 = vmatpush.msra.mxu0 0.0
    %717 = vmatpush.msra.mxu0 0.0
    %718 = vmatpush.msra.mxu0 0.0
    %719 = vmatpush.msra.mxu0 0.0
    %720 = vmatpush.msra.mxu0 0.0
    %721 = vmatpush.msra.mxu0 0.0
    %722 = vmatpush.msra.mxu0 %v702
    %723 = vmatpush.msra.mxu0 %v700
    %724 = vmatpush.msra.mxu0 %v698
    %725 = vmatpush.msra.mxu0 %v696
    %726 = vmatmul.f32.gmra.mxu0 %v93
    %v727 = vpop.f32.mrf.mxu0
    %v728 = vadd.f32 %v708, %v727
    %729 = vmatmul.f32.gmra.mxu0 %v96
    %v730 = vpop.f32.mrf.mxu0
    %v731 = vadd.f32 %v708, %v730
    %732 = vdwg.mxu0
    %v734 = vsel %vm127, %v686, 0
    %v737 = vsel %vm127, %v689, 0
    %v740 = vsel %vm127, %v728, 0
    %v743 = vsel %vm127, %v731, 0
    %745 = vmatpush.xpose.msra.mxu0 0.0
    %746 = vmatpush.xpose.msra.mxu0 0.0
    %747 = vmatpush.xpose.msra.mxu0 0.0
    %748 = vmatpush.xpose.msra.mxu0 0.0
    %749 = vmatpush.xpose.msra.mxu0 0.0
    %750 = vmatpush.xpose.msra.mxu0 0.0
    %751 = vmatpush.xpose.msra.mxu0 0.0
    %752 = vmatpush.xpose.msra.mxu0 0.0
    %753 = vmatpush.xpose.msra.mxu0 0.0
    %754 = vmatpush.xpose.msra.mxu0 0.0
    %755 = vmatpush.xpose.msra.mxu0 0.0
    %756 = vmatpush.xpose.msra.mxu0 0.0
    %757 = vmatpush.xpose.msra.mxu0 0.0
    %758 = vmatpush.xpose.msra.mxu0 0.0
    %759 = vmatpush.xpose.msra.mxu0 %v743
    %760 = vmatpush.xpose.msra.mxu0 %v740
    %761 = vmatmul.f32.gmra.mxu0 %v734
    %v762 = vpop.f32.mrf.mxu0
    %v763 = vadd.f32 0.0, %v762
    %764 = vmatmul.f32.gmra.mxu0 %v737
    %v765 = vpop.f32.mrf.mxu0
    %v766 = vadd.f32 0.0, %v765
    %767 = vdwg.mxu0
    %v768 = vmul.f32 %v763, 0.35355338
    %v769 = vmul.f32 %v766, 0.35355338
    %v770 = vadd.f32 %v768, %v76
    %v771 = vadd.f32 %v769, %v77
    %v772 = vsel %vm163, %v770, -inf
    %773 = vmax.xlane.f32.xlu0 %v772
    %v774 = vpop.xlane.xlu0 %773
    %v775 = vsel %vm163, %v771, -inf
    %776 = vmax.xlane.f32.xlu0 %v775
    %v777 = vpop.xlane.xlu0 %776
    %v778 = vsub.f32 %v770, %v774
    %v779 = vsub.f32 %v771, %v777
    %v780 = vmul.f32 %v778, 1.442695
    %v781 = vpow.pop %v780
    %v782 = vmul.f32 %v779, 1.442695
    %v783 = vpow.pop %v782
    %v784 = vsel %vm163, %v781, 0.0
    %785 = vadd.xlane.f32.xlu0 %v784
    %v786 = vpop.xlane.xlu0 %785
    %v787 = vsel %vm163, %v783, 0.0
    %788 = vadd.xlane.f32.xlu0 %v787
    %v789 = vpop.xlane.xlu0 %788
    %v790 = vrcp.pop %v786
    %v791 = vrcp.pop %v789
    %v792 = vmul.f32 %v781, %v790
    %v793 = vmul.f32 %v783, %v791
    %794 = vrot.lane.b32.xlu0 %v728, 96
    %v795 = vpop.permute.xlu0 %794
    %796 = vrot.lane.b32.xlu0 %v731, 96
    %v797 = vpop.permute.xlu0 %796
    %v801 = vsel %vm163, %v792, 0
    %v804 = vsel %vm163, %v793, 0
    %806 = vmatpush.msra.mxu0 0.0
    %807 = vmatpush.msra.mxu0 0.0
    %808 = vmatpush.msra.mxu0 0.0
    %809 = vmatpush.msra.mxu0 0.0
    %810 = vmatpush.msra.mxu0 0.0
    %811 = vmatpush.msra.mxu0 0.0
    %812 = vmatpush.msra.mxu0 0.0
    %813 = vmatpush.msra.mxu0 0.0
    %814 = vmatpush.msra.mxu0 0.0
    %815 = vmatpush.msra.mxu0 0.0
    %816 = vmatpush.msra.mxu0 0.0
    %817 = vmatpush.msra.mxu0 0.0
    %818 = vmatpush.msra.mxu0 0.0
    %819 = vmatpush.msra.mxu0 0.0
    %820 = vmatpush.msra.mxu0 %v797
    %821 = vmatpush.msra.mxu0 %v795
    %822 = vmatmul.f32.gmra.mxu0 %v801
    %v823 = vpop.f32.mrf.mxu0
    %v824 = vadd.f32 0.0, %v823
    %825 = vmatmul.f32.gmra.mxu0 %v804
    %v826 = vpop.f32.mrf.mxu0
    %v827 = vadd.f32 0.0, %v826
    %828 = vdwg.mxu0
    %829 = vrot.lane.b32.xlu0 %v686, 120
    %v830 = vpop.permute.xlu0 %829
    %831 = vrot.lane.b32.xlu0 %v689, 120
    %v832 = vpop.permute.xlu0 %831
    %833 = vrot.lane.b32.xlu0 %v728, 120
    %v834 = vpop.permute.xlu0 %833
    %835 = vrot.lane.b32.xlu0 %v731, 120
    %v836 = vpop.permute.xlu0 %835
    %v837 = vsel %vm127, %v830, 0
    %v839 = vsel %vm127, %v832, 0
    %v841 = vsel %vm127, %v834, 0
    %v843 = vsel %vm127, %v836, 0
    %845 = vmatpush.xpose.msra.mxu0 0.0
    %846 = vmatpush.xpose.msra.mxu0 0.0
    %847 = vmatpush.xpose.msra.mxu0 0.0
    %848 = vmatpush.xpose.msra.mxu0 0.0
    %849 = vmatpush.xpose.msra.mxu0 0.0
    %850 = vmatpush.xpose.msra.mxu0 0.0
    %851 = vmatpush.xpose.msra.mxu0 0.0
    %852 = vmatpush.xpose.msra.mxu0 0.0
    %853 = vmatpush.xpose.msra.mxu0 0.0
    %854 = vmatpush.xpose.msra.mxu0 0.0
    %855 = vmatpush.xpose.msra.mxu0 0.0
    %856 = vmatpush.xpose.msra.mxu0 0.0
    %857 = vmatpush.xpose.msra.mxu0 0.0
    %858 = vmatpush.xpose.msra.mxu0 0.0
    %859 = vmatpush.xpose.msra.mxu0 %v843
    %860 = vmatpush.xpose.msra.mxu0 %v841
    %861 = vmatmul.f32.gmra.mxu0 %v837
    %v862 = vpop.f32.mrf.mxu0
    %v863 = vadd.f32 0.0, %v862
    %864 = vmatmul.f32.gmra.mxu0 %v839
    %v865 = vpop.f32.mrf.mxu0
    %v866 = vadd.f32 0.0, %v865
    %867 = vdwg.mxu0
    %v868 = vmul.f32 %v863, 0.35355338
    %v869 = vmul.f32 %v866, 0.35355338
    %v870 = vadd.f32 %v868, %v76
    %v871 = vadd.f32 %v869, %v77
    %v872 = vsel %vm163, %v870, -inf
    %873 = vmax.xlane.f32.xlu0 %v872
    %v874 = vpop.xlane.xlu0 %873
    %v875 = vsel %vm163, %v871, -inf
    %876 = vmax.xlane.f32.xlu0 %v875
    %v877 = vpop.xlane.xlu0 %876
    %v878 = vsub.f32 %v870, %v874
    %v879 = vsub.f32 %v871, %v877
    %v880 = vmul.f32 %v878, 1.442695
    %v881 = vpow.pop %v880
    %v882 = vmul.f32 %v879, 1.442695
    %v883 = vpow.pop %v882
    %v884 = vsel %vm163, %v881, 0.0
    %885 = vadd.xlane.f32.xlu0 %v884
    %v886 = vpop.xlane.xlu0 %885
    %v887 = vsel %vm163, %v883, 0.0
    %888 = vadd.xlane.f32.xlu0 %v887
    %v889 = vpop.xlane.xlu0 %888
    %v890 = vrcp.pop %v886
    %v891 = vrcp.pop %v889
    %v892 = vmul.f32 %v881, %v890
    %v893 = vmul.f32 %v883, %v891
    %894 = vrot.lane.b32.xlu0 %v728, 88
    %v895 = vpop.permute.xlu0 %894
    %896 = vrot.lane.b32.xlu0 %v731, 88
    %v897 = vpop.permute.xlu0 %896
    %v901 = vsel %vm163, %v892, 0
    %v904 = vsel %vm163, %v893, 0
    %906 = vmatpush.msra.mxu0 0.0
    %907 = vmatpush.msra.mxu0 0.0
    %908 = vmatpush.msra.mxu0 0.0
    %909 = vmatpush.msra.mxu0 0.0
    %910 = vmatpush.msra.mxu0 0.0
    %911 = vmatpush.msra.mxu0 0.0
    %912 = vmatpush.msra.mxu0 0.0
    %913 = vmatpush.msra.mxu0 0.0
    %914 = vmatpush.msra.mxu0 0.0
    %915 = vmatpush.msra.mxu0 0.0
    %916 = vmatpush.msra.mxu0 0.0
    %917 = vmatpush.msra.mxu0 0.0
    %918 = vmatpush.msra.mxu0 0.0
    %919 = vmatpush.msra.mxu0 0.0
    %920 = vmatpush.msra.mxu0 %v897
    %921 = vmatpush.msra.mxu0 %v895
    %922 = vmatmul.f32.gmra.mxu0 %v901
    %v923 = vpop.f32.mrf.mxu0
    %v924 = vadd.f32 0.0, %v923
    %925 = vmatmul.f32.gmra.mxu0 %v904
    %v926 = vpop.f32.mrf.mxu0
    %v927 = vadd.f32 0.0, %v926
    %928 = vdwg.mxu0
    %929 = vrot.lane.b32.xlu0 %v686, 112
    %v930 = vpop.permute.xlu0 %929
    %931 = vrot.lane.b32.xlu0 %v689, 112
    %v932 = vpop.permute.xlu0 %931
    %933 = vrot.lane.b32.xlu0 %v728, 112
    %v934 = vpop.permute.xlu0 %933
    %935 = vrot.lane.b32.xlu0 %v731, 112
    %v936 = vpop.permute.xlu0 %935
    %v937 = vsel %vm127, %v930, 0
    %v939 = vsel %vm127, %v932, 0
    %v941 = vsel %vm127, %v934, 0
    %v943 = vsel %vm127, %v936, 0
    %945 = vmatpush.xpose.msra.mxu0 0.0
    %946 = vmatpush.xpose.msra.mxu0 0.0
    %947 = vmatpush.xpose.msra.mxu0 0.0
    %948 = vmatpush.xpose.msra.mxu0 0.0
    %949 = vmatpush.xpose.msra.mxu0 0.0
    %950 = vmatpush.xpose.msra.mxu0 0.0
    %951 = vmatpush.xpose.msra.mxu0 0.0
    %952 = vmatpush.xpose.msra.mxu0 0.0
    %953 = vmatpush.xpose.msra.mxu0 0.0
    %954 = vmatpush.xpose.msra.mxu0 0.0
    %955 = vmatpush.xpose.msra.mxu0 0.0
    %956 = vmatpush.xpose.msra.mxu0 0.0
    %957 = vmatpush.xpose.msra.mxu0 0.0
    %958 = vmatpush.xpose.msra.mxu0 0.0
    %959 = vmatpush.xpose.msra.mxu0 %v943
    %960 = vmatpush.xpose.msra.mxu0 %v941
    %961 = vmatmul.f32.gmra.mxu0 %v937
    %v962 = vpop.f32.mrf.mxu0
    %v963 = vadd.f32 0.0, %v962
    %964 = vmatmul.f32.gmra.mxu0 %v939
    %v965 = vpop.f32.mrf.mxu0
    %v966 = vadd.f32 0.0, %v965
    %967 = vdwg.mxu0
    %v968 = vmul.f32 %v963, 0.35355338
    %v969 = vmul.f32 %v966, 0.35355338
    %v970 = vadd.f32 %v968, %v76
    %v971 = vadd.f32 %v969, %v77
    %v972 = vsel %vm163, %v970, -inf
    %973 = vmax.xlane.f32.xlu0 %v972
    %v974 = vpop.xlane.xlu0 %973
    %v975 = vsel %vm163, %v971, -inf
    %976 = vmax.xlane.f32.xlu0 %v975
    %v977 = vpop.xlane.xlu0 %976
    %v978 = vsub.f32 %v970, %v974
    %v979 = vsub.f32 %v971, %v977
    %v980 = vmul.f32 %v978, 1.442695
    %v981 = vpow.pop %v980
    %v982 = vmul.f32 %v979, 1.442695
    %v983 = vpow.pop %v982
    %v984 = vsel %vm163, %v981, 0.0
    %985 = vadd.xlane.f32.xlu0 %v984
    %v986 = vpop.xlane.xlu0 %985
    %v987 = vsel %vm163, %v983, 0.0
    %988 = vadd.xlane.f32.xlu0 %v987
    %v989 = vpop.xlane.xlu0 %988
    %v990 = vrcp.pop %v986
    %v991 = vrcp.pop %v989
    %v992 = vmul.f32 %v981, %v990
    %v993 = vmul.f32 %v983, %v991
    %994 = vrot.lane.b32.xlu0 %v728, 80
    %v995 = vpop.permute.xlu0 %994
    %996 = vrot.lane.b32.xlu0 %v731, 80
    %v997 = vpop.permute.xlu0 %996
    %v1001 = vsel %vm163, %v992, 0
    %v1004 = vsel %vm163, %v993, 0
    %1006 = vmatpush.msra.mxu0 0.0
    %1007 = vmatpush.msra.mxu0 0.0
    %1008 = vmatpush.msra.mxu0 0.0
    %1009 = vmatpush.msra.mxu0 0.0
    %1010 = vmatpush.msra.mxu0 0.0
    %1011 = vmatpush.msra.mxu0 0.0
    %1012 = vmatpush.msra.mxu0 0.0
    %1013 = vmatpush.msra.mxu0 0.0
    %1014 = vmatpush.msra.mxu0 0.0
    %1015 = vmatpush.msra.mxu0 0.0
    %1016 = vmatpush.msra.mxu0 0.0
    %1017 = vmatpush.msra.mxu0 0.0
    %1018 = vmatpush.msra.mxu0 0.0
    %1019 = vmatpush.msra.mxu0 0.0
    %1020 = vmatpush.msra.mxu0 %v997
    %1021 = vmatpush.msra.mxu0 %v995
    %1022 = vmatmul.f32.gmra.mxu0 %v1001
    %v1023 = vpop.f32.mrf.mxu0
    %v1024 = vadd.f32 0.0, %v1023
    %1025 = vmatmul.f32.gmra.mxu0 %v1004
    %v1026 = vpop.f32.mrf.mxu0
    %v1027 = vadd.f32 0.0, %v1026
    %1028 = vdwg.mxu0
    %1029 = vrot.lane.b32.xlu0 %v686, 104
    %v1030 = vpop.permute.xlu0 %1029
    %1031 = vrot.lane.b32.xlu0 %v689, 104
    %v1032 = vpop.permute.xlu0 %1031
    %1033 = vrot.lane.b32.xlu0 %v728, 104
    %v1034 = vpop.permute.xlu0 %1033
    %1035 = vrot.lane.b32.xlu0 %v731, 104
    %v1036 = vpop.permute.xlu0 %1035
    %v1037 = vsel %vm127, %v1030, 0
    %v1039 = vsel %vm127, %v1032, 0
    %v1041 = vsel %vm127, %v1034, 0
    %v1043 = vsel %vm127, %v1036, 0
    %1045 = vmatpush.xpose.msra.mxu0 0.0
    %1046 = vmatpush.xpose.msra.mxu0 0.0
    %1047 = vmatpush.xpose.msra.mxu0 0.0
    %1048 = vmatpush.xpose.msra.mxu0 0.0
    %1049 = vmatpush.xpose.msra.mxu0 0.0
    %1050 = vmatpush.xpose.msra.mxu0 0.0
    %1051 = vmatpush.xpose.msra.mxu0 0.0
    %1052 = vmatpush.xpose.msra.mxu0 0.0
    %1053 = vmatpush.xpose.msra.mxu0 0.0
    %1054 = vmatpush.xpose.msra.mxu0 0.0
    %1055 = vmatpush.xpose.msra.mxu0 0.0
    %1056 = vmatpush.xpose.msra.mxu0 0.0
    %1057 = vmatpush.xpose.msra.mxu0 0.0
    %1058 = vmatpush.xpose.msra.mxu0 0.0
    %1059 = vmatpush.xpose.msra.mxu0 %v1043
    %1060 = vmatpush.xpose.msra.mxu0 %v1041
    %1061 = vmatmul.f32.gmra.mxu0 %v1037
    %v1062 = vpop.f32.mrf.mxu0
    %v1063 = vadd.f32 0.0, %v1062
    %1064 = vmatmul.f32.gmra.mxu0 %v1039
    %v1065 = vpop.f32.mrf.mxu0
    %v1066 = vadd.f32 0.0, %v1065
    %1067 = vdwg.mxu0
    %v1068 = vmul.f32 %v1063, 0.35355338
    %v1069 = vmul.f32 %v1066, 0.35355338
    %v1070 = vadd.f32 %v1068, %v76
    %v1071 = vadd.f32 %v1069, %v77
    %v1072 = vsel %vm163, %v1070, -inf
    %1073 = vmax.xlane.f32.xlu0 %v1072
    %v1074 = vpop.xlane.xlu0 %1073
    %v1075 = vsel %vm163, %v1071, -inf
    %1076 = vmax.xlane.f32.xlu0 %v1075
    %v1077 = vpop.xlane.xlu0 %1076
    %v1078 = vsub.f32 %v1070, %v1074
    %v1079 = vsub.f32 %v1071, %v1077
    %v1080 = vmul.f32 %v1078, 1.442695
    %v1081 = vpow.pop %v1080
    %v1082 = vmul.f32 %v1079, 1.442695
    %v1083 = vpow.pop %v1082
    %v1084 = vsel %vm163, %v1081, 0.0
    %1085 = vadd.xlane.f32.xlu0 %v1084
    %v1086 = vpop.xlane.xlu0 %1085
    %v1087 = vsel %vm163, %v1083, 0.0
    %1088 = vadd.xlane.f32.xlu0 %v1087
    %v1089 = vpop.xlane.xlu0 %1088
    %v1090 = vrcp.pop %v1086
    %v1091 = vrcp.pop %v1089
    %v1092 = vmul.f32 %v1081, %v1090
    %v1093 = vmul.f32 %v1083, %v1091
    %1094 = vrot.lane.b32.xlu0 %v728, 72
    %v1095 = vpop.permute.xlu0 %1094
    %1096 = vrot.lane.b32.xlu0 %v731, 72
    %v1097 = vpop.permute.xlu0 %1096
    %v1101 = vsel %vm163, %v1092, 0
    %v1104 = vsel %vm163, %v1093, 0
    %1106 = vmatpush.msra.mxu0 0.0
    %1107 = vmatpush.msra.mxu0 0.0
    %1108 = vmatpush.msra.mxu0 0.0
    %1109 = vmatpush.msra.mxu0 0.0
    %1110 = vmatpush.msra.mxu0 0.0
    %1111 = vmatpush.msra.mxu0 0.0
    %1112 = vmatpush.msra.mxu0 0.0
    %1113 = vmatpush.msra.mxu0 0.0
    %1114 = vmatpush.msra.mxu0 0.0
    %1115 = vmatpush.msra.mxu0 0.0
    %1116 = vmatpush.msra.mxu0 0.0
    %1117 = vmatpush.msra.mxu0 0.0
    %1118 = vmatpush.msra.mxu0 0.0
    %1119 = vmatpush.msra.mxu0 0.0
    %1120 = vmatpush.msra.mxu0 %v1097
    %1121 = vmatpush.msra.mxu0 %v1095
    %1122 = vmatmul.f32.gmra.mxu0 %v1101
    %v1123 = vpop.f32.mrf.mxu0
    %v1124 = vadd.f32 0.0, %v1123
    %1125 = vmatmul.f32.gmra.mxu0 %v1104
    %v1126 = vpop.f32.mrf.mxu0
    %v1127 = vadd.f32 0.0, %v1126
    %1128 = vdwg.mxu0
    %1131 = vrot.lane.b32.xlu0 %v924, 8
    %v1132 = vpop.permute.xlu0 %1131
    %1133 = vrot.lane.b32.xlu0 %v927, 8
    %v1134 = vpop.permute.xlu0 %1133
    %1139 = vrot.lane.b32.xlu0 %v1024, 16
    %v1140 = vpop.permute.xlu0 %1139
    %1141 = vrot.lane.b32.xlu0 %v1027, 16
    %v1142 = vpop.permute.xlu0 %1141
    %1147 = vrot.lane.b32.xlu0 %v1124, 24
    %v1148 = vpop.permute.xlu0 %1147
    %1149 = vrot.lane.b32.xlu0 %v1127, 24
    %v1150 = vpop.permute.xlu0 %1149
    %v1153 = vsel %vm127, %v824, %v1132
    %v1154 = vsel %vm127, %v827, %v1134
    %v1155 = vsel %vm163, %v1153, %v1140
    %v1156 = vsel %vm163, %v1154, %v1142
    %v1157 = vsel %vm549, %v1155, %v1148
    %v1158 = vsel %vm549, %v1156, %v1150
    %v1160 = vperm.slane %v658, 0
    %v1163 = vsel %vm91, %v1157, 0
    %v1166 = vsel %vm91, %v1158, 0
    %1168 = vmatpush.msra.mxu0 0.0
    %1169 = vmatpush.msra.mxu0 0.0
    %1170 = vmatpush.msra.mxu0 0.0
    %1171 = vmatpush.msra.mxu0 0.0
    %1172 = vmatpush.msra.mxu0 0.0
    %1173 = vmatpush.msra.mxu0 0.0
    %1174 = vmatpush.msra.mxu0 0.0
    %1175 = vmatpush.msra.mxu0 0.0
    %1176 = vmatpush.msra.mxu0 0.0
    %1177 = vmatpush.msra.mxu0 0.0
    %1178 = vmatpush.msra.mxu0 0.0
    %1179 = vmatpush.msra.mxu0 0.0
    %1180 = vmatpush.msra.mxu0 %v657
    %1181 = vmatpush.msra.mxu0 %v656
    %1182 = vmatpush.msra.mxu0 %v655
    %1183 = vmatpush.msra.mxu0 %v654
    %1184 = vmatmul.f32.gmra.mxu0 %v1163
    %v1185 = vpop.f32.mrf.mxu0
    %v1186 = vadd.f32 %v1160, %v1185
    %1187 = vmatmul.f32.gmra.mxu0 %v1166
    %v1188 = vpop.f32.mrf.mxu0
    %v1189 = vadd.f32 %v1160, %v1188
    %1190 = vdwg.mxu0
    %v1191 = vadd.f32 %v647, %v1186
    %v1192 = vadd.f32 %v648, %v1189
    %v1193 = vld [vmem:[%s18] sm:$0x1]
    %v1194 = vld [vmem:[%s19] sm:$0x1]
    %v1195 = vsel %vm91, %v1191, 0.0
    %1196 = vadd.xlane.f32.xlu0 %v1195
    %v1197 = vpop.xlane.xlu0 %1196
    %v1198 = vsel %vm91, %v1192, 0.0
    %1199 = vadd.xlane.f32.xlu0 %v1198
    %v1200 = vpop.xlane.xlu0 %1199
    %v1201 = vmul.f32 %v1197, %v600
    %v1202 = vmul.f32 %v1200, %v600
    %v1203 = vsub.f32 %v1191, %v1201
    %v1204 = vsub.f32 %v1192, %v1202
    %v1205 = vmul.f32 %v1203, %v1203
    %v1206 = vmul.f32 %v1204, %v1204
    %v1207 = vsel %vm91, %v1205, 0.0
    %1208 = vadd.xlane.f32.xlu0 %v1207
    %v1209 = vpop.xlane.xlu0 %1208
    %v1210 = vsel %vm91, %v1206, 0.0
    %1211 = vadd.xlane.f32.xlu0 %v1210
    %v1212 = vpop.xlane.xlu0 %1211
    %v1213 = vmul.f32 %v1209, %v600
    %v1214 = vmul.f32 %v1212, %v600
    %v1215 = vadd.f32 %v1213, 1e-05
    %v1216 = vadd.f32 %v1214, 1e-05
    %v1217 = vrsqrt.pop %v1215
    %v1218 = vmul.f32 %v1217, %v1215
    %v1219 = vmul.f32 %v1218, %v1217
    %v1220 = vmul.f32 0.5, %v1219
    %v1221 = vsub.f32 1.5, %v1220
    %v1222 = vmul.f32 %v1217, %v1221
    %vm1223 = vweird.f32 %v1215
    %vm1224 = vweird.f32 %v1217
    %vm1225 = vmor %vm1223, %vm1224
    %v1226 = vsel %vm1225, %v1217, %v1222
    %v1227 = vrsqrt.pop %v1216
    %v1228 = vmul.f32 %v1227, %v1216
    %v1229 = vmul.f32 %v1228, %v1227
    %v1230 = vmul.f32 0.5, %v1229
    %v1231 = vsub.f32 1.5, %v1230
    %v1232 = vmul.f32 %v1227, %v1231
    %vm1233 = vweird.f32 %v1216
    %vm1234 = vweird.f32 %v1227
    %vm1235 = vmor %vm1233, %vm1234
    %v1236 = vsel %vm1235, %v1227, %v1232
    %v1237 = vmul.f32 %v1203, %v1226
    %v1238 = vmul.f32 %v1204, %v1236
    %v1240 = vperm.slane %v1193, 0
    %v1242 = vmul.f32 %v1237, %v1240
    %v1243 = vmul.f32 %v1238, %v1240
    %v1245 = vperm.slane %v1194, 0
    %v1247 = vadd.f32 %v1242, %v1245
    %v1248 = vadd.f32 %v1243, %v1245
    %v1249 = vld [vmem:[%s12] sm:$0xff]
    %v1250 = vld [vmem:[%s12 + $0x8] sm:$0xff]
    %v1251 = vld [vmem:[%s12 + $0x10] sm:$0xff]
    %v1252 = vld [vmem:[%s12 + $0x18] sm:$0xff]
    %v1253 = vld [vmem:[%s13] sm:$0x1]
    %v1255 = vperm.slane %v1253, 0
    %v1258 = vsel %vm91, %v1247, 0
    %v1261 = vsel %vm91, %v1248, 0
    %1263 = vmatpush.msra.mxu0 0.0
    %1264 = vmatpush.msra.mxu0 0.0
    %1265 = vmatpush.msra.mxu0 0.0
    %1266 = vmatpush.msra.mxu0 0.0
    %1267 = vmatpush.msra.mxu0 0.0
    %1268 = vmatpush.msra.mxu0 0.0
    %1269 = vmatpush.msra.mxu0 0.0
    %1270 = vmatpush.msra.mxu0 0.0
    %1271 = vmatpush.msra.mxu0 0.0
    %1272 = vmatpush.msra.mxu0 0.0
    %1273 = vmatpush.msra.mxu0 0.0
    %1274 = vmatpush.msra.mxu0 0.0
    %1275 = vmatpush.msra.mxu0 %v1252
    %1276 = vmatpush.msra.mxu0 %v1251
    %1277 = vmatpush.msra.mxu0 %v1250
    %1278 = vmatpush.msra.mxu0 %v1249
    %1279 = vmatmul.f32.gmra.mxu0 %v1258
    %v1280 = vpop.f32.mrf.mxu0
    %v1281 = vadd.f32 %v1255, %v1280
    %1282 = vmatmul.f32.gmra.mxu0 %v1261
    %v1283 = vpop.f32.mrf.mxu0
    %v1284 = vadd.f32 %v1255, %v1283
    %1285 = vdwg.mxu0
    %v1286 = vmax.f32 %v1281, 0.0
    %v1287 = vmax.f32 %v1284, 0.0
    %v1288 = vld [vmem:[%s14] sm:$0xff]
    %v1289 = vld [vmem:[%s14 + $0x8] sm:$0xff]
    %v1290 = vld [vmem:[%s14 + $0x10] sm:$0xff]
    %v1291 = vld [vmem:[%s14 + $0x18] sm:$0xff]
    %v1292 = vld [vmem:[%s14 + $0x20] sm:$0xff]
    %v1293 = vld [vmem:[%s14 + $0x28] sm:$0xff]
    %v1294 = vld [vmem:[%s14 + $0x30] sm:$0xff]
    %v1295 = vld [vmem:[%s14 + $0x38] sm:$0xff]
    %v1296 = vld [vmem:[%s15] sm:$0x1]
    %v1298 = vperm.slane %v1296, 0
    %vm1300 = vcmask 523264
    %v1302 = vsel %vm1300, %v1286, 0
    %v1305 = vsel %vm1300, %v1287, 0
    %1307 = vmatpush.msra.mxu0 0.0
    %1308 = vmatpush.msra.mxu0 0.0
    %1309 = vmatpush.msra.mxu0 0.0
    %1310 = vmatpush.msra.mxu0 0.0
    %1311 = vmatpush.msra.mxu0 0.0
    %1312 = vmatpush.msra.mxu0 0.0
    %1313 = vmatpush.msra.mxu0 0.0
    %1314 = vmatpush.msra.mxu0 0.0
    %1315 = vmatpush.msra.mxu0 %v1295
    %1316 = vmatpush.msra.mxu0 %v1294
    %1317 = vmatpush.msra.mxu0 %v1293
    %1318 = vmatpush.msra.mxu0 %v1292
    %1319 = vmatpush.msra.mxu0 %v1291
    %1320 = vmatpush.msra.mxu0 %v1290
    %1321 = vmatpush.msra.mxu0 %v1289
    %1322 = vmatpush.msra.mxu0 %v1288
    %1323 = vmatmul.f32.gmra.mxu0 %v1302
    %v1324 = vpop.f32.mrf.mxu0
    %v1325 = vadd.f32 %v1298, %v1324
    %1326 = vmatmul.f32.gmra.mxu0 %v1305
    %v1327 = vpop.f32.mrf.mxu0
    %v1328 = vadd.f32 %v1298, %v1327
    %1329 = vdwg.mxu0
    %v1330 = vadd.f32 %v1247, %v1325
    %v1331 = vadd.f32 %v1248, %v1328
    %v1332 = vld [vmem:[%s20] sm:$0x1]
    %v1333 = vld [vmem:[%s21] sm:$0x1]
    %v1334 = vsel %vm91, %v1330, 0.0
    %1335 = vadd.xlane.f32.xlu0 %v1334
    %v1336 = vpop.xlane.xlu0 %1335
    %v1337 = vsel %vm91, %v1331, 0.0
    %1338 = vadd.xlane.f32.xlu0 %v1337
    %v1339 = vpop.xlane.xlu0 %1338
    %v1340 = vmul.f32 %v1336, %v600
    %v1341 = vmul.f32 %v1339, %v600
    %v1342 = vsub.f32 %v1330, %v1340
    %v1343 = vsub.f32 %v1331, %v1341
    %v1344 = vmul.f32 %v1342, %v1342
    %v1345 = vmul.f32 %v1343, %v1343
    %v1346 = vsel %vm91, %v1344, 0.0
    %1347 = vadd.xlane.f32.xlu0 %v1346
    %v1348 = vpop.xlane.xlu0 %1347
    %v1349 = vsel %vm91, %v1345, 0.0
    %1350 = vadd.xlane.f32.xlu0 %v1349
    %v1351 = vpop.xlane.xlu0 %1350
    %v1352 = vmul.f32 %v1348, %v600
    %v1353 = vmul.f32 %v1351, %v600
    %v1354 = vadd.f32 %v1352, 1e-05
    %v1355 = vadd.f32 %v1353, 1e-05
    %v1356 = vrsqrt.pop %v1354
    %v1357 = vmul.f32 %v1356, %v1354
    %v1358 = vmul.f32 %v1357, %v1356
    %v1359 = vmul.f32 0.5, %v1358
    %v1360 = vsub.f32 1.5, %v1359
    %v1361 = vmul.f32 %v1356, %v1360
    %vm1362 = vweird.f32 %v1354
    %vm1363 = vweird.f32 %v1356
    %vm1364 = vmor %vm1362, %vm1363
    %v1365 = vsel %vm1364, %v1356, %v1361
    %v1366 = vrsqrt.pop %v1355
    %v1367 = vmul.f32 %v1366, %v1355
    %v1368 = vmul.f32 %v1367, %v1366
    %v1369 = vmul.f32 0.5, %v1368
    %v1370 = vsub.f32 1.5, %v1369
    %v1371 = vmul.f32 %v1366, %v1370
    %vm1372 = vweird.f32 %v1355
    %vm1373 = vweird.f32 %v1366
    %vm1374 = vmor %vm1372, %vm1373
    %v1375 = vsel %vm1374, %v1366, %v1371
    %v1376 = vmul.f32 %v1342, %v1365
    %v1377 = vmul.f32 %v1343, %v1375
    %v1379 = vperm.slane %v1332, 0
    %v1381 = vmul.f32 %v1376, %v1379
    %v1382 = vmul.f32 %v1377, %v1379
    %v1384 = vperm.slane %v1333, 0
    %v1386 = vadd.f32 %v1381, %v1384
    %v1387 = vadd.f32 %v1382, %v1384
    %s1388 = scalar_lea.vmem %s4, 32
    %v1389 = vld [vmem:[%s1388] sm:$0xff]
    %v1390 = vld [vmem:[%s1388 + $0x8] sm:$0xff]
    %v1391 = vld [vmem:[%s1388 + $0x10] sm:$0xff]
    %v1392 = vld [vmem:[%s1388 + $0x18] sm:$0xff]
    %s1393 = scalar_lea.vmem %s5, 1
    %v1394 = vld [vmem:[%s1393] sm:$0x1]
    %s1395 = scalar_lea.vmem %s6, 32
    %v1396 = vld [vmem:[%s1395] sm:$0xff]
    %v1397 = vld [vmem:[%s1395 + $0x8] sm:$0xff]
    %v1398 = vld [vmem:[%s1395 + $0x10] sm:$0xff]
    %v1399 = vld [vmem:[%s1395 + $0x18] sm:$0xff]
    %s1400 = scalar_lea.vmem %s7, 1
    %v1401 = vld [vmem:[%s1400] sm:$0x1]
    %v1403 = vperm.slane %v1394, 0
    %v1406 = vsel %vm91, %v1386, 0
    %v1409 = vsel %vm91, %v1387, 0
    %1411 = vmatpush.msra.mxu0 0.0
    %1412 = vmatpush.msra.mxu0 0.0
    %1413 = vmatpush.msra.mxu0 0.0
    %1414 = vmatpush.msra.mxu0 0.0
    %1415 = vmatpush.msra.mxu0 0.0
    %1416 = vmatpush.msra.mxu0 0.0
    %1417 = vmatpush.msra.mxu0 0.0
    %1418 = vmatpush.msra.mxu0 0.0
    %1419 = vmatpush.msra.mxu0 0.0
    %1420 = vmatpush.msra.mxu0 0.0
    %1421 = vmatpush.msra.mxu0 0.0
    %1422 = vmatpush.msra.mxu0 0.0
    %1423 = vmatpush.msra.mxu0 %v1392
    %1424 = vmatpush.msra.mxu0 %v1391
    %1425 = vmatpush.msra.mxu0 %v1390
    %1426 = vmatpush.msra.mxu0 %v1389
    %1427 = vmatmul.f32.gmra.mxu0 %v1406
    %v1428 = vpop.f32.mrf.mxu0
    %v1429 = vadd.f32 %v1403, %v1428
    %1430 = vmatmul.f32.gmra.mxu0 %v1409
    %v1431 = vpop.f32.mrf.mxu0
    %v1432 = vadd.f32 %v1403, %v1431
    %1433 = vdwg.mxu0
    %1436 = vrot.lane.b32.xlu0 %v1429, 96
    %v1437 = vpop.permute.xlu0 %1436
    %1438 = vrot.lane.b32.xlu0 %v1432, 96
    %v1439 = vpop.permute.xlu0 %1438
    %v1440 = vsel %vm127, %v1429, 0
    %v1442 = vsel %vm127, %v1432, 0
    %v1444 = vsel %vm127, %v1437, 0
    %v1446 = vsel %vm127, %v1439, 0
    %1448 = vmatpush.xpose.msra.mxu0 0.0
    %1449 = vmatpush.xpose.msra.mxu0 0.0
    %1450 = vmatpush.xpose.msra.mxu0 0.0
    %1451 = vmatpush.xpose.msra.mxu0 0.0
    %1452 = vmatpush.xpose.msra.mxu0 0.0
    %1453 = vmatpush.xpose.msra.mxu0 0.0
    %1454 = vmatpush.xpose.msra.mxu0 0.0
    %1455 = vmatpush.xpose.msra.mxu0 0.0
    %1456 = vmatpush.xpose.msra.mxu0 0.0
    %1457 = vmatpush.xpose.msra.mxu0 0.0
    %1458 = vmatpush.xpose.msra.mxu0 0.0
    %1459 = vmatpush.xpose.msra.mxu0 0.0
    %1460 = vmatpush.xpose.msra.mxu0 0.0
    %1461 = vmatpush.xpose.msra.mxu0 0.0
    %1462 = vmatpush.xpose.msra.mxu0 %v1446
    %1463 = vmatpush.xpose.msra.mxu0 %v1444
    %1464 = vmatmul.f32.gmra.mxu0 %v1440
    %v1465 = vpop.f32.mrf.mxu0
    %v1466 = vadd.f32 0.0, %v1465
    %1467 = vmatmul.f32.gmra.mxu0 %v1442
    %v1468 = vpop.f32.mrf.mxu0
    %v1469 = vadd.f32 0.0, %v1468
    %1470 = vdwg.mxu0
    %v1471 = vmul.f32 %v1466, 0.35355338
    %v1472 = vmul.f32 %v1469, 0.35355338
    %v1473 = vadd.f32 %v1471, %v74
    %v1474 = vadd.f32 %v1472, %v75
    %v1475 = vsel %vm163, %v1473, -inf
    %1476 = vmax.xlane.f32.xlu0 %v1475
    %v1477 = vpop.xlane.xlu0 %1476
    %v1478 = vsel %vm163, %v1474, -inf
    %1479 = vmax.xlane.f32.xlu0 %v1478
    %v1480 = vpop.xlane.xlu0 %1479
    %v1481 = vsub.f32 %v1473, %v1477
    %v1482 = vsub.f32 %v1474, %v1480
    %v1483 = vmul.f32 %v1481, 1.442695
    %v1484 = vpow.pop %v1483
    %v1485 = vmul.f32 %v1482, 1.442695
    %v1486 = vpow.pop %v1485
    %v1487 = vsel %vm163, %v1484, 0.0
    %1488 = vadd.xlane.f32.xlu0 %v1487
    %v1489 = vpop.xlane.xlu0 %1488
    %v1490 = vsel %vm163, %v1486, 0.0
    %1491 = vadd.xlane.f32.xlu0 %v1490
    %v1492 = vpop.xlane.xlu0 %1491
    %v1493 = vrcp.pop %v1489
    %v1494 = vrcp.pop %v1492
    %v1495 = vmul.f32 %v1484, %v1493
    %v1496 = vmul.f32 %v1486, %v1494
    %1497 = vrot.lane.b32.xlu0 %v1429, 64
    %v1498 = vpop.permute.xlu0 %1497
    %1499 = vrot.lane.b32.xlu0 %v1432, 64
    %v1500 = vpop.permute.xlu0 %1499
    %v1504 = vsel %vm163, %v1495, 0
    %v1507 = vsel %vm163, %v1496, 0
    %1509 = vmatpush.msra.mxu0 0.0
    %1510 = vmatpush.msra.mxu0 0.0
    %1511 = vmatpush.msra.mxu0 0.0
    %1512 = vmatpush.msra.mxu0 0.0
    %1513 = vmatpush.msra.mxu0 0.0
    %1514 = vmatpush.msra.mxu0 0.0
    %1515 = vmatpush.msra.mxu0 0.0
    %1516 = vmatpush.msra.mxu0 0.0
    %1517 = vmatpush.msra.mxu0 0.0
    %1518 = vmatpush.msra.mxu0 0.0
    %1519 = vmatpush.msra.mxu0 0.0
    %1520 = vmatpush.msra.mxu0 0.0
    %1521 = vmatpush.msra.mxu0 0.0
    %1522 = vmatpush.msra.mxu0 0.0
    %1523 = vmatpush.msra.mxu0 %v1500
    %1524 = vmatpush.msra.mxu0 %v1498
    %1525 = vmatmul.f32.gmra.mxu0 %v1504
    %v1526 = vpop.f32.mrf.mxu0
    %v1527 = vadd.f32 0.0, %v1526
    %1528 = vmatmul.f32.gmra.mxu0 %v1507
    %v1529 = vpop.f32.mrf.mxu0
    %v1530 = vadd.f32 0.0, %v1529
    %1531 = vdwg.mxu0
    %1532 = vrot.lane.b32.xlu0 %v1429, 120
    %v1533 = vpop.permute.xlu0 %1532
    %1534 = vrot.lane.b32.xlu0 %v1432, 120
    %v1535 = vpop.permute.xlu0 %1534
    %1536 = vrot.lane.b32.xlu0 %v1429, 88
    %v1537 = vpop.permute.xlu0 %1536
    %1538 = vrot.lane.b32.xlu0 %v1432, 88
    %v1539 = vpop.permute.xlu0 %1538
    %v1540 = vsel %vm127, %v1533, 0
    %v1542 = vsel %vm127, %v1535, 0
    %v1544 = vsel %vm127, %v1537, 0
    %v1546 = vsel %vm127, %v1539, 0
    %1548 = vmatpush.xpose.msra.mxu0 0.0
    %1549 = vmatpush.xpose.msra.mxu0 0.0
    %1550 = vmatpush.xpose.msra.mxu0 0.0
    %1551 = vmatpush.xpose.msra.mxu0 0.0
    %1552 = vmatpush.xpose.msra.mxu0 0.0
    %1553 = vmatpush.xpose.msra.mxu0 0.0
    %1554 = vmatpush.xpose.msra.mxu0 0.0
    %1555 = vmatpush.xpose.msra.mxu0 0.0
    %1556 = vmatpush.xpose.msra.mxu0 0.0
    %1557 = vmatpush.xpose.msra.mxu0 0.0
    %1558 = vmatpush.xpose.msra.mxu0 0.0
    %1559 = vmatpush.xpose.msra.mxu0 0.0
    %1560 = vmatpush.xpose.msra.mxu0 0.0
    %1561 = vmatpush.xpose.msra.mxu0 0.0
    %1562 = vmatpush.xpose.msra.mxu0 %v1546
    %1563 = vmatpush.xpose.msra.mxu0 %v1544
    %1564 = vmatmul.f32.gmra.mxu0 %v1540
    %v1565 = vpop.f32.mrf.mxu0
    %v1566 = vadd.f32 0.0, %v1565
    %1567 = vmatmul.f32.gmra.mxu0 %v1542
    %v1568 = vpop.f32.mrf.mxu0
    %v1569 = vadd.f32 0.0, %v1568
    %1570 = vdwg.mxu0
    %v1571 = vmul.f32 %v1566, 0.35355338
    %v1572 = vmul.f32 %v1569, 0.35355338
    %v1573 = vadd.f32 %v1571, %v74
    %v1574 = vadd.f32 %v1572, %v75
    %v1575 = vsel %vm163, %v1573, -inf
    %1576 = vmax.xlane.f32.xlu0 %v1575
    %v1577 = vpop.xlane.xlu0 %1576
    %v1578 = vsel %vm163, %v1574, -inf
    %1579 = vmax.xlane.f32.xlu0 %v1578
    %v1580 = vpop.xlane.xlu0 %1579
    %v1581 = vsub.f32 %v1573, %v1577
    %v1582 = vsub.f32 %v1574, %v1580
    %v1583 = vmul.f32 %v1581, 1.442695
    %v1584 = vpow.pop %v1583
    %v1585 = vmul.f32 %v1582, 1.442695
    %v1586 = vpow.pop %v1585
    %v1587 = vsel %vm163, %v1584, 0.0
    %1588 = vadd.xlane.f32.xlu0 %v1587
    %v1589 = vpop.xlane.xlu0 %1588
    %v1590 = vsel %vm163, %v1586, 0.0
    %1591 = vadd.xlane.f32.xlu0 %v1590
    %v1592 = vpop.xlane.xlu0 %1591
    %v1593 = vrcp.pop %v1589
    %v1594 = vrcp.pop %v1592
    %v1595 = vmul.f32 %v1584, %v1593
    %v1596 = vmul.f32 %v1586, %v1594
    %1597 = vrot.lane.b32.xlu0 %v1429, 56
    %v1598 = vpop.permute.xlu0 %1597
    %1599 = vrot.lane.b32.xlu0 %v1432, 56
    %v1600 = vpop.permute.xlu0 %1599
    %v1604 = vsel %vm163, %v1595, 0
    %v1607 = vsel %vm163, %v1596, 0
    %1609 = vmatpush.msra.mxu0 0.0
    %1610 = vmatpush.msra.mxu0 0.0
    %1611 = vmatpush.msra.mxu0 0.0
    %1612 = vmatpush.msra.mxu0 0.0
    %1613 = vmatpush.msra.mxu0 0.0
    %1614 = vmatpush.msra.mxu0 0.0
    %1615 = vmatpush.msra.mxu0 0.0
    %1616 = vmatpush.msra.mxu0 0.0
    %1617 = vmatpush.msra.mxu0 0.0
    %1618 = vmatpush.msra.mxu0 0.0
    %1619 = vmatpush.msra.mxu0 0.0
    %1620 = vmatpush.msra.mxu0 0.0
    %1621 = vmatpush.msra.mxu0 0.0
    %1622 = vmatpush.msra.mxu0 0.0
    %1623 = vmatpush.msra.mxu0 %v1600
    %1624 = vmatpush.msra.mxu0 %v1598
    %1625 = vmatmul.f32.gmra.mxu0 %v1604
    %v1626 = vpop.f32.mrf.mxu0
    %v1627 = vadd.f32 0.0, %v1626
    %1628 = vmatmul.f32.gmra.mxu0 %v1607
    %v1629 = vpop.f32.mrf.mxu0
    %v1630 = vadd.f32 0.0, %v1629
    %1631 = vdwg.mxu0
    %1632 = vrot.lane.b32.xlu0 %v1429, 112
    %v1633 = vpop.permute.xlu0 %1632
    %1634 = vrot.lane.b32.xlu0 %v1432, 112
    %v1635 = vpop.permute.xlu0 %1634
    %1636 = vrot.lane.b32.xlu0 %v1429, 80
    %v1637 = vpop.permute.xlu0 %1636
    %1638 = vrot.lane.b32.xlu0 %v1432, 80
    %v1639 = vpop.permute.xlu0 %1638
    %v1640 = vsel %vm127, %v1633, 0
    %v1642 = vsel %vm127, %v1635, 0
    %v1644 = vsel %vm127, %v1637, 0
    %v1646 = vsel %vm127, %v1639, 0
    %1648 = vmatpush.xpose.msra.mxu0 0.0
    %1649 = vmatpush.xpose.msra.mxu0 0.0
    %1650 = vmatpush.xpose.msra.mxu0 0.0
    %1651 = vmatpush.xpose.msra.mxu0 0.0
    %1652 = vmatpush.xpose.msra.mxu0 0.0
    %1653 = vmatpush.xpose.msra.mxu0 0.0
    %1654 = vmatpush.xpose.msra.mxu0 0.0
    %1655 = vmatpush.xpose.msra.mxu0 0.0
    %1656 = vmatpush.xpose.msra.mxu0 0.0
    %1657 = vmatpush.xpose.msra.mxu0 0.0
    %1658 = vmatpush.xpose.msra.mxu0 0.0
    %1659 = vmatpush.xpose.msra.mxu0 0.0
    %1660 = vmatpush.xpose.msra.mxu0 0.0
    %1661 = vmatpush.xpose.msra.mxu0 0.0
    %1662 = vmatpush.xpose.msra.mxu0 %v1646
    %1663 = vmatpush.xpose.msra.mxu0 %v1644
    %1664 = vmatmul.f32.gmra.mxu0 %v1640
    %v1665 = vpop.f32.mrf.mxu0
    %v1666 = vadd.f32 0.0, %v1665
    %1667 = vmatmul.f32.gmra.mxu0 %v1642
    %v1668 = vpop.f32.mrf.mxu0
    %v1669 = vadd.f32 0.0, %v1668
    %1670 = vdwg.mxu0
    %v1671 = vmul.f32 %v1666, 0.35355338
    %v1672 = vmul.f32 %v1669, 0.35355338
    %v1673 = vadd.f32 %v1671, %v74
    %v1674 = vadd.f32 %v1672, %v75
    %v1675 = vsel %vm163, %v1673, -inf
    %1676 = vmax.xlane.f32.xlu0 %v1675
    %v1677 = vpop.xlane.xlu0 %1676
    %v1678 = vsel %vm163, %v1674, -inf
    %1679 = vmax.xlane.f32.xlu0 %v1678
    %v1680 = vpop.xlane.xlu0 %1679
    %v1681 = vsub.f32 %v1673, %v1677
    %v1682 = vsub.f32 %v1674, %v1680
    %v1683 = vmul.f32 %v1681, 1.442695
    %v1684 = vpow.pop %v1683
    %v1685 = vmul.f32 %v1682, 1.442695
    %v1686 = vpow.pop %v1685
    %v1687 = vsel %vm163, %v1684, 0.0
    %1688 = vadd.xlane.f32.xlu0 %v1687
    %v1689 = vpop.xlane.xlu0 %1688
    %v1690 = vsel %vm163, %v1686, 0.0
    %1691 = vadd.xlane.f32.xlu0 %v1690
    %v1692 = vpop.xlane.xlu0 %1691
    %v1693 = vrcp.pop %v1689
    %v1694 = vrcp.pop %v1692
    %v1695 = vmul.f32 %v1684, %v1693
    %v1696 = vmul.f32 %v1686, %v1694
    %1697 = vrot.lane.b32.xlu0 %v1429, 48
    %v1698 = vpop.permute.xlu0 %1697
    %1699 = vrot.lane.b32.xlu0 %v1432, 48
    %v1700 = vpop.permute.xlu0 %1699
    %v1704 = vsel %vm163, %v1695, 0
    %v1707 = vsel %vm163, %v1696, 0
    %1709 = vmatpush.msra.mxu0 0.0
    %1710 = vmatpush.msra.mxu0 0.0
    %1711 = vmatpush.msra.mxu0 0.0
    %1712 = vmatpush.msra.mxu0 0.0
    %1713 = vmatpush.msra.mxu0 0.0
    %1714 = vmatpush.msra.mxu0 0.0
    %1715 = vmatpush.msra.mxu0 0.0
    %1716 = vmatpush.msra.mxu0 0.0
    %1717 = vmatpush.msra.mxu0 0.0
    %1718 = vmatpush.msra.mxu0 0.0
    %1719 = vmatpush.msra.mxu0 0.0
    %1720 = vmatpush.msra.mxu0 0.0
    %1721 = vmatpush.msra.mxu0 0.0
    %1722 = vmatpush.msra.mxu0 0.0
    %1723 = vmatpush.msra.mxu0 %v1700
    %1724 = vmatpush.msra.mxu0 %v1698
    %1725 = vmatmul.f32.gmra.mxu0 %v1704
    %v1726 = vpop.f32.mrf.mxu0
    %v1727 = vadd.f32 0.0, %v1726
    %1728 = vmatmul.f32.gmra.mxu0 %v1707
    %v1729 = vpop.f32.mrf.mxu0
    %v1730 = vadd.f32 0.0, %v1729
    %1731 = vdwg.mxu0
    %1732 = vrot.lane.b32.xlu0 %v1429, 104
    %v1733 = vpop.permute.xlu0 %1732
    %1734 = vrot.lane.b32.xlu0 %v1432, 104
    %v1735 = vpop.permute.xlu0 %1734
    %1736 = vrot.lane.b32.xlu0 %v1429, 72
    %v1737 = vpop.permute.xlu0 %1736
    %1738 = vrot.lane.b32.xlu0 %v1432, 72
    %v1739 = vpop.permute.xlu0 %1738
    %v1740 = vsel %vm127, %v1733, 0
    %v1742 = vsel %vm127, %v1735, 0
    %v1744 = vsel %vm127, %v1737, 0
    %v1746 = vsel %vm127, %v1739, 0
    %1748 = vmatpush.xpose.msra.mxu0 0.0
    %1749 = vmatpush.xpose.msra.mxu0 0.0
    %1750 = vmatpush.xpose.msra.mxu0 0.0
    %1751 = vmatpush.xpose.msra.mxu0 0.0
    %1752 = vmatpush.xpose.msra.mxu0 0.0
    %1753 = vmatpush.xpose.msra.mxu0 0.0
    %1754 = vmatpush.xpose.msra.mxu0 0.0
    %1755 = vmatpush.xpose.msra.mxu0 0.0
    %1756 = vmatpush.xpose.msra.mxu0 0.0
    %1757 = vmatpush.xpose.msra.mxu0 0.0
    %1758 = vmatpush.xpose.msra.mxu0 0.0
    %1759 = vmatpush.xpose.msra.mxu0 0.0
    %1760 = vmatpush.xpose.msra.mxu0 0.0
    %1761 = vmatpush.xpose.msra.mxu0 0.0
    %1762 = vmatpush.xpose.msra.mxu0 %v1746
    %1763 = vmatpush.xpose.msra.mxu0 %v1744
    %1764 = vmatmul.f32.gmra.mxu0 %v1740
    %v1765 = vpop.f32.mrf.mxu0
    %v1766 = vadd.f32 0.0, %v1765
    %1767 = vmatmul.f32.gmra.mxu0 %v1742
    %v1768 = vpop.f32.mrf.mxu0
    %v1769 = vadd.f32 0.0, %v1768
    %1770 = vdwg.mxu0
    %v1771 = vmul.f32 %v1766, 0.35355338
    %v1772 = vmul.f32 %v1769, 0.35355338
    %v1773 = vadd.f32 %v1771, %v74
    %v1774 = vadd.f32 %v1772, %v75
    %v1775 = vsel %vm163, %v1773, -inf
    %1776 = vmax.xlane.f32.xlu0 %v1775
    %v1777 = vpop.xlane.xlu0 %1776
    %v1778 = vsel %vm163, %v1774, -inf
    %1779 = vmax.xlane.f32.xlu0 %v1778
    %v1780 = vpop.xlane.xlu0 %1779
    %v1781 = vsub.f32 %v1773, %v1777
    %v1782 = vsub.f32 %v1774, %v1780
    %v1783 = vmul.f32 %v1781, 1.442695
    %v1784 = vpow.pop %v1783
    %v1785 = vmul.f32 %v1782, 1.442695
    %v1786 = vpow.pop %v1785
    %v1787 = vsel %vm163, %v1784, 0.0
    %1788 = vadd.xlane.f32.xlu0 %v1787
    %v1789 = vpop.xlane.xlu0 %1788
    %v1790 = vsel %vm163, %v1786, 0.0
    %1791 = vadd.xlane.f32.xlu0 %v1790
    %v1792 = vpop.xlane.xlu0 %1791
    %v1793 = vrcp.pop %v1789
    %v1794 = vrcp.pop %v1792
    %v1795 = vmul.f32 %v1784, %v1793
    %v1796 = vmul.f32 %v1786, %v1794
    %1797 = vrot.lane.b32.xlu0 %v1429, 40
    %v1798 = vpop.permute.xlu0 %1797
    %1799 = vrot.lane.b32.xlu0 %v1432, 40
    %v1800 = vpop.permute.xlu0 %1799
    %v1804 = vsel %vm163, %v1795, 0
    %v1807 = vsel %vm163, %v1796, 0
    %1809 = vmatpush.msra.mxu0 0.0
    %1810 = vmatpush.msra.mxu0 0.0
    %1811 = vmatpush.msra.mxu0 0.0
    %1812 = vmatpush.msra.mxu0 0.0
    %1813 = vmatpush.msra.mxu0 0.0
    %1814 = vmatpush.msra.mxu0 0.0
    %1815 = vmatpush.msra.mxu0 0.0
    %1816 = vmatpush.msra.mxu0 0.0
    %1817 = vmatpush.msra.mxu0 0.0
    %1818 = vmatpush.msra.mxu0 0.0
    %1819 = vmatpush.msra.mxu0 0.0
    %1820 = vmatpush.msra.mxu0 0.0
    %1821 = vmatpush.msra.mxu0 0.0
    %1822 = vmatpush.msra.mxu0 0.0
    %1823 = vmatpush.msra.mxu0 %v1800
    %1824 = vmatpush.msra.mxu0 %v1798
    %1825 = vmatmul.f32.gmra.mxu0 %v1804
    %v1826 = vpop.f32.mrf.mxu0
    %v1827 = vadd.f32 0.0, %v1826
    %1828 = vmatmul.f32.gmra.mxu0 %v1807
    %v1829 = vpop.f32.mrf.mxu0
    %v1830 = vadd.f32 0.0, %v1829
    %1831 = vdwg.mxu0
    %1834 = vrot.lane.b32.xlu0 %v1627, 8
    %v1835 = vpop.permute.xlu0 %1834
    %1836 = vrot.lane.b32.xlu0 %v1630, 8
    %v1837 = vpop.permute.xlu0 %1836
    %1842 = vrot.lane.b32.xlu0 %v1727, 16
    %v1843 = vpop.permute.xlu0 %1842
    %1844 = vrot.lane.b32.xlu0 %v1730, 16
    %v1845 = vpop.permute.xlu0 %1844
    %1850 = vrot.lane.b32.xlu0 %v1827, 24
    %v1851 = vpop.permute.xlu0 %1850
    %1852 = vrot.lane.b32.xlu0 %v1830, 24
    %v1853 = vpop.permute.xlu0 %1852
    %v1856 = vsel %vm127, %v1527, %v1835
    %v1857 = vsel %vm127, %v1530, %v1837
    %v1858 = vsel %vm163, %v1856, %v1843
    %v1859 = vsel %vm163, %v1857, %v1845
    %v1860 = vsel %vm549, %v1858, %v1851
    %v1861 = vsel %vm549, %v1859, %v1853
    %v1863 = vperm.slane %v1401, 0
    %v1866 = vsel %vm91, %v1860, 0
    %v1869 = vsel %vm91, %v1861, 0
    %1871 = vmatpush.msra.mxu0 0.0
    %1872 = vmatpush.msra.mxu0 0.0
    %1873 = vmatpush.msra.mxu0 0.0
    %1874 = vmatpush.msra.mxu0 0.0
    %1875 = vmatpush.msra.mxu0 0.0
    %1876 = vmatpush.msra.mxu0 0.0
    %1877 = vmatpush.msra.mxu0 0.0
    %1878 = vmatpush.msra.mxu0 0.0
    %1879 = vmatpush.msra.mxu0 0.0
    %1880 = vmatpush.msra.mxu0 0.0
    %1881 = vmatpush.msra.mxu0 0.0
    %1882 = vmatpush.msra.mxu0 0.0
    %1883 = vmatpush.msra.mxu0 %v1399
    %1884 = vmatpush.msra.mxu0 %v1398
    %1885 = vmatpush.msra.mxu0 %v1397
    %1886 = vmatpush.msra.mxu0 %v1396
    %1887 = vmatmul.f32.gmra.mxu0 %v1866
    %v1888 = vpop.f32.mrf.mxu0
    %v1889 = vadd.f32 %v1863, %v1888
    %1890 = vmatmul.f32.gmra.mxu0 %v1869
    %v1891 = vpop.f32.mrf.mxu0
    %v1892 = vadd.f32 %v1863, %v1891
    %1893 = vdwg.mxu0
    %v1894 = vadd.f32 %v1386, %v1889
    %v1895 = vadd.f32 %v1387, %v1892
    %s1896 = scalar_lea.vmem %s16, 1
    %v1897 = vld [vmem:[%s1896] sm:$0x1]
    %s1898 = scalar_lea.vmem %s17, 1
    %v1899 = vld [vmem:[%s1898] sm:$0x1]
    %v1900 = vsel %vm91, %v1894, 0.0
    %1901 = vadd.xlane.f32.xlu0 %v1900
    %v1902 = vpop.xlane.xlu0 %1901
    %v1903 = vsel %vm91, %v1895, 0.0
    %1904 = vadd.xlane.f32.xlu0 %v1903
    %v1905 = vpop.xlane.xlu0 %1904
    %v1906 = vmul.f32 %v1902, %v600
    %v1907 = vmul.f32 %v1905, %v600
    %v1908 = vsub.f32 %v1894, %v1906
    %v1909 = vsub.f32 %v1895, %v1907
    %v1910 = vmul.f32 %v1908, %v1908
    %v1911 = vmul.f32 %v1909, %v1909
    %v1912 = vsel %vm91, %v1910, 0.0
    %1913 = vadd.xlane.f32.xlu0 %v1912
    %v1914 = vpop.xlane.xlu0 %1913
    %v1915 = vsel %vm91, %v1911, 0.0
    %1916 = vadd.xlane.f32.xlu0 %v1915
    %v1917 = vpop.xlane.xlu0 %1916
    %v1918 = vmul.f32 %v1914, %v600
    %v1919 = vmul.f32 %v1917, %v600
    %v1920 = vadd.f32 %v1918, 1e-05
    %v1921 = vadd.f32 %v1919, 1e-05
    %v1922 = vrsqrt.pop %v1920
    %v1923 = vmul.f32 %v1922, %v1920
    %v1924 = vmul.f32 %v1923, %v1922
    %v1925 = vmul.f32 0.5, %v1924
    %v1926 = vsub.f32 1.5, %v1925
    %v1927 = vmul.f32 %v1922, %v1926
    %vm1928 = vweird.f32 %v1920
    %vm1929 = vweird.f32 %v1922
    %vm1930 = vmor %vm1928, %vm1929
    %v1931 = vsel %vm1930, %v1922, %v1927
    %v1932 = vrsqrt.pop %v1921
    %v1933 = vmul.f32 %v1932, %v1921
    %v1934 = vmul.f32 %v1933, %v1932
    %v1935 = vmul.f32 0.5, %v1934
    %v1936 = vsub.f32 1.5, %v1935
    %v1937 = vmul.f32 %v1932, %v1936
    %vm1938 = vweird.f32 %v1921
    %vm1939 = vweird.f32 %v1932
    %vm1940 = vmor %vm1938, %vm1939
    %v1941 = vsel %vm1940, %v1932, %v1937
    %v1942 = vmul.f32 %v1908, %v1931
    %v1943 = vmul.f32 %v1909, %v1941
    %v1945 = vperm.slane %v1897, 0
    %v1947 = vmul.f32 %v1942, %v1945
    %v1948 = vmul.f32 %v1943, %v1945
    %v1950 = vperm.slane %v1899, 0
    %v1952 = vadd.f32 %v1947, %v1950
    %v1953 = vadd.f32 %v1948, %v1950
    %s1954 = scalar_lea.vmem %s8, 32
    %v1955 = vld [vmem:[%s1954] sm:$0xff]
    %v1956 = vld [vmem:[%s1954 + $0x8] sm:$0xff]
    %v1957 = vld [vmem:[%s1954 + $0x10] sm:$0xff]
    %v1958 = vld [vmem:[%s1954 + $0x18] sm:$0xff]
    %s1959 = scalar_lea.vmem %s9, 1
    %v1960 = vld [vmem:[%s1959] sm:$0x1]
    %s1961 = scalar_lea.vmem %s10, 32
    %v1962 = vld [vmem:[%s1961] sm:$0xff]
    %v1963 = vld [vmem:[%s1961 + $0x8] sm:$0xff]
    %v1964 = vld [vmem:[%s1961 + $0x10] sm:$0xff]
    %v1965 = vld [vmem:[%s1961 + $0x18] sm:$0xff]
    %s1966 = scalar_lea.vmem %s11, 1
    %v1967 = vld [vmem:[%s1966] sm:$0x1]
    %v1969 = vperm.slane %v1960, 0
    %v1972 = vsel %vm91, %v1952, 0
    %v1975 = vsel %vm91, %v1953, 0
    %1977 = vmatpush.msra.mxu0 0.0
    %1978 = vmatpush.msra.mxu0 0.0
    %1979 = vmatpush.msra.mxu0 0.0
    %1980 = vmatpush.msra.mxu0 0.0
    %1981 = vmatpush.msra.mxu0 0.0
    %1982 = vmatpush.msra.mxu0 0.0
    %1983 = vmatpush.msra.mxu0 0.0
    %1984 = vmatpush.msra.mxu0 0.0
    %1985 = vmatpush.msra.mxu0 0.0
    %1986 = vmatpush.msra.mxu0 0.0
    %1987 = vmatpush.msra.mxu0 0.0
    %1988 = vmatpush.msra.mxu0 0.0
    %1989 = vmatpush.msra.mxu0 %v1958
    %1990 = vmatpush.msra.mxu0 %v1957
    %1991 = vmatpush.msra.mxu0 %v1956
    %1992 = vmatpush.msra.mxu0 %v1955
    %1993 = vmatmul.f32.gmra.mxu0 %v1972
    %v1994 = vpop.f32.mrf.mxu0
    %v1995 = vadd.f32 %v1969, %v1994
    %1996 = vmatmul.f32.gmra.mxu0 %v1975
    %v1997 = vpop.f32.mrf.mxu0
    %v1998 = vadd.f32 %v1969, %v1997
    %1999 = vdwg.mxu0
    %2004 = vrot.lane.b32.xlu0 %v1955, 96
    %v2005 = vpop.permute.xlu0 %2004
    %2006 = vrot.lane.b32.xlu0 %v1956, 96
    %v2007 = vpop.permute.xlu0 %2006
    %2008 = vrot.lane.b32.xlu0 %v1957, 96
    %v2009 = vpop.permute.xlu0 %2008
    %2010 = vrot.lane.b32.xlu0 %v1958, 96
    %v2011 = vpop.permute.xlu0 %2010
    %2016 = vrot.lane.b32.xlu0 %v1969, 96
    %v2017 = vpop.permute.xlu0 %2016
    %2019 = vmatpush.msra.mxu0 0.0
    %2020 = vmatpush.msra.mxu0 0.0
    %2021 = vmatpush.msra.mxu0 0.0
    %2022 = vmatpush.msra.mxu0 0.0
    %2023 = vmatpush.msra.mxu0 0.0
    %2024 = vmatpush.msra.mxu0 0.0
    %2025 = vmatpush.msra.mxu0 0.0
    %2026 = vmatpush.msra.mxu0 0.0
    %2027 = vmatpush.msra.mxu0 0.0
    %2028 = vmatpush.msra.mxu0 0.0
    %2029 = vmatpush.msra.mxu0 0.0
    %2030 = vmatpush.msra.mxu0 0.0
    %2031 = vmatpush.msra.mxu0 %v2011
    %2032 = vmatpush.msra.mxu0 %v2009
    %2033 = vmatpush.msra.mxu0 %v2007
    %2034 = vmatpush.msra.mxu0 %v2005
    %2035 = vmatmul.f32.gmra.mxu0 %v93
    %v2036 = vpop.f32.mrf.mxu0
    %v2037 = vadd.f32 %v2017, %v2036
    %2038 = vmatmul.f32.gmra.mxu0 %v96
    %v2039 = vpop.f32.mrf.mxu0
    %v2040 = vadd.f32 %v2017, %v2039
    %2041 = vdwg.mxu0
    %v2043 = vsel %vm127, %v1995, 0
    %v2046 = vsel %vm127, %v1998, 0
    %v2049 = vsel %vm127, %v2037, 0
    %v2052 = vsel %vm127, %v2040, 0
    %2054 = vmatpush.xpose.msra.mxu0 0.0
    %2055 = vmatpush.xpose.msra.mxu0 0.0
    %2056 = vmatpush.xpose.msra.mxu0 0.0
    %2057 = vmatpush.xpose.msra.mxu0 0.0
    %2058 = vmatpush.xpose.msra.mxu0 0.0
    %2059 = vmatpush.xpose.msra.mxu0 0.0
    %2060 = vmatpush.xpose.msra.mxu0 0.0
    %2061 = vmatpush.xpose.msra.mxu0 0.0
    %2062 = vmatpush.xpose.msra.mxu0 0.0
    %2063 = vmatpush.xpose.msra.mxu0 0.0
    %2064 = vmatpush.xpose.msra.mxu0 0.0
    %2065 = vmatpush.xpose.msra.mxu0 0.0
    %2066 = vmatpush.xpose.msra.mxu0 0.0
    %2067 = vmatpush.xpose.msra.mxu0 0.0
    %2068 = vmatpush.xpose.msra.mxu0 %v2052
    %2069 = vmatpush.xpose.msra.mxu0 %v2049
    %2070 = vmatmul.f32.gmra.mxu0 %v2043
    %v2071 = vpop.f32.mrf.mxu0
    %v2072 = vadd.f32 0.0, %v2071
    %2073 = vmatmul.f32.gmra.mxu0 %v2046
    %v2074 = vpop.f32.mrf.mxu0
    %v2075 = vadd.f32 0.0, %v2074
    %2076 = vdwg.mxu0
    %v2077 = vmul.f32 %v2072, 0.35355338
    %v2078 = vmul.f32 %v2075, 0.35355338
    %v2079 = vadd.f32 %v2077, %v76
    %v2080 = vadd.f32 %v2078, %v77
    %v2081 = vsel %vm163, %v2079, -inf
    %2082 = vmax.xlane.f32.xlu0 %v2081
    %v2083 = vpop.xlane.xlu0 %2082
    %v2084 = vsel %vm163, %v2080, -inf
    %2085 = vmax.xlane.f32.xlu0 %v2084
    %v2086 = vpop.xlane.xlu0 %2085
    %v2087 = vsub.f32 %v2079, %v2083
    %v2088 = vsub.f32 %v2080, %v2086
    %v2089 = vmul.f32 %v2087, 1.442695
    %v2090 = vpow.pop %v2089
    %v2091 = vmul.f32 %v2088, 1.442695
    %v2092 = vpow.pop %v2091
    %v2093 = vsel %vm163, %v2090, 0.0
    %2094 = vadd.xlane.f32.xlu0 %v2093
    %v2095 = vpop.xlane.xlu0 %2094
    %v2096 = vsel %vm163, %v2092, 0.0
    %2097 = vadd.xlane.f32.xlu0 %v2096
    %v2098 = vpop.xlane.xlu0 %2097
    %v2099 = vrcp.pop %v2095
    %v2100 = vrcp.pop %v2098
    %v2101 = vmul.f32 %v2090, %v2099
    %v2102 = vmul.f32 %v2092, %v2100
    %2103 = vrot.lane.b32.xlu0 %v2037, 96
    %v2104 = vpop.permute.xlu0 %2103
    %2105 = vrot.lane.b32.xlu0 %v2040, 96
    %v2106 = vpop.permute.xlu0 %2105
    %v2110 = vsel %vm163, %v2101, 0
    %v2113 = vsel %vm163, %v2102, 0
    %2115 = vmatpush.msra.mxu0 0.0
    %2116 = vmatpush.msra.mxu0 0.0
    %2117 = vmatpush.msra.mxu0 0.0
    %2118 = vmatpush.msra.mxu0 0.0
    %2119 = vmatpush.msra.mxu0 0.0
    %2120 = vmatpush.msra.mxu0 0.0
    %2121 = vmatpush.msra.mxu0 0.0
    %2122 = vmatpush.msra.mxu0 0.0
    %2123 = vmatpush.msra.mxu0 0.0
    %2124 = vmatpush.msra.mxu0 0.0
    %2125 = vmatpush.msra.mxu0 0.0
    %2126 = vmatpush.msra.mxu0 0.0
    %2127 = vmatpush.msra.mxu0 0.0
    %2128 = vmatpush.msra.mxu0 0.0
    %2129 = vmatpush.msra.mxu0 %v2106
    %2130 = vmatpush.msra.mxu0 %v2104
    %2131 = vmatmul.f32.gmra.mxu0 %v2110
    %v2132 = vpop.f32.mrf.mxu0
    %v2133 = vadd.f32 0.0, %v2132
    %2134 = vmatmul.f32.gmra.mxu0 %v2113
    %v2135 = vpop.f32.mrf.mxu0
    %v2136 = vadd.f32 0.0, %v2135
    %2137 = vdwg.mxu0
    %2138 = vrot.lane.b32.xlu0 %v1995, 120
    %v2139 = vpop.permute.xlu0 %2138
    %2140 = vrot.lane.b32.xlu0 %v1998, 120
    %v2141 = vpop.permute.xlu0 %2140
    %2142 = vrot.lane.b32.xlu0 %v2037, 120
    %v2143 = vpop.permute.xlu0 %2142
    %2144 = vrot.lane.b32.xlu0 %v2040, 120
    %v2145 = vpop.permute.xlu0 %2144
    %v2146 = vsel %vm127, %v2139, 0
    %v2148 = vsel %vm127, %v2141, 0
    %v2150 = vsel %vm127, %v2143, 0
    %v2152 = vsel %vm127, %v2145, 0
    %2154 = vmatpush.xpose.msra.mxu0 0.0
    %2155 = vmatpush.xpose.msra.mxu0 0.0
    %2156 = vmatpush.xpose.msra.mxu0 0.0
    %2157 = vmatpush.xpose.msra.mxu0 0.0
    %2158 = vmatpush.xpose.msra.mxu0 0.0
    %2159 = vmatpush.xpose.msra.mxu0 0.0
    %2160 = vmatpush.xpose.msra.mxu0 0.0
    %2161 = vmatpush.xpose.msra.mxu0 0.0
    %2162 = vmatpush.xpose.msra.mxu0 0.0
    %2163 = vmatpush.xpose.msra.mxu0 0.0
    %2164 = vmatpush.xpose.msra.mxu0 0.0
    %2165 = vmatpush.xpose.msra.mxu0 0.0
    %2166 = vmatpush.xpose.msra.mxu0 0.0
    %2167 = vmatpush.xpose.msra.mxu0 0.0
    %2168 = vmatpush.xpose.msra.mxu0 %v2152
    %2169 = vmatpush.xpose.msra.mxu0 %v2150
    %2170 = vmatmul.f32.gmra.mxu0 %v2146
    %v2171 = vpop.f32.mrf.mxu0
    %v2172 = vadd.f32 0.0, %v2171
    %2173 = vmatmul.f32.gmra.mxu0 %v2148
    %v2174 = vpop.f32.mrf.mxu0
    %v2175 = vadd.f32 0.0, %v2174
    %2176 = vdwg.mxu0
    %v2177 = vmul.f32 %v2172, 0.35355338
    %v2178 = vmul.f32 %v2175, 0.35355338
    %v2179 = vadd.f32 %v2177, %v76
    %v2180 = vadd.f32 %v2178, %v77
    %v2181 = vsel %vm163, %v2179, -inf
    %2182 = vmax.xlane.f32.xlu0 %v2181
    %v2183 = vpop.xlane.xlu0 %2182
    %v2184 = vsel %vm163, %v2180, -inf
    %2185 = vmax.xlane.f32.xlu0 %v2184
    %v2186 = vpop.xlane.xlu0 %2185
    %v2187 = vsub.f32 %v2179, %v2183
    %v2188 = vsub.f32 %v2180, %v2186
    %v2189 = vmul.f32 %v2187, 1.442695
    %v2190 = vpow.pop %v2189
    %v2191 = vmul.f32 %v2188, 1.442695
    %v2192 = vpow.pop %v2191
    %v2193 = vsel %vm163, %v2190, 0.0
    %2194 = vadd.xlane.f32.xlu0 %v2193
    %v2195 = vpop.xlane.xlu0 %2194
    %v2196 = vsel %vm163, %v2192, 0.0
    %2197 = vadd.xlane.f32.xlu0 %v2196
    %v2198 = vpop.xlane.xlu0 %2197
    %v2199 = vrcp.pop %v2195
    %v2200 = vrcp.pop %v2198
    %v2201 = vmul.f32 %v2190, %v2199
    %v2202 = vmul.f32 %v2192, %v2200
    %2203 = vrot.lane.b32.xlu0 %v2037, 88
    %v2204 = vpop.permute.xlu0 %2203
    %2205 = vrot.lane.b32.xlu0 %v2040, 88
    %v2206 = vpop.permute.xlu0 %2205
    %v2210 = vsel %vm163, %v2201, 0
    %v2213 = vsel %vm163, %v2202, 0
    %2215 = vmatpush.msra.mxu0 0.0
    %2216 = vmatpush.msra.mxu0 0.0
    %2217 = vmatpush.msra.mxu0 0.0
    %2218 = vmatpush.msra.mxu0 0.0
    %2219 = vmatpush.msra.mxu0 0.0
    %2220 = vmatpush.msra.mxu0 0.0
    %2221 = vmatpush.msra.mxu0 0.0
    %2222 = vmatpush.msra.mxu0 0.0
    %2223 = vmatpush.msra.mxu0 0.0
    %2224 = vmatpush.msra.mxu0 0.0
    %2225 = vmatpush.msra.mxu0 0.0
    %2226 = vmatpush.msra.mxu0 0.0
    %2227 = vmatpush.msra.mxu0 0.0
    %2228 = vmatpush.msra.mxu0 0.0
    %2229 = vmatpush.msra.mxu0 %v2206
    %2230 = vmatpush.msra.mxu0 %v2204
    %2231 = vmatmul.f32.gmra.mxu0 %v2210
    %v2232 = vpop.f32.mrf.mxu0
    %v2233 = vadd.f32 0.0, %v2232
    %2234 = vmatmul.f32.gmra.mxu0 %v2213
    %v2235 = vpop.f32.mrf.mxu0
    %v2236 = vadd.f32 0.0, %v2235
    %2237 = vdwg.mxu0
    %2238 = vrot.lane.b32.xlu0 %v1995, 112
    %v2239 = vpop.permute.xlu0 %2238
    %2240 = vrot.lane.b32.xlu0 %v1998, 112
    %v2241 = vpop.permute.xlu0 %2240
    %2242 = vrot.lane.b32.xlu0 %v2037, 112
    %v2243 = vpop.permute.xlu0 %2242
    %2244 = vrot.lane.b32.xlu0 %v2040, 112
    %v2245 = vpop.permute.xlu0 %2244
    %v2246 = vsel %vm127, %v2239, 0
    %v2248 = vsel %vm127, %v2241, 0
    %v2250 = vsel %vm127, %v2243, 0
    %v2252 = vsel %vm127, %v2245, 0
    %2254 = vmatpush.xpose.msra.mxu0 0.0
    %2255 = vmatpush.xpose.msra.mxu0 0.0
    %2256 = vmatpush.xpose.msra.mxu0 0.0
    %2257 = vmatpush.xpose.msra.mxu0 0.0
    %2258 = vmatpush.xpose.msra.mxu0 0.0
    %2259 = vmatpush.xpose.msra.mxu0 0.0
    %2260 = vmatpush.xpose.msra.mxu0 0.0
    %2261 = vmatpush.xpose.msra.mxu0 0.0
    %2262 = vmatpush.xpose.msra.mxu0 0.0
    %2263 = vmatpush.xpose.msra.mxu0 0.0
    %2264 = vmatpush.xpose.msra.mxu0 0.0
    %2265 = vmatpush.xpose.msra.mxu0 0.0
    %2266 = vmatpush.xpose.msra.mxu0 0.0
    %2267 = vmatpush.xpose.msra.mxu0 0.0
    %2268 = vmatpush.xpose.msra.mxu0 %v2252
    %2269 = vmatpush.xpose.msra.mxu0 %v2250
    %2270 = vmatmul.f32.gmra.mxu0 %v2246
    %v2271 = vpop.f32.mrf.mxu0
    %v2272 = vadd.f32 0.0, %v2271
    %2273 = vmatmul.f32.gmra.mxu0 %v2248
    %v2274 = vpop.f32.mrf.mxu0
    %v2275 = vadd.f32 0.0, %v2274
    %2276 = vdwg.mxu0
    %v2277 = vmul.f32 %v2272, 0.35355338
    %v2278 = vmul.f32 %v2275, 0.35355338
    %v2279 = vadd.f32 %v2277, %v76
    %v2280 = vadd.f32 %v2278, %v77
    %v2281 = vsel %vm163, %v2279, -inf
    %2282 = vmax.xlane.f32.xlu0 %v2281
    %v2283 = vpop.xlane.xlu0 %2282
    %v2284 = vsel %vm163, %v2280, -inf
    %2285 = vmax.xlane.f32.xlu0 %v2284
    %v2286 = vpop.xlane.xlu0 %2285
    %v2287 = vsub.f32 %v2279, %v2283
    %v2288 = vsub.f32 %v2280, %v2286
    %v2289 = vmul.f32 %v2287, 1.442695
    %v2290 = vpow.pop %v2289
    %v2291 = vmul.f32 %v2288, 1.442695
    %v2292 = vpow.pop %v2291
    %v2293 = vsel %vm163, %v2290, 0.0
    %2294 = vadd.xlane.f32.xlu0 %v2293
    %v2295 = vpop.xlane.xlu0 %2294
    %v2296 = vsel %vm163, %v2292, 0.0
    %2297 = vadd.xlane.f32.xlu0 %v2296
    %v2298 = vpop.xlane.xlu0 %2297
    %v2299 = vrcp.pop %v2295
    %v2300 = vrcp.pop %v2298
    %v2301 = vmul.f32 %v2290, %v2299
    %v2302 = vmul.f32 %v2292, %v2300
    %2303 = vrot.lane.b32.xlu0 %v2037, 80
    %v2304 = vpop.permute.xlu0 %2303
    %2305 = vrot.lane.b32.xlu0 %v2040, 80
    %v2306 = vpop.permute.xlu0 %2305
    %v2310 = vsel %vm163, %v2301, 0
    %v2313 = vsel %vm163, %v2302, 0
    %2315 = vmatpush.msra.mxu0 0.0
    %2316 = vmatpush.msra.mxu0 0.0
    %2317 = vmatpush.msra.mxu0 0.0
    %2318 = vmatpush.msra.mxu0 0.0
    %2319 = vmatpush.msra.mxu0 0.0
    %2320 = vmatpush.msra.mxu0 0.0
    %2321 = vmatpush.msra.mxu0 0.0
    %2322 = vmatpush.msra.mxu0 0.0
    %2323 = vmatpush.msra.mxu0 0.0
    %2324 = vmatpush.msra.mxu0 0.0
    %2325 = vmatpush.msra.mxu0 0.0
    %2326 = vmatpush.msra.mxu0 0.0
    %2327 = vmatpush.msra.mxu0 0.0
    %2328 = vmatpush.msra.mxu0 0.0
    %2329 = vmatpush.msra.mxu0 %v2306
    %2330 = vmatpush.msra.mxu0 %v2304
    %2331 = vmatmul.f32.gmra.mxu0 %v2310
    %v2332 = vpop.f32.mrf.mxu0
    %v2333 = vadd.f32 0.0, %v2332
    %2334 = vmatmul.f32.gmra.mxu0 %v2313
    %v2335 = vpop.f32.mrf.mxu0
    %v2336 = vadd.f32 0.0, %v2335
    %2337 = vdwg.mxu0
    %2338 = vrot.lane.b32.xlu0 %v1995, 104
    %v2339 = vpop.permute.xlu0 %2338
    %2340 = vrot.lane.b32.xlu0 %v1998, 104
    %v2341 = vpop.permute.xlu0 %2340
    %2342 = vrot.lane.b32.xlu0 %v2037, 104
    %v2343 = vpop.permute.xlu0 %2342
    %2344 = vrot.lane.b32.xlu0 %v2040, 104
    %v2345 = vpop.permute.xlu0 %2344
    %v2346 = vsel %vm127, %v2339, 0
    %v2348 = vsel %vm127, %v2341, 0
    %v2350 = vsel %vm127, %v2343, 0
    %v2352 = vsel %vm127, %v2345, 0
    %2354 = vmatpush.xpose.msra.mxu0 0.0
    %2355 = vmatpush.xpose.msra.mxu0 0.0
    %2356 = vmatpush.xpose.msra.mxu0 0.0
    %2357 = vmatpush.xpose.msra.mxu0 0.0
    %2358 = vmatpush.xpose.msra.mxu0 0.0
    %2359 = vmatpush.xpose.msra.mxu0 0.0
    %2360 = vmatpush.xpose.msra.mxu0 0.0
    %2361 = vmatpush.xpose.msra.mxu0 0.0
    %2362 = vmatpush.xpose.msra.mxu0 0.0
    %2363 = vmatpush.xpose.msra.mxu0 0.0
    %2364 = vmatpush.xpose.msra.mxu0 0.0
    %2365 = vmatpush.xpose.msra.mxu0 0.0
    %2366 = vmatpush.xpose.msra.mxu0 0.0
    %2367 = vmatpush.xpose.msra.mxu0 0.0
    %2368 = vmatpush.xpose.msra.mxu0 %v2352
    %2369 = vmatpush.xpose.msra.mxu0 %v2350
    %2370 = vmatmul.f32.gmra.mxu0 %v2346
    %v2371 = vpop.f32.mrf.mxu0
    %v2372 = vadd.f32 0.0, %v2371
    %2373 = vmatmul.f32.gmra.mxu0 %v2348
    %v2374 = vpop.f32.mrf.mxu0
    %v2375 = vadd.f32 0.0, %v2374
    %2376 = vdwg.mxu0
    %v2377 = vmul.f32 %v2372, 0.35355338
    %v2378 = vmul.f32 %v2375, 0.35355338
    %v2379 = vadd.f32 %v2377, %v76
    %v2380 = vadd.f32 %v2378, %v77
    %v2381 = vsel %vm163, %v2379, -inf
    %2382 = vmax.xlane.f32.xlu0 %v2381
    %v2383 = vpop.xlane.xlu0 %2382
    %v2384 = vsel %vm163, %v2380, -inf
    %2385 = vmax.xlane.f32.xlu0 %v2384
    %v2386 = vpop.xlane.xlu0 %2385
    %v2387 = vsub.f32 %v2379, %v2383
    %v2388 = vsub.f32 %v2380, %v2386
    %v2389 = vmul.f32 %v2387, 1.442695
    %v2390 = vpow.pop %v2389
    %v2391 = vmul.f32 %v2388, 1.442695
    %v2392 = vpow.pop %v2391
    %v2393 = vsel %vm163, %v2390, 0.0
    %2394 = vadd.xlane.f32.xlu0 %v2393
    %v2395 = vpop.xlane.xlu0 %2394
    %v2396 = vsel %vm163, %v2392, 0.0
    %2397 = vadd.xlane.f32.xlu0 %v2396
    %v2398 = vpop.xlane.xlu0 %2397
    %v2399 = vrcp.pop %v2395
    %v2400 = vrcp.pop %v2398
    %v2401 = vmul.f32 %v2390, %v2399
    %v2402 = vmul.f32 %v2392, %v2400
    %2403 = vrot.lane.b32.xlu0 %v2037, 72
    %v2404 = vpop.permute.xlu0 %2403
    %2405 = vrot.lane.b32.xlu0 %v2040, 72
    %v2406 = vpop.permute.xlu0 %2405
    %v2410 = vsel %vm163, %v2401, 0
    %v2413 = vsel %vm163, %v2402, 0
    %2415 = vmatpush.msra.mxu0 0.0
    %2416 = vmatpush.msra.mxu0 0.0
    %2417 = vmatpush.msra.mxu0 0.0
    %2418 = vmatpush.msra.mxu0 0.0
    %2419 = vmatpush.msra.mxu0 0.0
    %2420 = vmatpush.msra.mxu0 0.0
    %2421 = vmatpush.msra.mxu0 0.0
    %2422 = vmatpush.msra.mxu0 0.0
    %2423 = vmatpush.msra.mxu0 0.0
    %2424 = vmatpush.msra.mxu0 0.0
    %2425 = vmatpush.msra.mxu0 0.0
    %2426 = vmatpush.msra.mxu0 0.0
    %2427 = vmatpush.msra.mxu0 0.0
    %2428 = vmatpush.msra.mxu0 0.0
    %2429 = vmatpush.msra.mxu0 %v2406
    %2430 = vmatpush.msra.mxu0 %v2404
    %2431 = vmatmul.f32.gmra.mxu0 %v2410
    %v2432 = vpop.f32.mrf.mxu0
    %v2433 = vadd.f32 0.0, %v2432
    %2434 = vmatmul.f32.gmra.mxu0 %v2413
    %v2435 = vpop.f32.mrf.mxu0
    %v2436 = vadd.f32 0.0, %v2435
    %2437 = vdwg.mxu0
    %2440 = vrot.lane.b32.xlu0 %v2233, 8
    %v2441 = vpop.permute.xlu0 %2440
    %2442 = vrot.lane.b32.xlu0 %v2236, 8
    %v2443 = vpop.permute.xlu0 %2442
    %2448 = vrot.lane.b32.xlu0 %v2333, 16
    %v2449 = vpop.permute.xlu0 %2448
    %2450 = vrot.lane.b32.xlu0 %v2336, 16
    %v2451 = vpop.permute.xlu0 %2450
    %2456 = vrot.lane.b32.xlu0 %v2433, 24
    %v2457 = vpop.permute.xlu0 %2456
    %2458 = vrot.lane.b32.xlu0 %v2436, 24
    %v2459 = vpop.permute.xlu0 %2458
    %v2462 = vsel %vm127, %v2133, %v2441
    %v2463 = vsel %vm127, %v2136, %v2443
    %v2464 = vsel %vm163, %v2462, %v2449
    %v2465 = vsel %vm163, %v2463, %v2451
    %v2466 = vsel %vm549, %v2464, %v2457
    %v2467 = vsel %vm549, %v2465, %v2459
    %v2469 = vperm.slane %v1967, 0
    %v2472 = vsel %vm91, %v2466, 0
    %v2475 = vsel %vm91, %v2467, 0
    %2477 = vmatpush.msra.mxu0 0.0
    %2478 = vmatpush.msra.mxu0 0.0
    %2479 = vmatpush.msra.mxu0 0.0
    %2480 = vmatpush.msra.mxu0 0.0
    %2481 = vmatpush.msra.mxu0 0.0
    %2482 = vmatpush.msra.mxu0 0.0
    %2483 = vmatpush.msra.mxu0 0.0
    %2484 = vmatpush.msra.mxu0 0.0
    %2485 = vmatpush.msra.mxu0 0.0
    %2486 = vmatpush.msra.mxu0 0.0
    %2487 = vmatpush.msra.mxu0 0.0
    %2488 = vmatpush.msra.mxu0 0.0
    %2489 = vmatpush.msra.mxu0 %v1965
    %2490 = vmatpush.msra.mxu0 %v1964
    %2491 = vmatpush.msra.mxu0 %v1963
    %2492 = vmatpush.msra.mxu0 %v1962
    %2493 = vmatmul.f32.gmra.mxu0 %v2472
    %v2494 = vpop.f32.mrf.mxu0
    %v2495 = vadd.f32 %v2469, %v2494
    %2496 = vmatmul.f32.gmra.mxu0 %v2475
    %v2497 = vpop.f32.mrf.mxu0
    %v2498 = vadd.f32 %v2469, %v2497
    %2499 = vdwg.mxu0
    %v2500 = vadd.f32 %v1952, %v2495
    %v2501 = vadd.f32 %v1953, %v2498
    %s2502 = scalar_lea.vmem %s18, 1
    %v2503 = vld [vmem:[%s2502] sm:$0x1]
    %s2504 = scalar_lea.vmem %s19, 1
    %v2505 = vld [vmem:[%s2504] sm:$0x1]
    %v2506 = vsel %vm91, %v2500, 0.0
    %2507 = vadd.xlane.f32.xlu0 %v2506
    %v2508 = vpop.xlane.xlu0 %2507
    %v2509 = vsel %vm91, %v2501, 0.0
    %2510 = vadd.xlane.f32.xlu0 %v2509
    %v2511 = vpop.xlane.xlu0 %2510
    %v2512 = vmul.f32 %v2508, %v600
    %v2513 = vmul.f32 %v2511, %v600
    %v2514 = vsub.f32 %v2500, %v2512
    %v2515 = vsub.f32 %v2501, %v2513
    %v2516 = vmul.f32 %v2514, %v2514
    %v2517 = vmul.f32 %v2515, %v2515
    %v2518 = vsel %vm91, %v2516, 0.0
    %2519 = vadd.xlane.f32.xlu0 %v2518
    %v2520 = vpop.xlane.xlu0 %2519
    %v2521 = vsel %vm91, %v2517, 0.0
    %2522 = vadd.xlane.f32.xlu0 %v2521
    %v2523 = vpop.xlane.xlu0 %2522
    %v2524 = vmul.f32 %v2520, %v600
    %v2525 = vmul.f32 %v2523, %v600
    %v2526 = vadd.f32 %v2524, 1e-05
    %v2527 = vadd.f32 %v2525, 1e-05
    %v2528 = vrsqrt.pop %v2526
    %v2529 = vmul.f32 %v2528, %v2526
    %v2530 = vmul.f32 %v2529, %v2528
    %v2531 = vmul.f32 0.5, %v2530
    %v2532 = vsub.f32 1.5, %v2531
    %v2533 = vmul.f32 %v2528, %v2532
    %vm2534 = vweird.f32 %v2526
    %vm2535 = vweird.f32 %v2528
    %vm2536 = vmor %vm2534, %vm2535
    %v2537 = vsel %vm2536, %v2528, %v2533
    %v2538 = vrsqrt.pop %v2527
    %v2539 = vmul.f32 %v2538, %v2527
    %v2540 = vmul.f32 %v2539, %v2538
    %v2541 = vmul.f32 0.5, %v2540
    %v2542 = vsub.f32 1.5, %v2541
    %v2543 = vmul.f32 %v2538, %v2542
    %vm2544 = vweird.f32 %v2527
    %vm2545 = vweird.f32 %v2538
    %vm2546 = vmor %vm2544, %vm2545
    %v2547 = vsel %vm2546, %v2538, %v2543
    %v2548 = vmul.f32 %v2514, %v2537
    %v2549 = vmul.f32 %v2515, %v2547
    %v2551 = vperm.slane %v2503, 0
    %v2553 = vmul.f32 %v2548, %v2551
    %v2554 = vmul.f32 %v2549, %v2551
    %v2556 = vperm.slane %v2505, 0
    %v2558 = vadd.f32 %v2553, %v2556
    %v2559 = vadd.f32 %v2554, %v2556
    %s2560 = scalar_lea.vmem %s12, 32
    %v2561 = vld [vmem:[%s2560] sm:$0xff]
    %v2562 = vld [vmem:[%s2560 + $0x8] sm:$0xff]
    %v2563 = vld [vmem:[%s2560 + $0x10] sm:$0xff]
    %v2564 = vld [vmem:[%s2560 + $0x18] sm:$0xff]
    %s2565 = scalar_lea.vmem %s13, 1
    %v2566 = vld [vmem:[%s2565] sm:$0x1]
    %v2568 = vperm.slane %v2566, 0
    %v2571 = vsel %vm91, %v2558, 0
    %v2574 = vsel %vm91, %v2559, 0
    %2576 = vmatpush.msra.mxu0 0.0
    %2577 = vmatpush.msra.mxu0 0.0
    %2578 = vmatpush.msra.mxu0 0.0
    %2579 = vmatpush.msra.mxu0 0.0
    %2580 = vmatpush.msra.mxu0 0.0
    %2581 = vmatpush.msra.mxu0 0.0
    %2582 = vmatpush.msra.mxu0 0.0
    %2583 = vmatpush.msra.mxu0 0.0
    %2584 = vmatpush.msra.mxu0 0.0
    %2585 = vmatpush.msra.mxu0 0.0
    %2586 = vmatpush.msra.mxu0 0.0
    %2587 = vmatpush.msra.mxu0 0.0
    %2588 = vmatpush.msra.mxu0 %v2564
    %2589 = vmatpush.msra.mxu0 %v2563
    %2590 = vmatpush.msra.mxu0 %v2562
    %2591 = vmatpush.msra.mxu0 %v2561
    %2592 = vmatmul.f32.gmra.mxu0 %v2571
    %v2593 = vpop.f32.mrf.mxu0
    %v2594 = vadd.f32 %v2568, %v2593
    %2595 = vmatmul.f32.gmra.mxu0 %v2574
    %v2596 = vpop.f32.mrf.mxu0
    %v2597 = vadd.f32 %v2568, %v2596
    %2598 = vdwg.mxu0
    %v2599 = vmax.f32 %v2594, 0.0
    %v2600 = vmax.f32 %v2597, 0.0
    %s2601 = scalar_lea.vmem %s14, 64
    %v2602 = vld [vmem:[%s2601] sm:$0xff]
    %v2603 = vld [vmem:[%s2601 + $0x8] sm:$0xff]
    %v2604 = vld [vmem:[%s2601 + $0x10] sm:$0xff]
    %v2605 = vld [vmem:[%s2601 + $0x18] sm:$0xff]
    %v2606 = vld [vmem:[%s2601 + $0x20] sm:$0xff]
    %v2607 = vld [vmem:[%s2601 + $0x28] sm:$0xff]
    %v2608 = vld [vmem:[%s2601 + $0x30] sm:$0xff]
    %v2609 = vld [vmem:[%s2601 + $0x38] sm:$0xff]
    %s2610 = scalar_lea.vmem %s15, 1
    %v2611 = vld [vmem:[%s2610] sm:$0x1]
    %v2613 = vperm.slane %v2611, 0
    %v2616 = vsel %vm1300, %v2599, 0
    %v2619 = vsel %vm1300, %v2600, 0
    %2621 = vmatpush.msra.mxu0 0.0
    %2622 = vmatpush.msra.mxu0 0.0
    %2623 = vmatpush.msra.mxu0 0.0
    %2624 = vmatpush.msra.mxu0 0.0
    %2625 = vmatpush.msra.mxu0 0.0
    %2626 = vmatpush.msra.mxu0 0.0
    %2627 = vmatpush.msra.mxu0 0.0
    %2628 = vmatpush.msra.mxu0 0.0
    %2629 = vmatpush.msra.mxu0 %v2609
    %2630 = vmatpush.msra.mxu0 %v2608
    %2631 = vmatpush.msra.mxu0 %v2607
    %2632 = vmatpush.msra.mxu0 %v2606
    %2633 = vmatpush.msra.mxu0 %v2605
    %2634 = vmatpush.msra.mxu0 %v2604
    %2635 = vmatpush.msra.mxu0 %v2603
    %2636 = vmatpush.msra.mxu0 %v2602
    %2637 = vmatmul.f32.gmra.mxu0 %v2616
    %v2638 = vpop.f32.mrf.mxu0
    %v2639 = vadd.f32 %v2613, %v2638
    %2640 = vmatmul.f32.gmra.mxu0 %v2619
    %v2641 = vpop.f32.mrf.mxu0
    %v2642 = vadd.f32 %v2613, %v2641
    %2643 = vdwg.mxu0
    %v2644 = vadd.f32 %v2558, %v2639
    %v2645 = vadd.f32 %v2559, %v2642
    %s2646 = scalar_lea.vmem %s20, 1
    %v2647 = vld [vmem:[%s2646] sm:$0x1]
    %s2648 = scalar_lea.vmem %s21, 1
    %v2649 = vld [vmem:[%s2648] sm:$0x1]
    %v2650 = vsel %vm91, %v2644, 0.0
    %2651 = vadd.xlane.f32.xlu0 %v2650
    %v2652 = vpop.xlane.xlu0 %2651
    %v2653 = vsel %vm91, %v2645, 0.0
    %2654 = vadd.xlane.f32.xlu0 %v2653
    %v2655 = vpop.xlane.xlu0 %2654
    %v2656 = vmul.f32 %v2652, %v600
    %v2657 = vmul.f32 %v2655, %v600
    %v2658 = vsub.f32 %v2644, %v2656
    %v2659 = vsub.f32 %v2645, %v2657
    %v2660 = vmul.f32 %v2658, %v2658
    %v2661 = vmul.f32 %v2659, %v2659
    %v2662 = vsel %vm91, %v2660, 0.0
    %2663 = vadd.xlane.f32.xlu0 %v2662
    %v2664 = vpop.xlane.xlu0 %2663
    %v2665 = vsel %vm91, %v2661, 0.0
    %2666 = vadd.xlane.f32.xlu0 %v2665
    %v2667 = vpop.xlane.xlu0 %2666
    %v2668 = vmul.f32 %v2664, %v600
    %v2669 = vmul.f32 %v2667, %v600
    %v2670 = vadd.f32 %v2668, 1e-05
    %v2671 = vadd.f32 %v2669, 1e-05
    %v2672 = vrsqrt.pop %v2670
    %v2673 = vmul.f32 %v2672, %v2670
    %v2674 = vmul.f32 %v2673, %v2672
    %v2675 = vmul.f32 0.5, %v2674
    %v2676 = vsub.f32 1.5, %v2675
    %v2677 = vmul.f32 %v2672, %v2676
    %vm2678 = vweird.f32 %v2670
    %vm2679 = vweird.f32 %v2672
    %vm2680 = vmor %vm2678, %vm2679
    %v2681 = vsel %vm2680, %v2672, %v2677
    %v2682 = vrsqrt.pop %v2671
    %v2683 = vmul.f32 %v2682, %v2671
    %v2684 = vmul.f32 %v2683, %v2682
    %v2685 = vmul.f32 0.5, %v2684
    %v2686 = vsub.f32 1.5, %v2685
    %v2687 = vmul.f32 %v2682, %v2686
    %vm2688 = vweird.f32 %v2671
    %vm2689 = vweird.f32 %v2682
    %vm2690 = vmor %vm2688, %vm2689
    %v2691 = vsel %vm2690, %v2682, %v2687
    %v2692 = vmul.f32 %v2658, %v2681
    %v2693 = vmul.f32 %v2659, %v2691
    %v2695 = vperm.slane %v2647, 0
    %v2697 = vmul.f32 %v2692, %v2695
    %v2698 = vmul.f32 %v2693, %v2695
    %v2700 = vperm.slane %v2649, 0
    %v2702 = vadd.f32 %v2697, %v2700
    %v2703 = vadd.f32 %v2698, %v2700
    %v2705 = vrot.slane %v2702, 7
    %v2708 = vrot.slane %v2703, 6
    %vm2710 = vcmask 1040384
    %v2711 = vsel %vm2710, %v2705, %v2708
    %v2712 = vld [vmem:[%s3] sm:$0xff]
    %v2713 = vld [vmem:[%s3 + $0x8] sm:$0xff]
    %v2714 = vld [vmem:[%s3 + $0x10] sm:$0xff]
    %v2715 = vld [vmem:[%s3 + $0x18] sm:$0xff]
    %v2717 = vsel %vm91, %v2711, 0
    %2719 = vmatpush.msra.mxu0 0.0
    %2720 = vmatpush.msra.mxu0 0.0
    %2721 = vmatpush.msra.mxu0 0.0
    %2722 = vmatpush.msra.mxu0 0.0
    %2723 = vmatpush.msra.mxu0 0.0
    %2724 = vmatpush.msra.mxu0 0.0
    %2725 = vmatpush.msra.mxu0 0.0
    %2726 = vmatpush.msra.mxu0 0.0
    %2727 = vmatpush.msra.mxu0 0.0
    %2728 = vmatpush.msra.mxu0 0.0
    %2729 = vmatpush.msra.mxu0 0.0
    %2730 = vmatpush.msra.mxu0 0.0
    %2731 = vmatpush.msra.mxu0 %v2715
    %2732 = vmatpush.msra.mxu0 %v2714
    %2733 = vmatpush.msra.mxu0 %v2713
    %2734 = vmatpush.msra.mxu0 %v2712
    %2735 = vmatmul.f32.gmra.mxu0 %v2717
    %v2736 = vpop.f32.mrf.mxu0
    %v2737 = vadd.f32 0.0, %v2736
    %2738 = vdwg.mxu0
    %vm2739 = vcmask 517120
    %2740 = vst.msk [vmem:[#allocation2] sm:$0x3] %vm2739, %v2737
    // Predicated region
    $region90: #{chess_transformer_forward.1} parent=1 // pred_check
      _
    $region91: #{chess_transformer_forward.1} parent=1 // pred_check_branch
      %2742 = sbr.rel (0) target = $region93
    $region92: #{chess_transformer_forward.1} parent=1 // pred_region
      %2744 = vsyncadd [#allocation3], 0
      %s2746 = sshll.u32 [#allocation2], 4
      %s2747 = int_to_ptr.vmem [resolvable:$true] %s2746
      %s2748 = sshll.u32 %s22, 4
      %s2749 = int_to_ptr.hbm [resolvable:$true] %s2748
      %2751 = dma.vmem_to_hbm [thread:$0]  %s2747, 32, %s2749, [#allocation3]
    $region93: #{chess_transformer_forward.1} parent=1 // pred_fallthru
      _
    // Predicated region
    $region94: #{chess_transformer_forward.1} parent=1 // pred_check
      _
    $region95: #{chess_transformer_forward.1} parent=1 // pred_check_branch
      %2753 = sbr.rel (0) target = $region97
    $region96: #{chess_transformer_forward.1} parent=1 // pred_region
      %2755 = dma.done [#allocation3], 32
    $region97: #{chess_transformer_forward.1} parent=1 // pred_fallthru
      _
    %2756 = vsyncpa [#allocation3], 1

</llo_original>
